<compile_context>
chip_gen: v6e
topology: v6e:2x2x1
jax: 0.10.0
libtpu: 0.0.40
codegen_flags: <defaults>
</compile_context>

<pallas_src>
from functools import partial

import numpy as np
import jax
import jax.numpy as jnp
from jax import lax
from jax.experimental import pallas as pl
from jax.experimental.pallas import tpu as pltpu

LANE = 128


def _round_up(x, m):
    return -(-x // m) * m


def _chunks(total, n):
    """Split `total` rows into n near-equal contiguous (start, size) chunks."""
    n = max(1, min(int(n), total))
    base, rem = divmod(total, n)
    out, r0 = [], 0
    for i in range(n):
        m = base + (1 if i < rem else 0)
        out.append((r0, m))
        r0 += m
    return out


def _pyramid_block_kernel(x_ref, w1_ref, w2_ref,
                          s1_ref, b1_ref, b2_ref, b3_ref,
                          out_ref,
                          pad1_ref, pad2_ref,
                          *, stride, padding, n_chunks1, n_chunks2):
    """One batch-block (Nb images) per grid step; everything resident in VMEM."""
    Nb, H, W, Cin = x_ref.shape
    _, H1, W1, Cout = out_ref.shape
    Cin_k = pad1_ref.shape[-1]        # lane-padded Cin used for conv1 im2col
    Cout_k = pad2_ref.shape[-1]       # lane-padded Cout used for conv2 im2col
    p = padding
    Hp, Wp = H + 2 * p, W + 2 * p
    mm_dtype = w1_ref.dtype           # bf16 (default) or f32
    f32 = jnp.float32

    # ---- BN1 (eval mode: per-channel scale + shift) — f32 VPU math ------------
    xv = x_ref[...].astype(f32)                                     # (Nb,H,W,Cin)
    bn1 = xv.reshape(Nb * H * W, Cin) * s1_ref[...] + b1_ref[...]
    bn1 = bn1.reshape(Nb, H, W, Cin).astype(mm_dtype)               # cast ONCE

    # Fold the channel lane-pad and left/right (W) halo zeros into the interior
    # row store (single contiguous store); only top/bottom halo rows are stored
    # separately (full-width).
    if Cin_k > Cin:
        bn1 = jnp.concatenate(
            [bn1, jnp.zeros((Nb, H, W, Cin_k - Cin), mm_dtype)], axis=-1)
    if p > 0:
        zw = jnp.zeros((Nb, H, p, Cin_k), mm_dtype)
        bn1 = jnp.concatenate([zw, bn1, zw], axis=2)                # (Nb,H,Wp,Cin_k)
        zr = jnp.zeros((Nb, p, Wp, Cin_k), mm_dtype)
        pad1_ref[:, 0:p, :, :] = zr
        pad1_ref[:, p + H:Hp, :, :] = zr
    pad1_ref[:, p:p + H, :, :] = bn1

    # pad2 top/bottom halo rows (conv2 always uses pad=1)
    zr2 = jnp.zeros((Nb, 1, W1 + 2, Cout_k), mm_dtype)
    pad2_ref[:, 0:1, :, :] = zr2
    pad2_ref[:, H1 + 1:H1 + 2, :, :] = zr2

    # ---- conv1: im2col -> (M, 9*Cin_k) x (9*Cin_k, Cout_k) MXU matmul ---------
    # Processed in n_chunks1 chunks of output rows so the 9x im2col transient
    # stays bounded independently of the batch block.
    # TODO(synk): switch chunk loops to lax.fori_loop (uniform chunks) if a
    #             configuration ever needs deep chunking; static unroll is fine
    #             for the 1-8 chunk counts the wrapper picks.
    for r0, mr in _chunks(H1, n_chunks1):
        if stride == 1:
            taps = [pad1_ref[:, kh + r0:kh + r0 + mr, kw:kw + W1, :]
                    for kh in range(3) for kw in range(3)]
        else:
            # Parity-plane strided reads (4 strided loads instead of 9 gathers);
            # each tap is then a contiguous slice of one parity plane.
            planes = {}
            for r in range(stride):
                nr = max(kh // stride for kh in range(3) if kh % stride == r) + mr
                for c in range(stride):
                    nc = max(kw // stride for kw in range(3) if kw % stride == c) + W1
                    planes[(r, c)] = pad1_ref[:, pl.ds(r + stride * r0, nr, stride),
                                              pl.ds(c, nc, stride), :]
            taps = []
            for kh in range(3):
                for kw in range(3):
                    pln = planes[(kh % stride, kw % stride)]
                    taps.append(pln[:, kh // stride:kh // stride + mr,
                                    kw // stride:kw // stride + W1, :])
        patches = jnp.concatenate(taps, axis=-1)                    # already mm_dtype
        patches = patches.reshape(Nb * mr * W1, 9 * Cin_k)
        acc = jnp.dot(patches, w1_ref[...], preferred_element_type=f32)

        # BN2 shift + ReLU (BN2 scale folded into w1 columns); cast once, store
        # into pad2 with the W halo folded into the same contiguous store.
        a = jnp.maximum(acc + b2_ref[...], 0.0).astype(mm_dtype)
        a = a.reshape(Nb, mr, W1, Cout_k)
        zc = jnp.zeros((Nb, mr, 1, Cout_k), mm_dtype)
        pad2_ref[:, 1 + r0:1 + r0 + mr, :, :] = jnp.concatenate([zc, a, zc], axis=2)

    # ---- conv2 (stride 1, pad 1) + BN3 shift + shortcut + residual ------------
    for r0, mr in _chunks(H1, n_chunks2):
        taps = [pad2_ref[:, kh + r0:kh + r0 + mr, kw:kw + W1, :]
                for kh in range(3) for kw in range(3)]
        patches = jnp.concatenate(taps, axis=-1).reshape(Nb * mr * W1, 9 * Cout_k)
        acc = jnp.dot(patches, w2_ref[...], preferred_element_type=f32)
        h = (acc + b3_ref[...]).reshape(Nb, mr, W1, Cout)           # f32

        # Shortcut: identity or 2x2 avg-pool of the raw input (this row chunk).
        if stride == 1:
            h0 = x_ref[:, r0:r0 + mr, :, :].astype(f32)
        else:
            x00 = x_ref[:, pl.ds(2 * r0, mr, 2), pl.ds(0, W1, 2), :]
            x01 = x_ref[:, pl.ds(2 * r0, mr, 2), pl.ds(1, W1, 2), :]
            x10 = x_ref[:, pl.ds(2 * r0 + 1, mr, 2), pl.ds(0, W1, 2), :]
            x11 = x_ref[:, pl.ds(2 * r0 + 1, mr, 2), pl.ds(1, W1, 2), :]
            h0 = 0.25 * (x00 + x01 + x10 + x11).astype(f32)

        # Residual add with implicit channel zero-pad done on the VALUE, then a
        # single full-width store (no out_ref read-modify-write).
        if Cin < Cout:
            h0 = jnp.concatenate(
                [h0, jnp.zeros((Nb, mr, W1, Cout - Cin), f32)], axis=-1)
        out_ref[:, r0:r0 + mr, :, :] = (h + h0).astype(out_ref.dtype)


def _vmem_bytes_estimate(nb, H, W, Cin, H1, W1, Cout, Cin_k, Cout_k,
                         padding, mm_bytes, n_chunks1, n_chunks2):
    """Rough per-grid-step VMEM footprint (bytes) for the block heuristic."""
    f32 = 4
    mr1 = -(-H1 // n_chunks1)
    mr2 = -(-H1 // n_chunks2)
    est = 2 * nb * H * W * Cin * f32                          # x (double-buffered)
    est += 2 * nb * H1 * W1 * Cout * f32                      # out (double-buffered)
    est += 2 * 9 * (Cin_k + Cout_k) * Cout_k * mm_bytes       # weights (2x buffers)
    est += nb * (H + 2 * padding) * (W + 2 * padding) * Cin_k * mm_bytes   # pad1
    est += nb * (H1 + 2) * (W1 + 2) * Cout_k * mm_bytes                    # pad2
    # Largest conv transient: im2col chunk (+ concat copy) + f32 acc/activation.
    t1 = nb * mr1 * W1 * (2 * 9 * Cin_k * mm_bytes + 2 * Cout_k * f32)
    t2 = nb * mr2 * W1 * (2 * 9 * Cout_k * mm_bytes + 2 * Cout * f32)
    est += max(t1, t2)
    est += 2 * nb * H * W * Cin * f32                          # BN1 f32 temporaries
    return est


def _vmem_budget_bytes():
    """(heuristic budget, vmem_limit cap) — generation aware."""
    default_cap = 64 * 2**20
    try:
        info = pltpu.get_tpu_info()
        cap = int(getattr(info, "vmem_capacity_bytes", default_cap))
    except Exception:
        cap = default_cap
    if cap >= 100 * 2**20:             # v5e / v6e: 128 MiB VMEM per core
        return 88 * 2**20, 108 * 2**20
    return 44 * 2**20, 56 * 2**20      # v7x: 64 MiB per TensorCore


def _lane_padded(C, mode):
    """Kernel-internal channel width: pad to a lane multiple when cheap."""
    Cp = _round_up(C, LANE)
    if Cp == C or mode is False:
        return C
    if mode is True:
        return Cp
    # "auto": per-tap padding multiplies im2col K (and its store traffic / MXU
    # passes) by 9*Cp / roundup(9*C, 128); only worth it when that blow-up is
    # small, i.e. channels already close to a lane multiple.
    return Cp if 3 * 9 * Cp <= 4 * _round_up(9 * C, LANE) else C


def pyramid_block_forward(x_nchw, params, *, stride=1, padding=1,
                          matmul_dtype=jnp.bfloat16, batch_block=None,
                          lane_pad="auto"):
    """PyramidBlock forward (shakedrop=False). Input/output NCHW, eval-mode BN."""
    eps = 1e-5
    x = jnp.transpose(x_nchw, (0, 2, 3, 1)).astype(jnp.float32)   # NCHW -> NHWC
    N, H, W, Cin = x.shape

    # conv weights: PyTorch OIHW -> HWIO
    w1_hwio = jnp.transpose(params["conv1_w"], (2, 3, 1, 0)).astype(jnp.float32)
    w2_hwio = jnp.transpose(params["conv2_w"], (2, 3, 1, 0)).astype(jnp.float32)
    Cout = w1_hwio.shape[-1]

    def fold(g, b, m, v):
        s = (g / jnp.sqrt(v + eps)).astype(jnp.float32)
        return s, (b - m * s).astype(jnp.float32)

    s1, b1 = fold(params["bn1_g"], params["bn1_b"], params["bn1_m"], params["bn1_v"])
    s2, b2 = fold(params["bn2_g"], params["bn2_b"], params["bn2_m"], params["bn2_v"])
    s3, b3 = fold(params["bn3_g"], params["bn3_b"], params["bn3_m"], params["bn3_v"])

    # Fold BN2 / BN3 scales into the conv output-channel columns (exact).
    w1_hwio = w1_hwio * s2[None, None, None, :]
    w2_hwio = w2_hwio * s3[None, None, None, :]

    H1 = (H + 2 * padding - 3) // stride + 1
    W1 = (W + 2 * padding - 3) // stride + 1
    downsample = (stride == 2)
    if downsample:
        assert H == 2 * H1 and W == 2 * W1, "downsample path needs H=2*H1, W=2*W1"
        assert 2 * H1 <= H + 2 * padding - 1 and 2 * W1 <= W + 2 * padding - 1
    else:
        assert (H1, W1) == (H, W), "identity shortcut needs conv1 to preserve H, W"
    assert Cout >= Cin

    # Kernel-internal channel lane padding (wrapper-side zero pad; exact).
    Cin_k = _lane_padded(Cin, lane_pad)
    Cout_k = _lane_padded(Cout, lane_pad)
    if Cin_k > Cin:
        w1_hwio = jnp.pad(w1_hwio, ((0, 0), (0, 0), (0, Cin_k - Cin), (0, 0)))
    if Cout_k > Cout:
        w1_hwio = jnp.pad(w1_hwio, ((0, 0), (0, 0), (0, 0), (0, Cout_k - Cout)))
        w2_hwio = jnp.pad(w2_hwio, ((0, 0), (0, 0), (0, Cout_k - Cout), (0, 0)))
        b2 = jnp.pad(b2, (0, Cout_k - Cout))

    w1_mat = w1_hwio.reshape(9 * Cin_k, Cout_k).astype(matmul_dtype)
    w2_mat = w2_hwio.reshape(9 * Cout_k, Cout).astype(matmul_dtype)

    mm_bytes = jnp.dtype(matmul_dtype).itemsize
    budget, limit_cap = _vmem_budget_bytes()

    def est(nb_, c1_, c2_):
        return _vmem_bytes_estimate(nb_, H, W, Cin, H1, W1, Cout, Cin_k, Cout_k,
                                    padding, mm_bytes, c1_, c2_)

    # Batch block: amortize the ~0.35us per-step overhead but (a) stay inside
    # the generation-aware VMEM budget and (b) keep the grid at >= 2 steps so
    # both v7x TensorCores get work and DMA prefetch overlaps compute.
    if batch_block is not None:
        nb = int(batch_block)
        assert N % nb == 0
    else:
        nb = N if N == 1 else N // 2
        while N % nb != 0:
            nb -= 1
    c1 = c2 = 1
    max_chunks = min(H1, 8)
    while est(nb, c1, c2) > budget:
        if c1 < max_chunks:                      # bound the 9x im2col transient
            c1 += 1
        elif c2 < max_chunks:
            c2 += 1
        elif batch_block is None and nb > 1:     # last resort: shrink the block
            nb -= 1
            while N % nb != 0:
                nb -= 1
            c1 = c2 = 1
        else:
            break

    vmem_limit = int(min(max(3 * est(nb, c1, c2) // 2, 32 * 2**20), limit_cap))

    s1 = s1.reshape(1, Cin)
    b1 = b1.reshape(1, Cin)
    b2 = b2.reshape(1, Cout_k)
    b3 = b3.reshape(1, Cout)

    kernel = partial(_pyramid_block_kernel, stride=stride, padding=padding,
                     n_chunks1=c1, n_chunks2=c2)

    out_nhwc = pl.pallas_call(
        kernel,
        out_shape=jax.ShapeDtypeStruct((N, H1, W1, Cout), jnp.float32),
        grid=(N // nb,),
        in_specs=[
            pl.BlockSpec((nb, H, W, Cin), lambda b: (b, 0, 0, 0)),
            # Grid-invariant operands (constant index maps).
            pl.BlockSpec((9 * Cin_k, Cout_k), lambda b: (0, 0)),
            pl.BlockSpec((9 * Cout_k, Cout), lambda b: (0, 0)),
            pl.BlockSpec((1, Cin), lambda b: (0, 0)),
            pl.BlockSpec((1, Cin), lambda b: (0, 0)),
            pl.BlockSpec((1, Cout_k), lambda b: (0, 0)),
            pl.BlockSpec((1, Cout), lambda b: (0, 0)),
        ],
        out_specs=pl.BlockSpec((nb, H1, W1, Cout), lambda b: (b, 0, 0, 0)),
        scratch_shapes=[
            pltpu.VMEM((nb, H + 2 * padding, W + 2 * padding, Cin_k), matmul_dtype),
            pltpu.VMEM((nb, H1 + 2, W1 + 2, Cout_k), matmul_dtype),
        ],
        compiler_params=pltpu.CompilerParams(
            dimension_semantics=("parallel",),
            vmem_limit_bytes=vmem_limit),
    )(x, w1_mat, w2_mat, s1, b1, b2, b3)

    return jnp.transpose(out_nhwc, (0, 3, 1, 2))                  # NHWC -> NCHW


# ----------------------------- pure-JAX reference ---------------------------------
def reference_forward(x, params, *, stride=1, padding=1):
    eps = 1e-5

    def bn(h, g, b, m, v):
        s = g / jnp.sqrt(v + eps)
        return h * s[None, :, None, None] + (b - m * s)[None, :, None, None]

    dn = ("NCHW", "OIHW", "NCHW")
    h = bn(x, params["bn1_g"], params["bn1_b"], params["bn1_m"], params["bn1_v"])
    h = lax.conv_general_dilated(h, params["conv1_w"], (stride, stride),
                                 [(padding, padding), (padding, padding)],
                                 dimension_numbers=dn)
    h = bn(h, params["bn2_g"], params["bn2_b"], params["bn2_m"], params["bn2_v"])
    h = jnp.maximum(h, 0.0)
    h = lax.conv_general_dilated(h, params["conv2_w"], (1, 1),
                                 [(1, 1), (1, 1)], dimension_numbers=dn)
    h = bn(h, params["bn3_g"], params["bn3_b"], params["bn3_m"], params["bn3_v"])

    if stride == 2:
        N, C, H, W = x.shape
        h0 = x.reshape(N, C, H // 2, 2, W // 2, 2).mean(axis=(3, 5))
    else:
        h0 = x
    Cout, Cin = h.shape[1], h0.shape[1]
    h0 = jnp.pad(h0, ((0, 0), (0, Cout - Cin), (0, 0), (0, 0)))
    return h + h0


def make_params(key, in_channel, out_channel):
    ks = jax.random.split(key, 14)
    f32 = jnp.float32
    return {
        "conv1_w": 0.1 * jax.random.normal(ks[0], (out_channel, in_channel, 3, 3), f32),
        "conv2_w": 0.1 * jax.random.normal(ks[1], (out_channel, out_channel, 3, 3), f32),
        "bn1_g": 1.0 + 0.1 * jax.random.normal(ks[2], (in_channel,), f32),
        "bn1_b": 0.1 * jax.random.normal(ks[3], (in_channel,), f32),
        "bn1_m": 0.1 * jax.random.normal(ks[4], (in_channel,), f32),
        "bn1_v": 0.5 + jax.random.uniform(ks[5], (in_channel,), f32),
        "bn2_g": 1.0 + 0.1 * jax.random.normal(ks[6], (out_channel,), f32),
        "bn2_b": 0.1 * jax.random.normal(ks[7], (out_channel,), f32),
        "bn2_m": 0.1 * jax.random.normal(ks[8], (out_channel,), f32),
        "bn2_v": 0.5 + jax.random.uniform(ks[9], (out_channel,), f32),
        "bn3_g": 1.0 + 0.1 * jax.random.normal(ks[10], (out_channel,), f32),
        "bn3_b": 0.1 * jax.random.normal(ks[11], (out_channel,), f32),
        "bn3_m": 0.1 * jax.random.normal(ks[12], (out_channel,), f32),
        "bn3_v": 0.5 + jax.random.uniform(ks[13], (out_channel,), f32),
    }


if __name__ == "__main__":
    key = jax.random.PRNGKey(0)
    k_param, k_x = jax.random.split(key)

    N, Cin, Cout, H, W = 2, 4, 8, 16, 16
    stride, padding = 1, 1

    params = make_params(k_param, Cin, Cout)
    x = jax.random.normal(k_x, (N, Cin, H, W), jnp.float32)

    ref = jax.block_until_ready(
        reference_forward(x, params, stride=stride, padding=padding))

    # Exactness check: f32 MXU operands must match the XLA reference tightly.
    out_f32 = jax.block_until_ready(
        pyramid_block_forward(x, params, stride=stride, padding=padding,
                              matmul_dtype=jnp.float32))
    assert out_f32.shape == ref.shape, (out_f32.shape, ref.shape)
    assert np.allclose(np.asarray(out_f32), np.asarray(ref), rtol=1e-4, atol=1e-4)

    # Production path: bf16 MXU operands + bf16 im2col pads (f32 accumulation).
    out_bf16 = jax.block_until_ready(
        pyramid_block_forward(x, params, stride=stride, padding=padding,
                              matmul_dtype=jnp.bfloat16))
    assert out_bf16.shape == ref.shape
    assert np.allclose(np.asarray(out_bf16), np.asarray(ref), rtol=5e-2, atol=5e-2)

    print("KERNEL_OK")
</pallas_src>

<mosaic_0001>
module attributes {stable_mosaic.version = 11 : i64} {
  func.func @_pyramid_block_kernel(%arg0: i32, %arg1: memref<1x16x16x4xf32, #tpu.memory_space<vmem>>, %arg2: memref<36x8xf32, #tpu.memory_space<vmem>>, %arg3: memref<72x8xf32, #tpu.memory_space<vmem>>, %arg4: memref<1x4xf32, #tpu.memory_space<vmem>>, %arg5: memref<1x4xf32, #tpu.memory_space<vmem>>, %arg6: memref<1x8xf32, #tpu.memory_space<vmem>>, %arg7: memref<1x8xf32, #tpu.memory_space<vmem>>, %arg8: memref<1x16x16x8xf32, #tpu.memory_space<vmem>>, %arg9: memref<1x18x18x4xf32, #tpu.memory_space<vmem>>, %arg10: memref<1x18x18x8xf32, #tpu.memory_space<vmem>>) attributes {dimension_semantics = [#tpu.dimension_semantics<parallel>], iteration_bounds = array<i64: 2>, scalar_prefetch = 0 : i64, scratch_operands = 2 : i64, tpu.core_type = #tpu.core_type<tc>, window_params = [{transform_indices = @transform_0, window_bounds = array<i64: 1, 16, 16, 4>}, {pipeline_mode = #tpu.pipeline_mode<synchronous>, transform_indices = @transform_1, window_bounds = array<i64: 36, 8>}, {pipeline_mode = #tpu.pipeline_mode<synchronous>, transform_indices = @transform_2, window_bounds = array<i64: 72, 8>}, {pipeline_mode = #tpu.pipeline_mode<synchronous>, transform_indices = @transform_3, window_bounds = array<i64: 1, 4>}, {pipeline_mode = #tpu.pipeline_mode<synchronous>, transform_indices = @transform_4, window_bounds = array<i64: 1, 4>}, {pipeline_mode = #tpu.pipeline_mode<synchronous>, transform_indices = @transform_5, window_bounds = array<i64: 1, 8>}, {pipeline_mode = #tpu.pipeline_mode<synchronous>, transform_indices = @transform_6, window_bounds = array<i64: 1, 8>}, {transform_indices = @transform_7, window_bounds = array<i64: 1, 16, 16, 8>}]} {
    %c0 = arith.constant 0 : index
    %c0_0 = arith.constant 0 : index
    %c0_1 = arith.constant 0 : index
    %c0_2 = arith.constant 0 : index
    %0 = vector.load %arg1[%c0, %c0_0, %c0_1, %c0_2] : memref<1x16x16x4xf32, #tpu.memory_space<vmem>>, vector<1x16x16x4xf32>
    %1 = vector.shape_cast %0 : vector<1x16x16x4xf32> to vector<256x4xf32>
    %c0_3 = arith.constant 0 : index
    %c0_4 = arith.constant 0 : index
    %2 = vector.load %arg4[%c0_3, %c0_4] : memref<1x4xf32, #tpu.memory_space<vmem>>, vector<1x4xf32>
    %3 = vector.broadcast %2 : vector<1x4xf32> to vector<256x4xf32>
    %4 = arith.mulf %1, %3 : vector<256x4xf32>
    %c0_5 = arith.constant 0 : index
    %c0_6 = arith.constant 0 : index
    %5 = vector.load %arg5[%c0_5, %c0_6] : memref<1x4xf32, #tpu.memory_space<vmem>>, vector<1x4xf32>
    %6 = vector.broadcast %5 : vector<1x4xf32> to vector<256x4xf32>
    %7 = arith.addf %4, %6 : vector<256x4xf32>
    %8 = vector.shape_cast %7 : vector<256x4xf32> to vector<1x16x16x4xf32>
    %cst = arith.constant 0.000000e+00 : f32
    %9 = vector.broadcast %cst : f32 to vector<1x16x1x4xf32>
    %10 = tpu.concatenate %9, %8, %9 in 2 : vector<1x16x1x4xf32>, vector<1x16x16x4xf32>, vector<1x16x1x4xf32> -> vector<1x16x18x4xf32>
    %cst_7 = arith.constant 0.000000e+00 : f32
    %11 = vector.broadcast %cst_7 : f32 to vector<1x1x18x4xf32>
    %c0_8 = arith.constant 0 : index
    %c0_9 = arith.constant 0 : index
    %c0_10 = arith.constant 0 : index
    %c0_11 = arith.constant 0 : index
    %12 = vector.load %arg9[%c0_8, %c0_9, %c0_10, %c0_11] : memref<1x18x18x4xf32, #tpu.memory_space<vmem>>, vector<1x1x18x4xf32>
    tpu.vector_store %arg9[%c0_8, %c0_9, %c0_10, %c0_11], %11 {strides = array<i32>} : memref<1x18x18x4xf32, #tpu.memory_space<vmem>>, vector<1x1x18x4xf32>,
    %c0_12 = arith.constant 0 : index
    %c17 = arith.constant 17 : index
    %c0_13 = arith.constant 0 : index
    %c0_14 = arith.constant 0 : index
    %13 = vector.load %arg9[%c0_12, %c17, %c0_13, %c0_14] : memref<1x18x18x4xf32, #tpu.memory_space<vmem>>, vector<1x1x18x4xf32>
    tpu.vector_store %arg9[%c0_12, %c17, %c0_13, %c0_14], %11 {strides = array<i32>} : memref<1x18x18x4xf32, #tpu.memory_space<vmem>>, vector<1x1x18x4xf32>,
    %c0_15 = arith.constant 0 : index
    %c1 = arith.constant 1 : index
    %c0_16 = arith.constant 0 : index
    %c0_17 = arith.constant 0 : index
    %14 = vector.load %arg9[%c0_15, %c1, %c0_16, %c0_17] : memref<1x18x18x4xf32, #tpu.memory_space<vmem>>, vector<1x16x18x4xf32>
    tpu.vector_store %arg9[%c0_15, %c1, %c0_16, %c0_17], %10 {strides = array<i32>} : memref<1x18x18x4xf32, #tpu.memory_space<vmem>>, vector<1x16x18x4xf32>,
    %cst_18 = arith.constant 0.000000e+00 : f32
    %15 = vector.broadcast %cst_18 : f32 to vector<1x1x18x8xf32>
    %c0_19 = arith.constant 0 : index
    %c0_20 = arith.constant 0 : index
    %c0_21 = arith.constant 0 : index
    %c0_22 = arith.constant 0 : index
    %16 = vector.load %arg10[%c0_19, %c0_20, %c0_21, %c0_22] : memref<1x18x18x8xf32, #tpu.memory_space<vmem>>, vector<1x1x18x8xf32>
    tpu.vector_store %arg10[%c0_19, %c0_20, %c0_21, %c0_22], %15 {strides = array<i32>} : memref<1x18x18x8xf32, #tpu.memory_space<vmem>>, vector<1x1x18x8xf32>,
    %c0_23 = arith.constant 0 : index
    %c17_24 = arith.constant 17 : index
    %c0_25 = arith.constant 0 : index
    %c0_26 = arith.constant 0 : index
    %17 = vector.load %arg10[%c0_23, %c17_24, %c0_25, %c0_26] : memref<1x18x18x8xf32, #tpu.memory_space<vmem>>, vector<1x1x18x8xf32>
    tpu.vector_store %arg10[%c0_23, %c17_24, %c0_25, %c0_26], %15 {strides = array<i32>} : memref<1x18x18x8xf32, #tpu.memory_space<vmem>>, vector<1x1x18x8xf32>,
    %c0_27 = arith.constant 0 : index
    %c0_28 = arith.constant 0 : index
    %c0_29 = arith.constant 0 : index
    %c0_30 = arith.constant 0 : index
    %18 = vector.load %arg9[%c0_27, %c0_28, %c0_29, %c0_30] : memref<1x18x18x4xf32, #tpu.memory_space<vmem>>, vector<1x16x16x4xf32>
    %c0_31 = arith.constant 0 : index
    %c0_32 = arith.constant 0 : index
    %c1_33 = arith.constant 1 : index
    %c0_34 = arith.constant 0 : index
    %19 = vector.load %arg9[%c0_31, %c0_32, %c1_33, %c0_34] : memref<1x18x18x4xf32, #tpu.memory_space<vmem>>, vector<1x16x16x4xf32>
    %c0_35 = arith.constant 0 : index
    %c0_36 = arith.constant 0 : index
    %c2 = arith.constant 2 : index
    %c0_37 = arith.constant 0 : index
    %20 = vector.load %arg9[%c0_35, %c0_36, %c2, %c0_37] : memref<1x18x18x4xf32, #tpu.memory_space<vmem>>, vector<1x16x16x4xf32>
    %c0_38 = arith.constant 0 : index
    %c1_39 = arith.constant 1 : index
    %c0_40 = arith.constant 0 : index
    %c0_41 = arith.constant 0 : index
    %21 = vector.load %arg9[%c0_38, %c1_39, %c0_40, %c0_41] : memref<1x18x18x4xf32, #tpu.memory_space<vmem>>, vector<1x16x16x4xf32>
    %c0_42 = arith.constant 0 : index
    %c1_43 = arith.constant 1 : index
    %c1_44 = arith.constant 1 : index
    %c0_45 = arith.constant 0 : index
    %22 = vector.load %arg9[%c0_42, %c1_43, %c1_44, %c0_45] : memref<1x18x18x4xf32, #tpu.memory_space<vmem>>, vector<1x16x16x4xf32>
    %c0_46 = arith.constant 0 : index
    %c1_47 = arith.constant 1 : index
    %c2_48 = arith.constant 2 : index
    %c0_49 = arith.constant 0 : index
    %23 = vector.load %arg9[%c0_46, %c1_47, %c2_48, %c0_49] : memref<1x18x18x4xf32, #tpu.memory_space<vmem>>, vector<1x16x16x4xf32>
    %c0_50 = arith.constant 0 : index
    %c2_51 = arith.constant 2 : index
    %c0_52 = arith.constant 0 : index
    %c0_53 = arith.constant 0 : index
    %24 = vector.load %arg9[%c0_50, %c2_51, %c0_52, %c0_53] : memref<1x18x18x4xf32, #tpu.memory_space<vmem>>, vector<1x16x16x4xf32>
    %c0_54 = arith.constant 0 : index
    %c2_55 = arith.constant 2 : index
    %c1_56 = arith.constant 1 : index
    %c0_57 = arith.constant 0 : index
    %25 = vector.load %arg9[%c0_54, %c2_55, %c1_56, %c0_57] : memref<1x18x18x4xf32, #tpu.memory_space<vmem>>, vector<1x16x16x4xf32>
    %c0_58 = arith.constant 0 : index
    %c2_59 = arith.constant 2 : index
    %c2_60 = arith.constant 2 : index
    %c0_61 = arith.constant 0 : index
    %26 = vector.load %arg9[%c0_58, %c2_59, %c2_60, %c0_61] : memref<1x18x18x4xf32, #tpu.memory_space<vmem>>, vector<1x16x16x4xf32>
    %27 = tpu.concatenate %18, %19, %20, %21, %22, %23, %24, %25, %26 in 3 : vector<1x16x16x4xf32>, vector<1x16x16x4xf32>, vector<1x16x16x4xf32>, vector<1x16x16x4xf32>, vector<1x16x16x4xf32>, vector<1x16x16x4xf32>, vector<1x16x16x4xf32>, vector<1x16x16x4xf32>, vector<1x16x16x4xf32> -> vector<1x16x16x36xf32>
    %28 = vector.shape_cast %27 : vector<1x16x16x36xf32> to vector<256x36xf32>
    %c0_62 = arith.constant 0 : index
    %c0_63 = arith.constant 0 : index
    %29 = vector.load %arg2[%c0_62, %c0_63] : memref<36x8xf32, #tpu.memory_space<vmem>>, vector<36x8xf32>
    %cst_64 = arith.constant dense<0.000000e+00> : vector<256x8xf32>
    %30 = tpu.matmul %28, %29, %cst_64 {dimension_numbers = #tpu.dot_dimension_numbers<[1], [0], [0], [1], [0, 0, 1, 1], [], []>} : vector<256x36xf32>, vector<36x8xf32>, vector<256x8xf32> -> vector<256x8xf32>
    %c0_65 = arith.constant 0 : index
    %c0_66 = arith.constant 0 : index
    %31 = vector.load %arg6[%c0_65, %c0_66] : memref<1x8xf32, #tpu.memory_space<vmem>>, vector<1x8xf32>
    %32 = vector.broadcast %31 : vector<1x8xf32> to vector<256x8xf32>
    %33 = arith.addf %30, %32 : vector<256x8xf32>
    %cst_67 = arith.constant 0.000000e+00 : f32
    %34 = vector.broadcast %cst_67 : f32 to vector<256x8xf32>
    %35 = arith.maximumf %33, %34 : vector<256x8xf32>
    %36 = vector.shape_cast %35 : vector<256x8xf32> to vector<1x16x16x8xf32>
    %cst_68 = arith.constant 0.000000e+00 : f32
    %37 = vector.broadcast %cst_68 : f32 to vector<1x16x1x8xf32>
    %38 = tpu.concatenate %37, %36, %37 in 2 : vector<1x16x1x8xf32>, vector<1x16x16x8xf32>, vector<1x16x1x8xf32> -> vector<1x16x18x8xf32>
    %c0_69 = arith.constant 0 : index
    %c1_70 = arith.constant 1 : index
    %c0_71 = arith.constant 0 : index
    %c0_72 = arith.constant 0 : index
    %39 = vector.load %arg10[%c0_69, %c1_70, %c0_71, %c0_72] : memref<1x18x18x8xf32, #tpu.memory_space<vmem>>, vector<1x16x18x8xf32>
    tpu.vector_store %arg10[%c0_69, %c1_70, %c0_71, %c0_72], %38 {strides = array<i32>} : memref<1x18x18x8xf32, #tpu.memory_space<vmem>>, vector<1x16x18x8xf32>,
    %c0_73 = arith.constant 0 : index
    %c0_74 = arith.constant 0 : index
    %c0_75 = arith.constant 0 : index
    %c0_76 = arith.constant 0 : index
    %40 = vector.load %arg10[%c0_73, %c0_74, %c0_75, %c0_76] : memref<1x18x18x8xf32, #tpu.memory_space<vmem>>, vector<1x16x16x8xf32>
    %c0_77 = arith.constant 0 : index
    %c0_78 = arith.constant 0 : index
    %c1_79 = arith.constant 1 : index
    %c0_80 = arith.constant 0 : index
    %41 = vector.load %arg10[%c0_77, %c0_78, %c1_79, %c0_80] : memref<1x18x18x8xf32, #tpu.memory_space<vmem>>, vector<1x16x16x8xf32>
    %c0_81 = arith.constant 0 : index
    %c0_82 = arith.constant 0 : index
    %c2_83 = arith.constant 2 : index
    %c0_84 = arith.constant 0 : index
    %42 = vector.load %arg10[%c0_81, %c0_82, %c2_83, %c0_84] : memref<1x18x18x8xf32, #tpu.memory_space<vmem>>, vector<1x16x16x8xf32>
    %c0_85 = arith.constant 0 : index
    %c1_86 = arith.constant 1 : index
    %c0_87 = arith.constant 0 : index
    %c0_88 = arith.constant 0 : index
    %43 = vector.load %arg10[%c0_85, %c1_86, %c0_87, %c0_88] : memref<1x18x18x8xf32, #tpu.memory_space<vmem>>, vector<1x16x16x8xf32>
    %c0_89 = arith.constant 0 : index
    %c1_90 = arith.constant 1 : index
    %c1_91 = arith.constant 1 : index
    %c0_92 = arith.constant 0 : index
    %44 = vector.load %arg10[%c0_89, %c1_90, %c1_91, %c0_92] : memref<1x18x18x8xf32, #tpu.memory_space<vmem>>, vector<1x16x16x8xf32>
    %c0_93 = arith.constant 0 : index
    %c1_94 = arith.constant 1 : index
    %c2_95 = arith.constant 2 : index
    %c0_96 = arith.constant 0 : index
    %45 = vector.load %arg10[%c0_93, %c1_94, %c2_95, %c0_96] : memref<1x18x18x8xf32, #tpu.memory_space<vmem>>, vector<1x16x16x8xf32>
    %c0_97 = arith.constant 0 : index
    %c2_98 = arith.constant 2 : index
    %c0_99 = arith.constant 0 : index
    %c0_100 = arith.constant 0 : index
    %46 = vector.load %arg10[%c0_97, %c2_98, %c0_99, %c0_100] : memref<1x18x18x8xf32, #tpu.memory_space<vmem>>, vector<1x16x16x8xf32>
    %c0_101 = arith.constant 0 : index
    %c2_102 = arith.constant 2 : index
    %c1_103 = arith.constant 1 : index
    %c0_104 = arith.constant 0 : index
    %47 = vector.load %arg10[%c0_101, %c2_102, %c1_103, %c0_104] : memref<1x18x18x8xf32, #tpu.memory_space<vmem>>, vector<1x16x16x8xf32>
    %c0_105 = arith.constant 0 : index
    %c2_106 = arith.constant 2 : index
    %c2_107 = arith.constant 2 : index
    %c0_108 = arith.constant 0 : index
    %48 = vector.load %arg10[%c0_105, %c2_106, %c2_107, %c0_108] : memref<1x18x18x8xf32, #tpu.memory_space<vmem>>, vector<1x16x16x8xf32>
    %49 = tpu.concatenate %40, %41, %42, %43, %44, %45, %46, %47, %48 in 3 : vector<1x16x16x8xf32>, vector<1x16x16x8xf32>, vector<1x16x16x8xf32>, vector<1x16x16x8xf32>, vector<1x16x16x8xf32>, vector<1x16x16x8xf32>, vector<1x16x16x8xf32>, vector<1x16x16x8xf32>, vector<1x16x16x8xf32> -> vector<1x16x16x72xf32>
    %50 = vector.shape_cast %49 : vector<1x16x16x72xf32> to vector<256x72xf32>
    %c0_109 = arith.constant 0 : index
    %c0_110 = arith.constant 0 : index
    %51 = vector.load %arg3[%c0_109, %c0_110] : memref<72x8xf32, #tpu.memory_space<vmem>>, vector<72x8xf32>
    %cst_111 = arith.constant dense<0.000000e+00> : vector<256x8xf32>
    %52 = tpu.matmul %50, %51, %cst_111 {dimension_numbers = #tpu.dot_dimension_numbers<[1], [0], [0], [1], [0, 0, 1, 1], [], []>} : vector<256x72xf32>, vector<72x8xf32>, vector<256x8xf32> -> vector<256x8xf32>
    %c0_112 = arith.constant 0 : index
    %c0_113 = arith.constant 0 : index
    %53 = vector.load %arg7[%c0_112, %c0_113] : memref<1x8xf32, #tpu.memory_space<vmem>>, vector<1x8xf32>
    %54 = vector.broadcast %53 : vector<1x8xf32> to vector<256x8xf32>
    %55 = arith.addf %52, %54 : vector<256x8xf32>
    %56 = vector.shape_cast %55 : vector<256x8xf32> to vector<1x16x16x8xf32>
    %c0_114 = arith.constant 0 : index
    %c0_115 = arith.constant 0 : index
    %c0_116 = arith.constant 0 : index
    %c0_117 = arith.constant 0 : index
    %57 = vector.load %arg1[%c0_114, %c0_115, %c0_116, %c0_117] : memref<1x16x16x4xf32, #tpu.memory_space<vmem>>, vector<1x16x16x4xf32>
    %cst_118 = arith.constant 0.000000e+00 : f32
    %58 = vector.broadcast %cst_118 : f32 to vector<1x16x16x4xf32>
    %59 = tpu.concatenate %57, %58 in 3 : vector<1x16x16x4xf32>, vector<1x16x16x4xf32> -> vector<1x16x16x8xf32>
    %60 = arith.addf %56, %59 : vector<1x16x16x8xf32>
    %c0_119 = arith.constant 0 : index
    %c0_120 = arith.constant 0 : index
    %c0_121 = arith.constant 0 : index
    %c0_122 = arith.constant 0 : index
    %61 = vector.load %arg8[%c0_119, %c0_120, %c0_121, %c0_122] : memref<1x16x16x8xf32, #tpu.memory_space<vmem>>, vector<1x16x16x8xf32>
    tpu.vector_store %arg8[%c0_119, %c0_120, %c0_121, %c0_122], %60 {strides = array<i32>} : memref<1x16x16x8xf32, #tpu.memory_space<vmem>>, vector<1x16x16x8xf32>,
    return
  }
  func.func @transform_0(%arg0: i32) -> (i32, i32, i32, i32) {
    %c0_i32 = arith.constant 0 : i32
    %c0_i32_0 = arith.constant 0 : i32
    %c0_i32_1 = arith.constant 0 : i32
    %c0_i32_2 = arith.constant 0 : i32
    return %arg0, %c0_i32, %c0_i32_0, %c0_i32_1 : i32, i32, i32, i32
  }
  func.func @transform_1(%arg0: i32) -> (i32, i32) {
    %c0_i32 = arith.constant 0 : i32
    %c0_i32_0 = arith.constant 0 : i32
    %c0_i32_1 = arith.constant 0 : i32
    return %c0_i32, %c0_i32_0 : i32, i32
  }
  func.func @transform_2(%arg0: i32) -> (i32, i32) {
    %c0_i32 = arith.constant 0 : i32
    %c0_i32_0 = arith.constant 0 : i32
    %c0_i32_1 = arith.constant 0 : i32
    return %c0_i32, %c0_i32_0 : i32, i32
  }
  func.func @transform_3(%arg0: i32) -> (i32, i32) {
    %c0_i32 = arith.constant 0 : i32
    %c0_i32_0 = arith.constant 0 : i32
    %c0_i32_1 = arith.constant 0 : i32
    return %c0_i32, %c0_i32_0 : i32, i32
  }
  func.func @transform_4(%arg0: i32) -> (i32, i32) {
    %c0_i32 = arith.constant 0 : i32
    %c0_i32_0 = arith.constant 0 : i32
    %c0_i32_1 = arith.constant 0 : i32
    return %c0_i32, %c0_i32_0 : i32, i32
  }
  func.func @transform_5(%arg0: i32) -> (i32, i32) {
    %c0_i32 = arith.constant 0 : i32
    %c0_i32_0 = arith.constant 0 : i32
    %c0_i32_1 = arith.constant 0 : i32
    return %c0_i32, %c0_i32_0 : i32, i32
  }
  func.func @transform_6(%arg0: i32) -> (i32, i32) {
    %c0_i32 = arith.constant 0 : i32
    %c0_i32_0 = arith.constant 0 : i32
    %c0_i32_1 = arith.constant 0 : i32
    return %c0_i32, %c0_i32_0 : i32, i32
  }
  func.func @transform_7(%arg0: i32) -> (i32, i32, i32, i32) {
    %c0_i32 = arith.constant 0 : i32
    %c0_i32_0 = arith.constant 0 : i32
    %c0_i32_1 = arith.constant 0 : i32
    %c0_i32_2 = arith.constant 0 : i32
    return %arg0, %c0_i32, %c0_i32_0, %c0_i32_1 : i32, i32, i32, i32
  }
}

</mosaic_0001>

<llo_original>
// kernel: tpu_custom_call.1
$region0: #{tpu_custom_call.1}
  #allocation0 [shape = 'u32[]', space=smem, size = 0x4, offset = 0x4, fixed_abs, tag = 'smem constant byte address 0x4 - core index']
  #allocation1 [shape = 'u32[144,128]{1,0:T(1,128)}', space=vmem, size = 0x12000, scoped, tag = 'internal scratch']
  #allocation2 [shape = 'f32[1,18,18,4]{3,2,1,0:T(8,128)}', space=vmem, size = 0x36000, scoped, tag = 'scratch operand']
  #allocation3 [shape = 'f32[1,18,18,8]{3,2,1,0:T(8,128)}', space=vmem, size = 0x36000, scoped, tag = 'scratch operand']
  %s0 = inlined_call_operand.vmem [shape: f32[2,16,16,4], index: 0, kind: input, shape index: {}]
  %s1 = inlined_call_operand.vmem [shape: f32[36,8], index: 1, kind: input, shape index: {}]
  %s2 = inlined_call_operand.vmem [shape: f32[72,8], index: 2, kind: input, shape index: {}]
  %s3 = inlined_call_operand.vmem [shape: f32[1,4], index: 3, kind: input, shape index: {}]
  %s4 = inlined_call_operand.vmem [shape: f32[1,4], index: 4, kind: input, shape index: {}]
  %s5 = inlined_call_operand.vmem [shape: f32[1,8], index: 5, kind: input, shape index: {}]
  %s6 = inlined_call_operand.vmem [shape: f32[1,8], index: 6, kind: input, shape index: {}]
  %s7 = inlined_call_operand.vmem [shape: f32[2,16,16,8], index: 7, kind: output, shape index: {}]
  %s8 = sld [smem:[#allocation0]]
  $region61: #{tpu_custom_call.1} parent=0
    _
  %s10 = ssub.s32 1, %s8
  %s11 = scalar_select 0, %s10, %s8
  loop: start=0, step=1, limit=4
  $region2: #{tpu_custom_call.1} parent=0 // loop_pre_header
    _
  $region3: #{tpu_custom_call.1} parent=0 // loop_header
    %s13 = sphi 0, %s17
    %p14 = scmp.ge.s32.totalorder %s13, 4
    %s23 = sphi 0, %s25
    %s26 = sphi 0, %s23
    %s27 = sphi 0, %s26
    %s43 = sphi 0, %s27
    %s47 = sphi 0, %s47
    %s49 = sphi 0, %s47
    %s50 = sphi 0, %s49
    %s64 = sphi 0, %s50
    %s68 = sphi 0, %s68
    %s70 = sphi 0, %s68
    %s71 = sphi 0, %s70
    %s85 = sphi 0, %s71
    %s89 = sphi 0, %s89
    %s91 = sphi 0, %s89
    %s92 = sphi 0, %s91
    %s106 = sphi 0, %s92
    %s110 = sphi 0, %s110
    %s112 = sphi 0, %s110
    %s113 = sphi 0, %s112
    %s127 = sphi 0, %s113
    %s131 = sphi 0, %s131
    %s133 = sphi 0, %s131
    %s134 = sphi 0, %s133
    %s148 = sphi 0, %s134
    %s152 = sphi 0, %s152
    %s154 = sphi 0, %s152
    %s155 = sphi 0, %s154
    %s169 = sphi 0, %s155
    %s175 = sphi 0, %s177
    %s178 = sphi 0, %s175
    %s179 = sphi 0, %s178
    %s195 = sphi 0, %s179
  $region4: #{tpu_custom_call.1} parent=0 // loop_header_branch
    %16 = sbr.rel (%p14) target = $region8
  $region5: #{tpu_custom_call.1} parent=0 // loop_body
    %s18 = ssub.s32 %s13, 1
    %s19 = ssub.s32 %s13, 2
    %s20 = sadd.s32 %s13, 1
    %s21 = ssub.s32 %s13, %s20
    %p22 = scmp.eq.s32.totalorder %s21, 0
    %s24 = sadd.s32 %s23, 1
    %s25 = scalar_select %p22, %s23, %s24
    %p28 = pneg %p22
    %p29 = scmp.eq.s32.totalorder %s13, 1
    %p30 = por %p28, %p29
    %p31 = scmp.ne.s32.totalorder %s23, %s26
    %p32 = scmp.eq.s32.totalorder %s13, 0
    %p33 = por %p31, %p32
    %p34 = scmp.ne.s32.totalorder %s23, %s26
    %p35 = scmp.eq.s32.totalorder %s18, 1
    %p36 = por %p34, %p35
    %p37 = scmp.ne.s32.totalorder %s26, %s27
    %p38 = scmp.eq.s32.totalorder %s18, 0
    %p39 = por %p37, %p38
    %p40 = scmp.ne.s32.totalorder %s26, %s27
    %p41 = scmp.eq.s32.totalorder %s19, 1
    %p42 = por %p40, %p41
    %p44 = scmp.ne.s32.totalorder %s27, %s43
    %p45 = scmp.eq.s32.totalorder %s19, 0
    %p46 = por %p44, %p45
    %s48 = sadd.s32 %s47, 1
    %p51 = scmp.eq.s32.totalorder %s13, 1
    %p52 = scmp.ne.s32.totalorder %s47, %s49
    %p53 = scmp.eq.s32.totalorder %s13, 0
    %p54 = por %p52, %p53
    %p55 = scmp.ne.s32.totalorder %s47, %s49
    %p56 = scmp.eq.s32.totalorder %s18, 1
    %p57 = por %p55, %p56
    %p58 = scmp.ne.s32.totalorder %s49, %s50
    %p59 = scmp.eq.s32.totalorder %s18, 0
    %p60 = por %p58, %p59
    %p61 = scmp.ne.s32.totalorder %s49, %s50
    %p62 = scmp.eq.s32.totalorder %s19, 1
    %p63 = por %p61, %p62
    %p65 = scmp.ne.s32.totalorder %s50, %s64
    %p66 = scmp.eq.s32.totalorder %s19, 0
    %p67 = por %p65, %p66
    %s69 = sadd.s32 %s68, 1
    %p72 = scmp.eq.s32.totalorder %s13, 1
    %p73 = scmp.ne.s32.totalorder %s68, %s70
    %p74 = scmp.eq.s32.totalorder %s13, 0
    %p75 = por %p73, %p74
    %p76 = scmp.ne.s32.totalorder %s68, %s70
    %p77 = scmp.eq.s32.totalorder %s18, 1
    %p78 = por %p76, %p77
    %p79 = scmp.ne.s32.totalorder %s70, %s71
    %p80 = scmp.eq.s32.totalorder %s18, 0
    %p81 = por %p79, %p80
    %p82 = scmp.ne.s32.totalorder %s70, %s71
    %p83 = scmp.eq.s32.totalorder %s19, 1
    %p84 = por %p82, %p83
    %p86 = scmp.ne.s32.totalorder %s71, %s85
    %p87 = scmp.eq.s32.totalorder %s19, 0
    %p88 = por %p86, %p87
    %s90 = sadd.s32 %s89, 1
    %p93 = scmp.eq.s32.totalorder %s13, 1
    %p94 = scmp.ne.s32.totalorder %s89, %s91
    %p95 = scmp.eq.s32.totalorder %s13, 0
    %p96 = por %p94, %p95
    %p97 = scmp.ne.s32.totalorder %s89, %s91
    %p98 = scmp.eq.s32.totalorder %s18, 1
    %p99 = por %p97, %p98
    %p100 = scmp.ne.s32.totalorder %s91, %s92
    %p101 = scmp.eq.s32.totalorder %s18, 0
    %p102 = por %p100, %p101
    %p103 = scmp.ne.s32.totalorder %s91, %s92
    %p104 = scmp.eq.s32.totalorder %s19, 1
    %p105 = por %p103, %p104
    %p107 = scmp.ne.s32.totalorder %s92, %s106
    %p108 = scmp.eq.s32.totalorder %s19, 0
    %p109 = por %p107, %p108
    %s111 = sadd.s32 %s110, 1
    %p114 = scmp.eq.s32.totalorder %s13, 1
    %p115 = scmp.ne.s32.totalorder %s110, %s112
    %p116 = scmp.eq.s32.totalorder %s13, 0
    %p117 = por %p115, %p116
    %p118 = scmp.ne.s32.totalorder %s110, %s112
    %p119 = scmp.eq.s32.totalorder %s18, 1
    %p120 = por %p118, %p119
    %p121 = scmp.ne.s32.totalorder %s112, %s113
    %p122 = scmp.eq.s32.totalorder %s18, 0
    %p123 = por %p121, %p122
    %p124 = scmp.ne.s32.totalorder %s112, %s113
    %p125 = scmp.eq.s32.totalorder %s19, 1
    %p126 = por %p124, %p125
    %p128 = scmp.ne.s32.totalorder %s113, %s127
    %p129 = scmp.eq.s32.totalorder %s19, 0
    %p130 = por %p128, %p129
    %s132 = sadd.s32 %s131, 1
    %p135 = scmp.eq.s32.totalorder %s13, 1
    %p136 = scmp.ne.s32.totalorder %s131, %s133
    %p137 = scmp.eq.s32.totalorder %s13, 0
    %p138 = por %p136, %p137
    %p139 = scmp.ne.s32.totalorder %s131, %s133
    %p140 = scmp.eq.s32.totalorder %s18, 1
    %p141 = por %p139, %p140
    %p142 = scmp.ne.s32.totalorder %s133, %s134
    %p143 = scmp.eq.s32.totalorder %s18, 0
    %p144 = por %p142, %p143
    %p145 = scmp.ne.s32.totalorder %s133, %s134
    %p146 = scmp.eq.s32.totalorder %s19, 1
    %p147 = por %p145, %p146
    %p149 = scmp.ne.s32.totalorder %s134, %s148
    %p150 = scmp.eq.s32.totalorder %s19, 0
    %p151 = por %p149, %p150
    %s153 = sadd.s32 %s152, 1
    %p156 = scmp.eq.s32.totalorder %s13, 1
    %p157 = scmp.ne.s32.totalorder %s152, %s154
    %p158 = scmp.eq.s32.totalorder %s13, 0
    %p159 = por %p157, %p158
    %p160 = scmp.ne.s32.totalorder %s152, %s154
    %p161 = scmp.eq.s32.totalorder %s18, 1
    %p162 = por %p160, %p161
    %p163 = scmp.ne.s32.totalorder %s154, %s155
    %p164 = scmp.eq.s32.totalorder %s18, 0
    %p165 = por %p163, %p164
    %p166 = scmp.ne.s32.totalorder %s154, %s155
    %p167 = scmp.eq.s32.totalorder %s19, 1
    %p168 = por %p166, %p167
    %p170 = scmp.ne.s32.totalorder %s155, %s169
    %p171 = scmp.eq.s32.totalorder %s19, 0
    %p172 = por %p170, %p171
    %s173 = ssub.s32 %s13, %s20
    %p174 = scmp.eq.s32.totalorder %s173, 0
    %s176 = sadd.s32 %s175, 1
    %s177 = scalar_select %p174, %s175, %s176
    %p180 = pneg %p174
    %p181 = scmp.eq.s32.totalorder %s13, 1
    %p182 = por %p180, %p181
    %p183 = scmp.ne.s32.totalorder %s175, %s178
    %p184 = scmp.eq.s32.totalorder %s13, 0
    %p185 = por %p183, %p184
    %p186 = scmp.ne.s32.totalorder %s175, %s178
    %p187 = scmp.eq.s32.totalorder %s18, 1
    %p188 = por %p186, %p187
    %p189 = scmp.ne.s32.totalorder %s178, %s179
    %p190 = scmp.eq.s32.totalorder %s18, 0
    %p191 = por %p189, %p190
    %p192 = scmp.ne.s32.totalorder %s178, %s179
    %p193 = scmp.eq.s32.totalorder %s19, 1
    %p194 = por %p192, %p193
    %p196 = scmp.ne.s32.totalorder %s179, %s195
    %p197 = scmp.eq.s32.totalorder %s19, 0
    %p198 = por %p196, %p197
    %p199 = scmp.le.s32.totalorder 1, %s13
    %p200 = scmp.lt.s32.totalorder %s13, 3
    %p201 = pnand %p199, %p200
    %p202 = pneg %p201
    // Predicated region
    $region9: #{tpu_custom_call.1} parent=5 // pred_check
      _
    $region10: #{tpu_custom_call.1} parent=5 // pred_check_branch
      %204 = sbr.rel (%p201) target = $region12
    $region11: #{tpu_custom_call.1} parent=5 // pred_region
      %s205 = ssub.s32 %s13, 1
      // Predicated region
      $region13: #{tpu_custom_call.1} parent=11 // pred_check
        %p206 = pneg %p60
      $region14: #{tpu_custom_call.1} parent=11 // pred_check_branch
        %208 = sbr.rel (%p206) target = $region16
      $region15: #{tpu_custom_call.1} parent=11 // pred_region
        _
      $region16: #{tpu_custom_call.1} parent=11 // pred_fallthru
        _
      // Predicated region
      $region17: #{tpu_custom_call.1} parent=11 // pred_check
        %p209 = pneg %p81
      $region18: #{tpu_custom_call.1} parent=11 // pred_check_branch
        %211 = sbr.rel (%p209) target = $region20
      $region19: #{tpu_custom_call.1} parent=11 // pred_region
        _
      $region20: #{tpu_custom_call.1} parent=11 // pred_fallthru
        _
      // Predicated region
      $region21: #{tpu_custom_call.1} parent=11 // pred_check
        %p212 = pneg %p102
      $region22: #{tpu_custom_call.1} parent=11 // pred_check_branch
        %214 = sbr.rel (%p212) target = $region24
      $region23: #{tpu_custom_call.1} parent=11 // pred_region
        _
      $region24: #{tpu_custom_call.1} parent=11 // pred_fallthru
        _
      // Predicated region
      $region25: #{tpu_custom_call.1} parent=11 // pred_check
        %p215 = pneg %p123
      $region26: #{tpu_custom_call.1} parent=11 // pred_check_branch
        %217 = sbr.rel (%p215) target = $region28
      $region27: #{tpu_custom_call.1} parent=11 // pred_region
        _
      $region28: #{tpu_custom_call.1} parent=11 // pred_fallthru
        _
      // Predicated region
      $region29: #{tpu_custom_call.1} parent=11 // pred_check
        %p218 = pneg %p144
      $region30: #{tpu_custom_call.1} parent=11 // pred_check_branch
        %220 = sbr.rel (%p218) target = $region32
      $region31: #{tpu_custom_call.1} parent=11 // pred_region
        _
      $region32: #{tpu_custom_call.1} parent=11 // pred_fallthru
        _
      // Predicated region
      $region33: #{tpu_custom_call.1} parent=11 // pred_check
        %p221 = pneg %p165
      $region34: #{tpu_custom_call.1} parent=11 // pred_check_branch
        %223 = sbr.rel (%p221) target = $region36
      $region35: #{tpu_custom_call.1} parent=11 // pred_region
        _
      $region36: #{tpu_custom_call.1} parent=11 // pred_fallthru
        _
    $region12: #{tpu_custom_call.1} parent=5 // pred_fallthru
      _
    %p224 = scmp.lt.s32.totalorder %s13, 2
    // Predicated region
    $region37: #{tpu_custom_call.1} parent=5 // pred_check
      %p225 = pneg %p224
    $region38: #{tpu_custom_call.1} parent=5 // pred_check_branch
      %227 = sbr.rel (%p225) target = $region40
    $region39: #{tpu_custom_call.1} parent=5 // pred_region
      // Predicated region
      $region41: #{tpu_custom_call.1} parent=39 // pred_check
        %p228 = pneg %p33
      $region42: #{tpu_custom_call.1} parent=39 // pred_check_branch
        %230 = sbr.rel (%p228) target = $region44
      $region43: #{tpu_custom_call.1} parent=39 // pred_region
        %p231 = scmp.lt.s32.totalorder %s13, 1
        %s232 = scalar_select %p231, %s13, 1
        %s233 = smul.addr %s232, 32
        %s234 = smul.addr %s233, 8
        %s235 = scalar_lea.vmem %s0, %s234
      $region44: #{tpu_custom_call.1} parent=39 // pred_fallthru
        _
    $region40: #{tpu_custom_call.1} parent=5 // pred_fallthru
      _
    %p236 = scmp.le.s32.totalorder 1, %s13
    %p237 = scmp.lt.s32.totalorder %s13, 3
    %p238 = pnand %p236, %p237
    %p239 = pneg %p238
    // Predicated region
    $region45: #{tpu_custom_call.1} parent=5 // pred_check
      _
    $region46: #{tpu_custom_call.1} parent=5 // pred_check_branch
      %241 = sbr.rel (%p238) target = $region48
    $region47: #{tpu_custom_call.1} parent=5 // pred_region
      %s242 = ssub.s32 %s13, 1
      %p243 = scmp.lt.s32.totalorder %s18, 1
      %s244 = scalar_select %p243, %s18, 1
      %s245 = smul.addr %s244, 32
      %s246 = smul.addr %s245, 8
      %s247 = scalar_lea.vmem %s0, %s246
      %p248 = pneg %p39
      %p249 = pneg %p36
      %p250 = pneg %p60
      %p251 = pneg %p57
      %p252 = pneg %p81
      %p253 = pneg %p78
      %p254 = pneg %p102
      %p255 = pneg %p99
      %p256 = pneg %p123
      %p257 = pneg %p120
      %p258 = pneg %p144
      %p259 = pneg %p141
      %p260 = pneg %p165
      %p261 = pneg %p162
      %p262 = pneg %p191
      %p263 = pneg %p188
      %p264 = scmp.lt.s32.totalorder %s18, 1
      %s265 = scalar_select %p264, %s18, 1
      %s266 = smul.addr %s265, 32
      %s267 = smul.addr %s266, 8
      %s268 = scalar_lea.vmem %s7, %s267
      %p269 = scmp.lt.s32.totalorder %s18, 1
      %s270 = scalar_select %p269, %s18, 1
      %s271 = smul.addr %s270, 32
      %s272 = smul.addr %s271, 8
      %s273 = scalar_lea.vmem %s0, %s272
      %p274 = scmp.lt.s32.totalorder %s18, 1
      %s275 = scalar_select %p274, %s18, 1
      %s276 = smul.addr %s275, 32
      %s277 = smul.addr %s276, 8
      %s278 = scalar_lea.vmem %s7, %s277
      %v279 = vld [vmem:[%s273] sm:$0xff]
      %v280 = vld [vmem:[%s273 + $0x8] sm:$0xff]
      %v281 = vld [vmem:[%s273 + $0x10] sm:$0xff]
      %v282 = vld [vmem:[%s273 + $0x18] sm:$0xff]
      %v283 = vld [vmem:[%s273 + $0x20] sm:$0xff]
      %v284 = vld [vmem:[%s273 + $0x28] sm:$0xff]
      %v285 = vld [vmem:[%s273 + $0x30] sm:$0xff]
      %v286 = vld [vmem:[%s273 + $0x38] sm:$0xff]
      %v287 = vld [vmem:[%s273 + $0x40] sm:$0xff]
      %v288 = vld [vmem:[%s273 + $0x48] sm:$0xff]
      %v289 = vld [vmem:[%s273 + $0x50] sm:$0xff]
      %v290 = vld [vmem:[%s273 + $0x58] sm:$0xff]
      %v291 = vld [vmem:[%s273 + $0x60] sm:$0xff]
      %v292 = vld [vmem:[%s273 + $0x68] sm:$0xff]
      %v293 = vld [vmem:[%s273 + $0x70] sm:$0xff]
      %v294 = vld [vmem:[%s273 + $0x78] sm:$0xff]
      %v295 = vld [vmem:[%s273 + $0x80] sm:$0xff]
      %v296 = vld [vmem:[%s273 + $0x88] sm:$0xff]
      %v297 = vld [vmem:[%s273 + $0x90] sm:$0xff]
      %v298 = vld [vmem:[%s273 + $0x98] sm:$0xff]
      %v299 = vld [vmem:[%s273 + $0xa0] sm:$0xff]
      %v300 = vld [vmem:[%s273 + $0xa8] sm:$0xff]
      %v301 = vld [vmem:[%s273 + $0xb0] sm:$0xff]
      %v302 = vld [vmem:[%s273 + $0xb8] sm:$0xff]
      %v303 = vld [vmem:[%s273 + $0xc0] sm:$0xff]
      %v304 = vld [vmem:[%s273 + $0xc8] sm:$0xff]
      %v305 = vld [vmem:[%s273 + $0xd0] sm:$0xff]
      %v306 = vld [vmem:[%s273 + $0xd8] sm:$0xff]
      %v307 = vld [vmem:[%s273 + $0xe0] sm:$0xff]
      %v308 = vld [vmem:[%s273 + $0xe8] sm:$0xff]
      %v309 = vld [vmem:[%s273 + $0xf0] sm:$0xff]
      %v310 = vld [vmem:[%s273 + $0xf8] sm:$0xff]
      %v311 = vld [vmem:[%s3] sm:$0x1]
      %v313 = vlaneseq
      %v314 = vshrl.u32 %v313, 7
      %v315 = vsub.s32 0, %v314
      %v316 = vrot.slane %v311, %v315
      %v318 = vmul.f32 %v279, %v316
      %v319 = vmul.f32 %v280, %v316
      %v320 = vmul.f32 %v281, %v316
      %v321 = vmul.f32 %v282, %v316
      %v322 = vmul.f32 %v283, %v316
      %v323 = vmul.f32 %v284, %v316
      %v324 = vmul.f32 %v285, %v316
      %v325 = vmul.f32 %v286, %v316
      %v326 = vmul.f32 %v287, %v316
      %v327 = vmul.f32 %v288, %v316
      %v328 = vmul.f32 %v289, %v316
      %v329 = vmul.f32 %v290, %v316
      %v330 = vmul.f32 %v291, %v316
      %v331 = vmul.f32 %v292, %v316
      %v332 = vmul.f32 %v293, %v316
      %v333 = vmul.f32 %v294, %v316
      %v334 = vmul.f32 %v295, %v316
      %v335 = vmul.f32 %v296, %v316
      %v336 = vmul.f32 %v297, %v316
      %v337 = vmul.f32 %v298, %v316
      %v338 = vmul.f32 %v299, %v316
      %v339 = vmul.f32 %v300, %v316
      %v340 = vmul.f32 %v301, %v316
      %v341 = vmul.f32 %v302, %v316
      %v342 = vmul.f32 %v303, %v316
      %v343 = vmul.f32 %v304, %v316
      %v344 = vmul.f32 %v305, %v316
      %v345 = vmul.f32 %v306, %v316
      %v346 = vmul.f32 %v307, %v316
      %v347 = vmul.f32 %v308, %v316
      %v348 = vmul.f32 %v309, %v316
      %v349 = vmul.f32 %v310, %v316
      %v350 = vld [vmem:[%s4] sm:$0x1]
      %v352 = vlaneseq
      %v353 = vshrl.u32 %v352, 7
      %v354 = vsub.s32 0, %v353
      %v355 = vrot.slane %v350, %v354
      %v357 = vadd.f32 %v318, %v355
      %v358 = vadd.f32 %v319, %v355
      %v359 = vadd.f32 %v320, %v355
      %v360 = vadd.f32 %v321, %v355
      %v361 = vadd.f32 %v322, %v355
      %v362 = vadd.f32 %v323, %v355
      %v363 = vadd.f32 %v324, %v355
      %v364 = vadd.f32 %v325, %v355
      %v365 = vadd.f32 %v326, %v355
      %v366 = vadd.f32 %v327, %v355
      %v367 = vadd.f32 %v328, %v355
      %v368 = vadd.f32 %v329, %v355
      %v369 = vadd.f32 %v330, %v355
      %v370 = vadd.f32 %v331, %v355
      %v371 = vadd.f32 %v332, %v355
      %v372 = vadd.f32 %v333, %v355
      %v373 = vadd.f32 %v334, %v355
      %v374 = vadd.f32 %v335, %v355
      %v375 = vadd.f32 %v336, %v355
      %v376 = vadd.f32 %v337, %v355
      %v377 = vadd.f32 %v338, %v355
      %v378 = vadd.f32 %v339, %v355
      %v379 = vadd.f32 %v340, %v355
      %v380 = vadd.f32 %v341, %v355
      %v381 = vadd.f32 %v342, %v355
      %v382 = vadd.f32 %v343, %v355
      %v383 = vadd.f32 %v344, %v355
      %v384 = vadd.f32 %v345, %v355
      %v385 = vadd.f32 %v346, %v355
      %v386 = vadd.f32 %v347, %v355
      %v387 = vadd.f32 %v348, %v355
      %v388 = vadd.f32 %v349, %v355
      %vm421 = vcmask 1040384
      %v422 = vrot.slane %v357, 7
      %v423 = vrot.slane %v358, 7
      %v424 = vsel %vm421, %v422, %v423
      %v425 = vrot.slane %v359, 7
      %v426 = vrot.slane %v360, 7
      %v427 = vsel %vm421, %v425, %v426
      %v428 = vrot.slane %v361, 7
      %v429 = vrot.slane %v362, 7
      %v430 = vsel %vm421, %v428, %v429
      %v431 = vrot.slane %v363, 7
      %v432 = vrot.slane %v364, 7
      %v433 = vsel %vm421, %v431, %v432
      %v434 = vrot.slane %v365, 7
      %v435 = vrot.slane %v366, 7
      %v436 = vsel %vm421, %v434, %v435
      %v437 = vrot.slane %v367, 7
      %v438 = vrot.slane %v368, 7
      %v439 = vsel %vm421, %v437, %v438
      %v440 = vrot.slane %v369, 7
      %v441 = vrot.slane %v370, 7
      %v442 = vsel %vm421, %v440, %v441
      %v443 = vrot.slane %v371, 7
      %v444 = vrot.slane %v372, 7
      %v445 = vsel %vm421, %v443, %v444
      %v446 = vrot.slane %v373, 7
      %v447 = vrot.slane %v374, 7
      %v448 = vsel %vm421, %v446, %v447
      %v449 = vrot.slane %v375, 7
      %v450 = vrot.slane %v376, 7
      %v451 = vsel %vm421, %v449, %v450
      %v452 = vrot.slane %v377, 7
      %v453 = vrot.slane %v378, 7
      %v454 = vsel %vm421, %v452, %v453
      %v455 = vrot.slane %v379, 7
      %v456 = vrot.slane %v380, 7
      %v457 = vsel %vm421, %v455, %v456
      %v458 = vrot.slane %v381, 7
      %v459 = vrot.slane %v382, 7
      %v460 = vsel %vm421, %v458, %v459
      %v461 = vrot.slane %v383, 7
      %v462 = vrot.slane %v384, 7
      %v463 = vsel %vm421, %v461, %v462
      %v464 = vrot.slane %v385, 7
      %v465 = vrot.slane %v386, 7
      %v466 = vsel %vm421, %v464, %v465
      %v467 = vrot.slane %v387, 7
      %v468 = vrot.slane %v388, 7
      %v469 = vsel %vm421, %v467, %v468
      %v518 = vsel %vm421, 0.0, %v422
      %v519 = vsel %vm421, 0.0, %v425
      %v520 = vsel %vm421, 0.0, %v428
      %v521 = vsel %vm421, 0.0, %v431
      %v522 = vsel %vm421, 0.0, %v434
      %v523 = vsel %vm421, 0.0, %v437
      %v524 = vsel %vm421, 0.0, %v440
      %v525 = vsel %vm421, 0.0, %v443
      %v526 = vsel %vm421, 0.0, %v446
      %v527 = vsel %vm421, 0.0, %v449
      %v528 = vsel %vm421, 0.0, %v452
      %v529 = vsel %vm421, 0.0, %v455
      %v530 = vsel %vm421, 0.0, %v458
      %v531 = vsel %vm421, 0.0, %v461
      %v532 = vsel %vm421, 0.0, %v464
      %v533 = vsel %vm421, 0.0, %v467
      %v534 = vsel %vm421, %v423, 0.0
      %v535 = vsel %vm421, %v426, 0.0
      %v536 = vsel %vm421, %v429, 0.0
      %v537 = vsel %vm421, %v432, 0.0
      %v538 = vsel %vm421, %v435, 0.0
      %v539 = vsel %vm421, %v438, 0.0
      %v540 = vsel %vm421, %v441, 0.0
      %v541 = vsel %vm421, %v444, 0.0
      %v542 = vsel %vm421, %v447, 0.0
      %v543 = vsel %vm421, %v450, 0.0
      %v544 = vsel %vm421, %v453, 0.0
      %v545 = vsel %vm421, %v456, 0.0
      %v546 = vsel %vm421, %v459, 0.0
      %v547 = vsel %vm421, %v462, 0.0
      %v548 = vsel %vm421, %v465, 0.0
      %v549 = vsel %vm421, %v468, 0.0
      %vm550 = vcmask 31744
      %551 = vst.msk [vmem:[#allocation2] sm:$0xff] %vm550, 0.0
      %552 = vst.msk [vmem:[#allocation2 + $0x8] sm:$0xff] %vm550, 0.0
      %vm553 = vcmask 25600
      %554 = vst.msk [vmem:[#allocation2 + $0x10] sm:$0x3] %vm553, 0.0
      %s555 = scalar_lea.vmem [#allocation2], 408
      %556 = vst.msk [vmem:[%s555] sm:$0xff] %vm550, 0.0
      %557 = vst.msk [vmem:[%s555 + $0x8] sm:$0xff] %vm550, 0.0
      %558 = vst.msk [vmem:[%s555 + $0x10] sm:$0x3] %vm553, 0.0
      %s559 = scalar_lea.vmem [#allocation2], 24
      %560 = vst.msk [vmem:[%s559] sm:$0xff] %vm550, %v518
      %561 = vst.msk [vmem:[%s559 + $0x8] sm:$0xff] %vm550, %v424
      %562 = vst.msk [vmem:[%s559 + $0x10] sm:$0x3] %vm553, %v534
      %563 = vst.msk [vmem:[%s559 + $0x18] sm:$0xff] %vm550, %v519
      %564 = vst.msk [vmem:[%s559 + $0x20] sm:$0xff] %vm550, %v427
      %565 = vst.msk [vmem:[%s559 + $0x28] sm:$0x3] %vm553, %v535
      %566 = vst.msk [vmem:[%s559 + $0x30] sm:$0xff] %vm550, %v520
      %567 = vst.msk [vmem:[%s559 + $0x38] sm:$0xff] %vm550, %v430
      %568 = vst.msk [vmem:[%s559 + $0x40] sm:$0x3] %vm553, %v536
      %569 = vst.msk [vmem:[%s559 + $0x48] sm:$0xff] %vm550, %v521
      %570 = vst.msk [vmem:[%s559 + $0x50] sm:$0xff] %vm550, %v433
      %571 = vst.msk [vmem:[%s559 + $0x58] sm:$0x3] %vm553, %v537
      %572 = vst.msk [vmem:[%s559 + $0x60] sm:$0xff] %vm550, %v522
      %573 = vst.msk [vmem:[%s559 + $0x68] sm:$0xff] %vm550, %v436
      %574 = vst.msk [vmem:[%s559 + $0x70] sm:$0x3] %vm553, %v538
      %575 = vst.msk [vmem:[%s559 + $0x78] sm:$0xff] %vm550, %v523
      %576 = vst.msk [vmem:[%s559 + $0x80] sm:$0xff] %vm550, %v439
      %577 = vst.msk [vmem:[%s559 + $0x88] sm:$0x3] %vm553, %v539
      %578 = vst.msk [vmem:[%s559 + $0x90] sm:$0xff] %vm550, %v524
      %579 = vst.msk [vmem:[%s559 + $0x98] sm:$0xff] %vm550, %v442
      %580 = vst.msk [vmem:[%s559 + $0xa0] sm:$0x3] %vm553, %v540
      %581 = vst.msk [vmem:[%s559 + $0xa8] sm:$0xff] %vm550, %v525
      %582 = vst.msk [vmem:[%s559 + $0xb0] sm:$0xff] %vm550, %v445
      %583 = vst.msk [vmem:[%s559 + $0xb8] sm:$0x3] %vm553, %v541
      %584 = vst.msk [vmem:[%s559 + $0xc0] sm:$0xff] %vm550, %v526
      %585 = vst.msk [vmem:[%s559 + $0xc8] sm:$0xff] %vm550, %v448
      %586 = vst.msk [vmem:[%s559 + $0xd0] sm:$0x3] %vm553, %v542
      %587 = vst.msk [vmem:[%s559 + $0xd8] sm:$0xff] %vm550, %v527
      %588 = vst.msk [vmem:[%s559 + $0xe0] sm:$0xff] %vm550, %v451
      %589 = vst.msk [vmem:[%s559 + $0xe8] sm:$0x3] %vm553, %v543
      %590 = vst.msk [vmem:[%s559 + $0xf0] sm:$0xff] %vm550, %v528
      %591 = vst.msk [vmem:[%s559 + $0xf8] sm:$0xff] %vm550, %v454
      %592 = vst.msk [vmem:[%s559 + $0x100] sm:$0x3] %vm553, %v544
      %593 = vst.msk [vmem:[%s559 + $0x108] sm:$0xff] %vm550, %v529
      %594 = vst.msk [vmem:[%s559 + $0x110] sm:$0xff] %vm550, %v457
      %595 = vst.msk [vmem:[%s559 + $0x118] sm:$0x3] %vm553, %v545
      %596 = vst.msk [vmem:[%s559 + $0x120] sm:$0xff] %vm550, %v530
      %597 = vst.msk [vmem:[%s559 + $0x128] sm:$0xff] %vm550, %v460
      %598 = vst.msk [vmem:[%s559 + $0x130] sm:$0x3] %vm553, %v546
      %599 = vst.msk [vmem:[%s559 + $0x138] sm:$0xff] %vm550, %v531
      %600 = vst.msk [vmem:[%s559 + $0x140] sm:$0xff] %vm550, %v463
      %601 = vst.msk [vmem:[%s559 + $0x148] sm:$0x3] %vm553, %v547
      %602 = vst.msk [vmem:[%s559 + $0x150] sm:$0xff] %vm550, %v532
      %603 = vst.msk [vmem:[%s559 + $0x158] sm:$0xff] %vm550, %v466
      %604 = vst.msk [vmem:[%s559 + $0x160] sm:$0x3] %vm553, %v548
      %605 = vst.msk [vmem:[%s559 + $0x168] sm:$0xff] %vm550, %v533
      %606 = vst.msk [vmem:[%s559 + $0x170] sm:$0xff] %vm550, %v469
      %607 = vst.msk [vmem:[%s559 + $0x178] sm:$0x3] %vm553, %v549
      %vm608 = vcmask 64512
      %609 = vst.msk [vmem:[#allocation3] sm:$0xff] %vm608, 0.0
      %610 = vst.msk [vmem:[#allocation3 + $0x8] sm:$0xff] %vm608, 0.0
      %vm611 = vcmask 58368
      %612 = vst.msk [vmem:[#allocation3 + $0x10] sm:$0x3] %vm611, 0.0
      %s613 = scalar_lea.vmem [#allocation3], 408
      %614 = vst.msk [vmem:[%s613] sm:$0xff] %vm608, 0.0
      %615 = vst.msk [vmem:[%s613 + $0x8] sm:$0xff] %vm608, 0.0
      %616 = vst.msk [vmem:[%s613 + $0x10] sm:$0x3] %vm611, 0.0
      %v617 = vld [vmem:[#allocation2] sm:$0xff]
      %v618 = vld [vmem:[#allocation2 + $0x8] sm:$0xff]
      %v619 = vld [vmem:[#allocation2 + $0x18] sm:$0xff]
      %v620 = vld [vmem:[#allocation2 + $0x20] sm:$0xff]
      %v621 = vld [vmem:[#allocation2 + $0x30] sm:$0xff]
      %v622 = vld [vmem:[#allocation2 + $0x38] sm:$0xff]
      %v623 = vld [vmem:[#allocation2 + $0x48] sm:$0xff]
      %v624 = vld [vmem:[#allocation2 + $0x50] sm:$0xff]
      %v625 = vld [vmem:[#allocation2 + $0x60] sm:$0xff]
      %v626 = vld [vmem:[#allocation2 + $0x68] sm:$0xff]
      %v627 = vld [vmem:[#allocation2 + $0x78] sm:$0xff]
      %v628 = vld [vmem:[#allocation2 + $0x80] sm:$0xff]
      %v629 = vld [vmem:[#allocation2 + $0x90] sm:$0xff]
      %v630 = vld [vmem:[#allocation2 + $0x98] sm:$0xff]
      %v631 = vld [vmem:[#allocation2 + $0xa8] sm:$0xff]
      %v632 = vld [vmem:[#allocation2 + $0xb0] sm:$0xff]
      %v633 = vld [vmem:[#allocation2 + $0xc0] sm:$0xff]
      %v634 = vld [vmem:[#allocation2 + $0xc8] sm:$0xff]
      %v635 = vld [vmem:[#allocation2 + $0xd8] sm:$0xff]
      %v636 = vld [vmem:[#allocation2 + $0xe0] sm:$0xff]
      %v637 = vld [vmem:[#allocation2 + $0xf0] sm:$0xff]
      %v638 = vld [vmem:[#allocation2 + $0xf8] sm:$0xff]
      %v639 = vld [vmem:[#allocation2 + $0x108] sm:$0xff]
      %v640 = vld [vmem:[#allocation2 + $0x110] sm:$0xff]
      %v641 = vld [vmem:[#allocation2 + $0x120] sm:$0xff]
      %v642 = vld [vmem:[#allocation2 + $0x128] sm:$0xff]
      %v643 = vld [vmem:[#allocation2 + $0x138] sm:$0xff]
      %v644 = vld [vmem:[#allocation2 + $0x140] sm:$0xff]
      %v645 = vld [vmem:[#allocation2 + $0x150] sm:$0xff]
      %v646 = vld [vmem:[#allocation2 + $0x158] sm:$0xff]
      %v647 = vld [vmem:[#allocation2 + $0x168] sm:$0xff]
      %v648 = vld [vmem:[#allocation2 + $0x170] sm:$0xff]
      %v649 = vld [vmem:[#allocation2 + $0x1] sm:$0xff]
      %v650 = vld [vmem:[#allocation2 + $0x9] sm:$0xff]
      %v651 = vld [vmem:[#allocation2 + $0x19] sm:$0xff]
      %v652 = vld [vmem:[#allocation2 + $0x21] sm:$0xff]
      %v653 = vld [vmem:[#allocation2 + $0x31] sm:$0xff]
      %v654 = vld [vmem:[#allocation2 + $0x39] sm:$0xff]
      %v655 = vld [vmem:[#allocation2 + $0x49] sm:$0xff]
      %v656 = vld [vmem:[#allocation2 + $0x51] sm:$0xff]
      %v657 = vld [vmem:[#allocation2 + $0x61] sm:$0xff]
      %v658 = vld [vmem:[#allocation2 + $0x69] sm:$0xff]
      %v659 = vld [vmem:[#allocation2 + $0x79] sm:$0xff]
      %v660 = vld [vmem:[#allocation2 + $0x81] sm:$0xff]
      %v661 = vld [vmem:[#allocation2 + $0x91] sm:$0xff]
      %v662 = vld [vmem:[#allocation2 + $0x99] sm:$0xff]
      %v663 = vld [vmem:[#allocation2 + $0xa9] sm:$0xff]
      %v664 = vld [vmem:[#allocation2 + $0xb1] sm:$0xff]
      %v665 = vld [vmem:[#allocation2 + $0xc1] sm:$0xff]
      %v666 = vld [vmem:[#allocation2 + $0xc9] sm:$0xff]
      %v667 = vld [vmem:[#allocation2 + $0xd9] sm:$0xff]
      %v668 = vld [vmem:[#allocation2 + $0xe1] sm:$0xff]
      %v669 = vld [vmem:[#allocation2 + $0xf1] sm:$0xff]
      %v670 = vld [vmem:[#allocation2 + $0xf9] sm:$0xff]
      %v671 = vld [vmem:[#allocation2 + $0x109] sm:$0xff]
      %v672 = vld [vmem:[#allocation2 + $0x111] sm:$0xff]
      %v673 = vld [vmem:[#allocation2 + $0x121] sm:$0xff]
      %v674 = vld [vmem:[#allocation2 + $0x129] sm:$0xff]
      %v675 = vld [vmem:[#allocation2 + $0x139] sm:$0xff]
      %v676 = vld [vmem:[#allocation2 + $0x141] sm:$0xff]
      %v677 = vld [vmem:[#allocation2 + $0x151] sm:$0xff]
      %v678 = vld [vmem:[#allocation2 + $0x159] sm:$0xff]
      %v679 = vld [vmem:[#allocation2 + $0x169] sm:$0xff]
      %v680 = vld [vmem:[#allocation2 + $0x171] sm:$0xff]
      %v681 = vld [vmem:[#allocation2 + $0x2] sm:$0xff]
      %v682 = vld [vmem:[#allocation2 + $0xa] sm:$0xff]
      %v683 = vld [vmem:[#allocation2 + $0x1a] sm:$0xff]
      %v684 = vld [vmem:[#allocation2 + $0x22] sm:$0xff]
      %v685 = vld [vmem:[#allocation2 + $0x32] sm:$0xff]
      %v686 = vld [vmem:[#allocation2 + $0x3a] sm:$0xff]
      %v687 = vld [vmem:[#allocation2 + $0x4a] sm:$0xff]
      %v688 = vld [vmem:[#allocation2 + $0x52] sm:$0xff]
      %v689 = vld [vmem:[#allocation2 + $0x62] sm:$0xff]
      %v690 = vld [vmem:[#allocation2 + $0x6a] sm:$0xff]
      %v691 = vld [vmem:[#allocation2 + $0x7a] sm:$0xff]
      %v692 = vld [vmem:[#allocation2 + $0x82] sm:$0xff]
      %v693 = vld [vmem:[#allocation2 + $0x92] sm:$0xff]
      %v694 = vld [vmem:[#allocation2 + $0x9a] sm:$0xff]
      %v695 = vld [vmem:[#allocation2 + $0xaa] sm:$0xff]
      %v696 = vld [vmem:[#allocation2 + $0xb2] sm:$0xff]
      %v697 = vld [vmem:[#allocation2 + $0xc2] sm:$0xff]
      %v698 = vld [vmem:[#allocation2 + $0xca] sm:$0xff]
      %v699 = vld [vmem:[#allocation2 + $0xda] sm:$0xff]
      %v700 = vld [vmem:[#allocation2 + $0xe2] sm:$0xff]
      %v701 = vld [vmem:[#allocation2 + $0xf2] sm:$0xff]
      %v702 = vld [vmem:[#allocation2 + $0xfa] sm:$0xff]
      %v703 = vld [vmem:[#allocation2 + $0x10a] sm:$0xff]
      %v704 = vld [vmem:[#allocation2 + $0x112] sm:$0xff]
      %v705 = vld [vmem:[#allocation2 + $0x122] sm:$0xff]
      %v706 = vld [vmem:[#allocation2 + $0x12a] sm:$0xff]
      %v707 = vld [vmem:[#allocation2 + $0x13a] sm:$0xff]
      %v708 = vld [vmem:[#allocation2 + $0x142] sm:$0xff]
      %v709 = vld [vmem:[#allocation2 + $0x152] sm:$0xff]
      %v710 = vld [vmem:[#allocation2 + $0x15a] sm:$0xff]
      %v711 = vld [vmem:[#allocation2 + $0x16a] sm:$0xff]
      %v712 = vld [vmem:[#allocation2 + $0x172] sm:$0xff]
      %v713 = vld [vmem:[%s559] sm:$0xff]
      %v714 = vld [vmem:[%s559 + $0x8] sm:$0xff]
      %v715 = vld [vmem:[%s559 + $0x18] sm:$0xff]
      %v716 = vld [vmem:[%s559 + $0x20] sm:$0xff]
      %v717 = vld [vmem:[%s559 + $0x30] sm:$0xff]
      %v718 = vld [vmem:[%s559 + $0x38] sm:$0xff]
      %v719 = vld [vmem:[%s559 + $0x48] sm:$0xff]
      %v720 = vld [vmem:[%s559 + $0x50] sm:$0xff]
      %v721 = vld [vmem:[%s559 + $0x60] sm:$0xff]
      %v722 = vld [vmem:[%s559 + $0x68] sm:$0xff]
      %v723 = vld [vmem:[%s559 + $0x78] sm:$0xff]
      %v724 = vld [vmem:[%s559 + $0x80] sm:$0xff]
      %v725 = vld [vmem:[%s559 + $0x90] sm:$0xff]
      %v726 = vld [vmem:[%s559 + $0x98] sm:$0xff]
      %v727 = vld [vmem:[%s559 + $0xa8] sm:$0xff]
      %v728 = vld [vmem:[%s559 + $0xb0] sm:$0xff]
      %v729 = vld [vmem:[%s559 + $0xc0] sm:$0xff]
      %v730 = vld [vmem:[%s559 + $0xc8] sm:$0xff]
      %v731 = vld [vmem:[%s559 + $0xd8] sm:$0xff]
      %v732 = vld [vmem:[%s559 + $0xe0] sm:$0xff]
      %v733 = vld [vmem:[%s559 + $0xf0] sm:$0xff]
      %v734 = vld [vmem:[%s559 + $0xf8] sm:$0xff]
      %v735 = vld [vmem:[%s559 + $0x108] sm:$0xff]
      %v736 = vld [vmem:[%s559 + $0x110] sm:$0xff]
      %v737 = vld [vmem:[%s559 + $0x120] sm:$0xff]
      %v738 = vld [vmem:[%s559 + $0x128] sm:$0xff]
      %v739 = vld [vmem:[%s559 + $0x138] sm:$0xff]
      %v740 = vld [vmem:[%s559 + $0x140] sm:$0xff]
      %v741 = vld [vmem:[%s559 + $0x150] sm:$0xff]
      %v742 = vld [vmem:[%s559 + $0x158] sm:$0xff]
      %v743 = vld [vmem:[%s559 + $0x168] sm:$0xff]
      %v744 = vld [vmem:[%s559 + $0x170] sm:$0xff]
      %v745 = vld [vmem:[%s559 + $0x1] sm:$0xff]
      %v746 = vld [vmem:[%s559 + $0x9] sm:$0xff]
      %v747 = vld [vmem:[%s559 + $0x19] sm:$0xff]
      %v748 = vld [vmem:[%s559 + $0x21] sm:$0xff]
      %v749 = vld [vmem:[%s559 + $0x31] sm:$0xff]
      %v750 = vld [vmem:[%s559 + $0x39] sm:$0xff]
      %v751 = vld [vmem:[%s559 + $0x49] sm:$0xff]
      %v752 = vld [vmem:[%s559 + $0x51] sm:$0xff]
      %v753 = vld [vmem:[%s559 + $0x61] sm:$0xff]
      %v754 = vld [vmem:[%s559 + $0x69] sm:$0xff]
      %v755 = vld [vmem:[%s559 + $0x79] sm:$0xff]
      %v756 = vld [vmem:[%s559 + $0x81] sm:$0xff]
      %v757 = vld [vmem:[%s559 + $0x91] sm:$0xff]
      %v758 = vld [vmem:[%s559 + $0x99] sm:$0xff]
      %v759 = vld [vmem:[%s559 + $0xa9] sm:$0xff]
      %v760 = vld [vmem:[%s559 + $0xb1] sm:$0xff]
      %v761 = vld [vmem:[%s559 + $0xc1] sm:$0xff]
      %v762 = vld [vmem:[%s559 + $0xc9] sm:$0xff]
      %v763 = vld [vmem:[%s559 + $0xd9] sm:$0xff]
      %v764 = vld [vmem:[%s559 + $0xe1] sm:$0xff]
      %v765 = vld [vmem:[%s559 + $0xf1] sm:$0xff]
      %v766 = vld [vmem:[%s559 + $0xf9] sm:$0xff]
      %v767 = vld [vmem:[%s559 + $0x109] sm:$0xff]
      %v768 = vld [vmem:[%s559 + $0x111] sm:$0xff]
      %v769 = vld [vmem:[%s559 + $0x121] sm:$0xff]
      %v770 = vld [vmem:[%s559 + $0x129] sm:$0xff]
      %v771 = vld [vmem:[%s559 + $0x139] sm:$0xff]
      %v772 = vld [vmem:[%s559 + $0x141] sm:$0xff]
      %v773 = vld [vmem:[%s559 + $0x151] sm:$0xff]
      %v774 = vld [vmem:[%s559 + $0x159] sm:$0xff]
      %v775 = vld [vmem:[%s559 + $0x169] sm:$0xff]
      %v776 = vld [vmem:[%s559 + $0x171] sm:$0xff]
      %v777 = vld [vmem:[%s559 + $0x2] sm:$0xff]
      %v778 = vld [vmem:[%s559 + $0xa] sm:$0xff]
      %v779 = vld [vmem:[%s559 + $0x1a] sm:$0xff]
      %v780 = vld [vmem:[%s559 + $0x22] sm:$0xff]
      %v781 = vld [vmem:[%s559 + $0x32] sm:$0xff]
      %v782 = vld [vmem:[%s559 + $0x3a] sm:$0xff]
      %v783 = vld [vmem:[%s559 + $0x4a] sm:$0xff]
      %v784 = vld [vmem:[%s559 + $0x52] sm:$0xff]
      %v785 = vld [vmem:[%s559 + $0x62] sm:$0xff]
      %v786 = vld [vmem:[%s559 + $0x6a] sm:$0xff]
      %v787 = vld [vmem:[%s559 + $0x7a] sm:$0xff]
      %v788 = vld [vmem:[%s559 + $0x82] sm:$0xff]
      %v789 = vld [vmem:[%s559 + $0x92] sm:$0xff]
      %v790 = vld [vmem:[%s559 + $0x9a] sm:$0xff]
      %v791 = vld [vmem:[%s559 + $0xaa] sm:$0xff]
      %v792 = vld [vmem:[%s559 + $0xb2] sm:$0xff]
      %v793 = vld [vmem:[%s559 + $0xc2] sm:$0xff]
      %v794 = vld [vmem:[%s559 + $0xca] sm:$0xff]
      %v795 = vld [vmem:[%s559 + $0xda] sm:$0xff]
      %v796 = vld [vmem:[%s559 + $0xe2] sm:$0xff]
      %v797 = vld [vmem:[%s559 + $0xf2] sm:$0xff]
      %v798 = vld [vmem:[%s559 + $0xfa] sm:$0xff]
      %v799 = vld [vmem:[%s559 + $0x10a] sm:$0xff]
      %v800 = vld [vmem:[%s559 + $0x112] sm:$0xff]
      %v801 = vld [vmem:[%s559 + $0x122] sm:$0xff]
      %v802 = vld [vmem:[%s559 + $0x12a] sm:$0xff]
      %v803 = vld [vmem:[%s559 + $0x13a] sm:$0xff]
      %v804 = vld [vmem:[%s559 + $0x142] sm:$0xff]
      %v805 = vld [vmem:[%s559 + $0x152] sm:$0xff]
      %v806 = vld [vmem:[%s559 + $0x15a] sm:$0xff]
      %v807 = vld [vmem:[%s559 + $0x16a] sm:$0xff]
      %v808 = vld [vmem:[%s559 + $0x172] sm:$0xff]
      %s809 = scalar_lea.vmem [#allocation2], 48
      %v810 = vld [vmem:[%s809] sm:$0xff]
      %v811 = vld [vmem:[%s809 + $0x8] sm:$0xff]
      %v812 = vld [vmem:[%s809 + $0x18] sm:$0xff]
      %v813 = vld [vmem:[%s809 + $0x20] sm:$0xff]
      %v814 = vld [vmem:[%s809 + $0x30] sm:$0xff]
      %v815 = vld [vmem:[%s809 + $0x38] sm:$0xff]
      %v816 = vld [vmem:[%s809 + $0x48] sm:$0xff]
      %v817 = vld [vmem:[%s809 + $0x50] sm:$0xff]
      %v818 = vld [vmem:[%s809 + $0x60] sm:$0xff]
      %v819 = vld [vmem:[%s809 + $0x68] sm:$0xff]
      %v820 = vld [vmem:[%s809 + $0x78] sm:$0xff]
      %v821 = vld [vmem:[%s809 + $0x80] sm:$0xff]
      %v822 = vld [vmem:[%s809 + $0x90] sm:$0xff]
      %v823 = vld [vmem:[%s809 + $0x98] sm:$0xff]
      %v824 = vld [vmem:[%s809 + $0xa8] sm:$0xff]
      %v825 = vld [vmem:[%s809 + $0xb0] sm:$0xff]
      %v826 = vld [vmem:[%s809 + $0xc0] sm:$0xff]
      %v827 = vld [vmem:[%s809 + $0xc8] sm:$0xff]
      %v828 = vld [vmem:[%s809 + $0xd8] sm:$0xff]
      %v829 = vld [vmem:[%s809 + $0xe0] sm:$0xff]
      %v830 = vld [vmem:[%s809 + $0xf0] sm:$0xff]
      %v831 = vld [vmem:[%s809 + $0xf8] sm:$0xff]
      %v832 = vld [vmem:[%s809 + $0x108] sm:$0xff]
      %v833 = vld [vmem:[%s809 + $0x110] sm:$0xff]
      %v834 = vld [vmem:[%s809 + $0x120] sm:$0xff]
      %v835 = vld [vmem:[%s809 + $0x128] sm:$0xff]
      %v836 = vld [vmem:[%s809 + $0x138] sm:$0xff]
      %v837 = vld [vmem:[%s809 + $0x140] sm:$0xff]
      %v838 = vld [vmem:[%s809 + $0x150] sm:$0xff]
      %v839 = vld [vmem:[%s809 + $0x158] sm:$0xff]
      %v840 = vld [vmem:[%s809 + $0x168] sm:$0xff]
      %v841 = vld [vmem:[%s809 + $0x170] sm:$0xff]
      %v842 = vld [vmem:[%s809 + $0x1] sm:$0xff]
      %v843 = vld [vmem:[%s809 + $0x9] sm:$0xff]
      %v844 = vld [vmem:[%s809 + $0x19] sm:$0xff]
      %v845 = vld [vmem:[%s809 + $0x21] sm:$0xff]
      %v846 = vld [vmem:[%s809 + $0x31] sm:$0xff]
      %v847 = vld [vmem:[%s809 + $0x39] sm:$0xff]
      %v848 = vld [vmem:[%s809 + $0x49] sm:$0xff]
      %v849 = vld [vmem:[%s809 + $0x51] sm:$0xff]
      %v850 = vld [vmem:[%s809 + $0x61] sm:$0xff]
      %v851 = vld [vmem:[%s809 + $0x69] sm:$0xff]
      %v852 = vld [vmem:[%s809 + $0x79] sm:$0xff]
      %v853 = vld [vmem:[%s809 + $0x81] sm:$0xff]
      %v854 = vld [vmem:[%s809 + $0x91] sm:$0xff]
      %v855 = vld [vmem:[%s809 + $0x99] sm:$0xff]
      %v856 = vld [vmem:[%s809 + $0xa9] sm:$0xff]
      %v857 = vld [vmem:[%s809 + $0xb1] sm:$0xff]
      %v858 = vld [vmem:[%s809 + $0xc1] sm:$0xff]
      %v859 = vld [vmem:[%s809 + $0xc9] sm:$0xff]
      %v860 = vld [vmem:[%s809 + $0xd9] sm:$0xff]
      %v861 = vld [vmem:[%s809 + $0xe1] sm:$0xff]
      %v862 = vld [vmem:[%s809 + $0xf1] sm:$0xff]
      %v863 = vld [vmem:[%s809 + $0xf9] sm:$0xff]
      %v864 = vld [vmem:[%s809 + $0x109] sm:$0xff]
      %v865 = vld [vmem:[%s809 + $0x111] sm:$0xff]
      %v866 = vld [vmem:[%s809 + $0x121] sm:$0xff]
      %v867 = vld [vmem:[%s809 + $0x129] sm:$0xff]
      %v868 = vld [vmem:[%s809 + $0x139] sm:$0xff]
      %v869 = vld [vmem:[%s809 + $0x141] sm:$0xff]
      %v870 = vld [vmem:[%s809 + $0x151] sm:$0xff]
      %v871 = vld [vmem:[%s809 + $0x159] sm:$0xff]
      %v872 = vld [vmem:[%s809 + $0x169] sm:$0xff]
      %v873 = vld [vmem:[%s809 + $0x171] sm:$0xff]
      %v874 = vld [vmem:[%s809 + $0x2] sm:$0xff]
      %v875 = vld [vmem:[%s809 + $0xa] sm:$0xff]
      %v876 = vld [vmem:[%s809 + $0x1a] sm:$0xff]
      %v877 = vld [vmem:[%s809 + $0x22] sm:$0xff]
      %v878 = vld [vmem:[%s809 + $0x32] sm:$0xff]
      %v879 = vld [vmem:[%s809 + $0x3a] sm:$0xff]
      %v880 = vld [vmem:[%s809 + $0x4a] sm:$0xff]
      %v881 = vld [vmem:[%s809 + $0x52] sm:$0xff]
      %v882 = vld [vmem:[%s809 + $0x62] sm:$0xff]
      %v883 = vld [vmem:[%s809 + $0x6a] sm:$0xff]
      %v884 = vld [vmem:[%s809 + $0x7a] sm:$0xff]
      %v885 = vld [vmem:[%s809 + $0x82] sm:$0xff]
      %v886 = vld [vmem:[%s809 + $0x92] sm:$0xff]
      %v887 = vld [vmem:[%s809 + $0x9a] sm:$0xff]
      %v888 = vld [vmem:[%s809 + $0xaa] sm:$0xff]
      %v889 = vld [vmem:[%s809 + $0xb2] sm:$0xff]
      %v890 = vld [vmem:[%s809 + $0xc2] sm:$0xff]
      %v891 = vld [vmem:[%s809 + $0xca] sm:$0xff]
      %v892 = vld [vmem:[%s809 + $0xda] sm:$0xff]
      %v893 = vld [vmem:[%s809 + $0xe2] sm:$0xff]
      %v894 = vld [vmem:[%s809 + $0xf2] sm:$0xff]
      %v895 = vld [vmem:[%s809 + $0xfa] sm:$0xff]
      %v896 = vld [vmem:[%s809 + $0x10a] sm:$0xff]
      %v897 = vld [vmem:[%s809 + $0x112] sm:$0xff]
      %v898 = vld [vmem:[%s809 + $0x122] sm:$0xff]
      %v899 = vld [vmem:[%s809 + $0x12a] sm:$0xff]
      %v900 = vld [vmem:[%s809 + $0x13a] sm:$0xff]
      %v901 = vld [vmem:[%s809 + $0x142] sm:$0xff]
      %v902 = vld [vmem:[%s809 + $0x152] sm:$0xff]
      %v903 = vld [vmem:[%s809 + $0x15a] sm:$0xff]
      %v904 = vld [vmem:[%s809 + $0x16a] sm:$0xff]
      %v905 = vld [vmem:[%s809 + $0x172] sm:$0xff]
      %938 = vrot.lane.b32.xlu0 %v649, 4
      %v939 = vpop.permute.xlu0 %938
      %940 = vrot.lane.b32.xlu0 %v650, 4
      %v941 = vpop.permute.xlu0 %940
      %942 = vrot.lane.b32.xlu0 %v651, 4
      %v943 = vpop.permute.xlu0 %942
      %944 = vrot.lane.b32.xlu0 %v652, 4
      %v945 = vpop.permute.xlu0 %944
      %946 = vrot.lane.b32.xlu0 %v653, 4
      %v947 = vpop.permute.xlu0 %946
      %948 = vrot.lane.b32.xlu0 %v654, 4
      %v949 = vpop.permute.xlu0 %948
      %950 = vrot.lane.b32.xlu0 %v655, 4
      %v951 = vpop.permute.xlu0 %950
      %952 = vrot.lane.b32.xlu0 %v656, 4
      %v953 = vpop.permute.xlu0 %952
      %954 = vrot.lane.b32.xlu0 %v657, 4
      %v955 = vpop.permute.xlu0 %954
      %956 = vrot.lane.b32.xlu0 %v658, 4
      %v957 = vpop.permute.xlu0 %956
      %958 = vrot.lane.b32.xlu0 %v659, 4
      %v959 = vpop.permute.xlu0 %958
      %960 = vrot.lane.b32.xlu0 %v660, 4
      %v961 = vpop.permute.xlu0 %960
      %962 = vrot.lane.b32.xlu0 %v661, 4
      %v963 = vpop.permute.xlu0 %962
      %964 = vrot.lane.b32.xlu0 %v662, 4
      %v965 = vpop.permute.xlu0 %964
      %966 = vrot.lane.b32.xlu0 %v663, 4
      %v967 = vpop.permute.xlu0 %966
      %968 = vrot.lane.b32.xlu0 %v664, 4
      %v969 = vpop.permute.xlu0 %968
      %970 = vrot.lane.b32.xlu0 %v665, 4
      %v971 = vpop.permute.xlu0 %970
      %972 = vrot.lane.b32.xlu0 %v666, 4
      %v973 = vpop.permute.xlu0 %972
      %974 = vrot.lane.b32.xlu0 %v667, 4
      %v975 = vpop.permute.xlu0 %974
      %976 = vrot.lane.b32.xlu0 %v668, 4
      %v977 = vpop.permute.xlu0 %976
      %978 = vrot.lane.b32.xlu0 %v669, 4
      %v979 = vpop.permute.xlu0 %978
      %980 = vrot.lane.b32.xlu0 %v670, 4
      %v981 = vpop.permute.xlu0 %980
      %982 = vrot.lane.b32.xlu0 %v671, 4
      %v983 = vpop.permute.xlu0 %982
      %984 = vrot.lane.b32.xlu0 %v672, 4
      %v985 = vpop.permute.xlu0 %984
      %986 = vrot.lane.b32.xlu0 %v673, 4
      %v987 = vpop.permute.xlu0 %986
      %988 = vrot.lane.b32.xlu0 %v674, 4
      %v989 = vpop.permute.xlu0 %988
      %990 = vrot.lane.b32.xlu0 %v675, 4
      %v991 = vpop.permute.xlu0 %990
      %992 = vrot.lane.b32.xlu0 %v676, 4
      %v993 = vpop.permute.xlu0 %992
      %994 = vrot.lane.b32.xlu0 %v677, 4
      %v995 = vpop.permute.xlu0 %994
      %996 = vrot.lane.b32.xlu0 %v678, 4
      %v997 = vpop.permute.xlu0 %996
      %998 = vrot.lane.b32.xlu0 %v679, 4
      %v999 = vpop.permute.xlu0 %998
      %1000 = vrot.lane.b32.xlu0 %v680, 4
      %v1001 = vpop.permute.xlu0 %1000
      %1066 = vrot.lane.b32.xlu0 %v681, 8
      %v1067 = vpop.permute.xlu0 %1066
      %1068 = vrot.lane.b32.xlu0 %v682, 8
      %v1069 = vpop.permute.xlu0 %1068
      %1070 = vrot.lane.b32.xlu0 %v683, 8
      %v1071 = vpop.permute.xlu0 %1070
      %1072 = vrot.lane.b32.xlu0 %v684, 8
      %v1073 = vpop.permute.xlu0 %1072
      %1074 = vrot.lane.b32.xlu0 %v685, 8
      %v1075 = vpop.permute.xlu0 %1074
      %1076 = vrot.lane.b32.xlu0 %v686, 8
      %v1077 = vpop.permute.xlu0 %1076
      %1078 = vrot.lane.b32.xlu0 %v687, 8
      %v1079 = vpop.permute.xlu0 %1078
      %1080 = vrot.lane.b32.xlu0 %v688, 8
      %v1081 = vpop.permute.xlu0 %1080
      %1082 = vrot.lane.b32.xlu0 %v689, 8
      %v1083 = vpop.permute.xlu0 %1082
      %1084 = vrot.lane.b32.xlu0 %v690, 8
      %v1085 = vpop.permute.xlu0 %1084
      %1086 = vrot.lane.b32.xlu0 %v691, 8
      %v1087 = vpop.permute.xlu0 %1086
      %1088 = vrot.lane.b32.xlu0 %v692, 8
      %v1089 = vpop.permute.xlu0 %1088
      %1090 = vrot.lane.b32.xlu0 %v693, 8
      %v1091 = vpop.permute.xlu0 %1090
      %1092 = vrot.lane.b32.xlu0 %v694, 8
      %v1093 = vpop.permute.xlu0 %1092
      %1094 = vrot.lane.b32.xlu0 %v695, 8
      %v1095 = vpop.permute.xlu0 %1094
      %1096 = vrot.lane.b32.xlu0 %v696, 8
      %v1097 = vpop.permute.xlu0 %1096
      %1098 = vrot.lane.b32.xlu0 %v697, 8
      %v1099 = vpop.permute.xlu0 %1098
      %1100 = vrot.lane.b32.xlu0 %v698, 8
      %v1101 = vpop.permute.xlu0 %1100
      %1102 = vrot.lane.b32.xlu0 %v699, 8
      %v1103 = vpop.permute.xlu0 %1102
      %1104 = vrot.lane.b32.xlu0 %v700, 8
      %v1105 = vpop.permute.xlu0 %1104
      %1106 = vrot.lane.b32.xlu0 %v701, 8
      %v1107 = vpop.permute.xlu0 %1106
      %1108 = vrot.lane.b32.xlu0 %v702, 8
      %v1109 = vpop.permute.xlu0 %1108
      %1110 = vrot.lane.b32.xlu0 %v703, 8
      %v1111 = vpop.permute.xlu0 %1110
      %1112 = vrot.lane.b32.xlu0 %v704, 8
      %v1113 = vpop.permute.xlu0 %1112
      %1114 = vrot.lane.b32.xlu0 %v705, 8
      %v1115 = vpop.permute.xlu0 %1114
      %1116 = vrot.lane.b32.xlu0 %v706, 8
      %v1117 = vpop.permute.xlu0 %1116
      %1118 = vrot.lane.b32.xlu0 %v707, 8
      %v1119 = vpop.permute.xlu0 %1118
      %1120 = vrot.lane.b32.xlu0 %v708, 8
      %v1121 = vpop.permute.xlu0 %1120
      %1122 = vrot.lane.b32.xlu0 %v709, 8
      %v1123 = vpop.permute.xlu0 %1122
      %1124 = vrot.lane.b32.xlu0 %v710, 8
      %v1125 = vpop.permute.xlu0 %1124
      %1126 = vrot.lane.b32.xlu0 %v711, 8
      %v1127 = vpop.permute.xlu0 %1126
      %1128 = vrot.lane.b32.xlu0 %v712, 8
      %v1129 = vpop.permute.xlu0 %1128
      %1194 = vrot.lane.b32.xlu0 %v713, 12
      %v1195 = vpop.permute.xlu0 %1194
      %1196 = vrot.lane.b32.xlu0 %v714, 12
      %v1197 = vpop.permute.xlu0 %1196
      %1198 = vrot.lane.b32.xlu0 %v715, 12
      %v1199 = vpop.permute.xlu0 %1198
      %1200 = vrot.lane.b32.xlu0 %v716, 12
      %v1201 = vpop.permute.xlu0 %1200
      %1202 = vrot.lane.b32.xlu0 %v717, 12
      %v1203 = vpop.permute.xlu0 %1202
      %1204 = vrot.lane.b32.xlu0 %v718, 12
      %v1205 = vpop.permute.xlu0 %1204
      %1206 = vrot.lane.b32.xlu0 %v719, 12
      %v1207 = vpop.permute.xlu0 %1206
      %1208 = vrot.lane.b32.xlu0 %v720, 12
      %v1209 = vpop.permute.xlu0 %1208
      %1210 = vrot.lane.b32.xlu0 %v721, 12
      %v1211 = vpop.permute.xlu0 %1210
      %1212 = vrot.lane.b32.xlu0 %v722, 12
      %v1213 = vpop.permute.xlu0 %1212
      %1214 = vrot.lane.b32.xlu0 %v723, 12
      %v1215 = vpop.permute.xlu0 %1214
      %1216 = vrot.lane.b32.xlu0 %v724, 12
      %v1217 = vpop.permute.xlu0 %1216
      %1218 = vrot.lane.b32.xlu0 %v725, 12
      %v1219 = vpop.permute.xlu0 %1218
      %1220 = vrot.lane.b32.xlu0 %v726, 12
      %v1221 = vpop.permute.xlu0 %1220
      %1222 = vrot.lane.b32.xlu0 %v727, 12
      %v1223 = vpop.permute.xlu0 %1222
      %1224 = vrot.lane.b32.xlu0 %v728, 12
      %v1225 = vpop.permute.xlu0 %1224
      %1226 = vrot.lane.b32.xlu0 %v729, 12
      %v1227 = vpop.permute.xlu0 %1226
      %1228 = vrot.lane.b32.xlu0 %v730, 12
      %v1229 = vpop.permute.xlu0 %1228
      %1230 = vrot.lane.b32.xlu0 %v731, 12
      %v1231 = vpop.permute.xlu0 %1230
      %1232 = vrot.lane.b32.xlu0 %v732, 12
      %v1233 = vpop.permute.xlu0 %1232
      %1234 = vrot.lane.b32.xlu0 %v733, 12
      %v1235 = vpop.permute.xlu0 %1234
      %1236 = vrot.lane.b32.xlu0 %v734, 12
      %v1237 = vpop.permute.xlu0 %1236
      %1238 = vrot.lane.b32.xlu0 %v735, 12
      %v1239 = vpop.permute.xlu0 %1238
      %1240 = vrot.lane.b32.xlu0 %v736, 12
      %v1241 = vpop.permute.xlu0 %1240
      %1242 = vrot.lane.b32.xlu0 %v737, 12
      %v1243 = vpop.permute.xlu0 %1242
      %1244 = vrot.lane.b32.xlu0 %v738, 12
      %v1245 = vpop.permute.xlu0 %1244
      %1246 = vrot.lane.b32.xlu0 %v739, 12
      %v1247 = vpop.permute.xlu0 %1246
      %1248 = vrot.lane.b32.xlu0 %v740, 12
      %v1249 = vpop.permute.xlu0 %1248
      %1250 = vrot.lane.b32.xlu0 %v741, 12
      %v1251 = vpop.permute.xlu0 %1250
      %1252 = vrot.lane.b32.xlu0 %v742, 12
      %v1253 = vpop.permute.xlu0 %1252
      %1254 = vrot.lane.b32.xlu0 %v743, 12
      %v1255 = vpop.permute.xlu0 %1254
      %1256 = vrot.lane.b32.xlu0 %v744, 12
      %v1257 = vpop.permute.xlu0 %1256
      %1322 = vrot.lane.b32.xlu0 %v745, 16
      %v1323 = vpop.permute.xlu0 %1322
      %1324 = vrot.lane.b32.xlu0 %v746, 16
      %v1325 = vpop.permute.xlu0 %1324
      %1326 = vrot.lane.b32.xlu0 %v747, 16
      %v1327 = vpop.permute.xlu0 %1326
      %1328 = vrot.lane.b32.xlu0 %v748, 16
      %v1329 = vpop.permute.xlu0 %1328
      %1330 = vrot.lane.b32.xlu0 %v749, 16
      %v1331 = vpop.permute.xlu0 %1330
      %1332 = vrot.lane.b32.xlu0 %v750, 16
      %v1333 = vpop.permute.xlu0 %1332
      %1334 = vrot.lane.b32.xlu0 %v751, 16
      %v1335 = vpop.permute.xlu0 %1334
      %1336 = vrot.lane.b32.xlu0 %v752, 16
      %v1337 = vpop.permute.xlu0 %1336
      %1338 = vrot.lane.b32.xlu0 %v753, 16
      %v1339 = vpop.permute.xlu0 %1338
      %1340 = vrot.lane.b32.xlu0 %v754, 16
      %v1341 = vpop.permute.xlu0 %1340
      %1342 = vrot.lane.b32.xlu0 %v755, 16
      %v1343 = vpop.permute.xlu0 %1342
      %1344 = vrot.lane.b32.xlu0 %v756, 16
      %v1345 = vpop.permute.xlu0 %1344
      %1346 = vrot.lane.b32.xlu0 %v757, 16
      %v1347 = vpop.permute.xlu0 %1346
      %1348 = vrot.lane.b32.xlu0 %v758, 16
      %v1349 = vpop.permute.xlu0 %1348
      %1350 = vrot.lane.b32.xlu0 %v759, 16
      %v1351 = vpop.permute.xlu0 %1350
      %1352 = vrot.lane.b32.xlu0 %v760, 16
      %v1353 = vpop.permute.xlu0 %1352
      %1354 = vrot.lane.b32.xlu0 %v761, 16
      %v1355 = vpop.permute.xlu0 %1354
      %1356 = vrot.lane.b32.xlu0 %v762, 16
      %v1357 = vpop.permute.xlu0 %1356
      %1358 = vrot.lane.b32.xlu0 %v763, 16
      %v1359 = vpop.permute.xlu0 %1358
      %1360 = vrot.lane.b32.xlu0 %v764, 16
      %v1361 = vpop.permute.xlu0 %1360
      %1362 = vrot.lane.b32.xlu0 %v765, 16
      %v1363 = vpop.permute.xlu0 %1362
      %1364 = vrot.lane.b32.xlu0 %v766, 16
      %v1365 = vpop.permute.xlu0 %1364
      %1366 = vrot.lane.b32.xlu0 %v767, 16
      %v1367 = vpop.permute.xlu0 %1366
      %1368 = vrot.lane.b32.xlu0 %v768, 16
      %v1369 = vpop.permute.xlu0 %1368
      %1370 = vrot.lane.b32.xlu0 %v769, 16
      %v1371 = vpop.permute.xlu0 %1370
      %1372 = vrot.lane.b32.xlu0 %v770, 16
      %v1373 = vpop.permute.xlu0 %1372
      %1374 = vrot.lane.b32.xlu0 %v771, 16
      %v1375 = vpop.permute.xlu0 %1374
      %1376 = vrot.lane.b32.xlu0 %v772, 16
      %v1377 = vpop.permute.xlu0 %1376
      %1378 = vrot.lane.b32.xlu0 %v773, 16
      %v1379 = vpop.permute.xlu0 %1378
      %1380 = vrot.lane.b32.xlu0 %v774, 16
      %v1381 = vpop.permute.xlu0 %1380
      %1382 = vrot.lane.b32.xlu0 %v775, 16
      %v1383 = vpop.permute.xlu0 %1382
      %1384 = vrot.lane.b32.xlu0 %v776, 16
      %v1385 = vpop.permute.xlu0 %1384
      %1450 = vrot.lane.b32.xlu0 %v777, 20
      %v1451 = vpop.permute.xlu0 %1450
      %1452 = vrot.lane.b32.xlu0 %v778, 20
      %v1453 = vpop.permute.xlu0 %1452
      %1454 = vrot.lane.b32.xlu0 %v779, 20
      %v1455 = vpop.permute.xlu0 %1454
      %1456 = vrot.lane.b32.xlu0 %v780, 20
      %v1457 = vpop.permute.xlu0 %1456
      %1458 = vrot.lane.b32.xlu0 %v781, 20
      %v1459 = vpop.permute.xlu0 %1458
      %1460 = vrot.lane.b32.xlu0 %v782, 20
      %v1461 = vpop.permute.xlu0 %1460
      %1462 = vrot.lane.b32.xlu0 %v783, 20
      %v1463 = vpop.permute.xlu0 %1462
      %1464 = vrot.lane.b32.xlu0 %v784, 20
      %v1465 = vpop.permute.xlu0 %1464
      %1466 = vrot.lane.b32.xlu0 %v785, 20
      %v1467 = vpop.permute.xlu0 %1466
      %1468 = vrot.lane.b32.xlu0 %v786, 20
      %v1469 = vpop.permute.xlu0 %1468
      %1470 = vrot.lane.b32.xlu0 %v787, 20
      %v1471 = vpop.permute.xlu0 %1470
      %1472 = vrot.lane.b32.xlu0 %v788, 20
      %v1473 = vpop.permute.xlu0 %1472
      %1474 = vrot.lane.b32.xlu0 %v789, 20
      %v1475 = vpop.permute.xlu0 %1474
      %1476 = vrot.lane.b32.xlu0 %v790, 20
      %v1477 = vpop.permute.xlu0 %1476
      %1478 = vrot.lane.b32.xlu0 %v791, 20
      %v1479 = vpop.permute.xlu0 %1478
      %1480 = vrot.lane.b32.xlu0 %v792, 20
      %v1481 = vpop.permute.xlu0 %1480
      %1482 = vrot.lane.b32.xlu0 %v793, 20
      %v1483 = vpop.permute.xlu0 %1482
      %1484 = vrot.lane.b32.xlu0 %v794, 20
      %v1485 = vpop.permute.xlu0 %1484
      %1486 = vrot.lane.b32.xlu0 %v795, 20
      %v1487 = vpop.permute.xlu0 %1486
      %1488 = vrot.lane.b32.xlu0 %v796, 20
      %v1489 = vpop.permute.xlu0 %1488
      %1490 = vrot.lane.b32.xlu0 %v797, 20
      %v1491 = vpop.permute.xlu0 %1490
      %1492 = vrot.lane.b32.xlu0 %v798, 20
      %v1493 = vpop.permute.xlu0 %1492
      %1494 = vrot.lane.b32.xlu0 %v799, 20
      %v1495 = vpop.permute.xlu0 %1494
      %1496 = vrot.lane.b32.xlu0 %v800, 20
      %v1497 = vpop.permute.xlu0 %1496
      %1498 = vrot.lane.b32.xlu0 %v801, 20
      %v1499 = vpop.permute.xlu0 %1498
      %1500 = vrot.lane.b32.xlu0 %v802, 20
      %v1501 = vpop.permute.xlu0 %1500
      %1502 = vrot.lane.b32.xlu0 %v803, 20
      %v1503 = vpop.permute.xlu0 %1502
      %1504 = vrot.lane.b32.xlu0 %v804, 20
      %v1505 = vpop.permute.xlu0 %1504
      %1506 = vrot.lane.b32.xlu0 %v805, 20
      %v1507 = vpop.permute.xlu0 %1506
      %1508 = vrot.lane.b32.xlu0 %v806, 20
      %v1509 = vpop.permute.xlu0 %1508
      %1510 = vrot.lane.b32.xlu0 %v807, 20
      %v1511 = vpop.permute.xlu0 %1510
      %1512 = vrot.lane.b32.xlu0 %v808, 20
      %v1513 = vpop.permute.xlu0 %1512
      %1578 = vrot.lane.b32.xlu0 %v810, 24
      %v1579 = vpop.permute.xlu0 %1578
      %1580 = vrot.lane.b32.xlu0 %v811, 24
      %v1581 = vpop.permute.xlu0 %1580
      %1582 = vrot.lane.b32.xlu0 %v812, 24
      %v1583 = vpop.permute.xlu0 %1582
      %1584 = vrot.lane.b32.xlu0 %v813, 24
      %v1585 = vpop.permute.xlu0 %1584
      %1586 = vrot.lane.b32.xlu0 %v814, 24
      %v1587 = vpop.permute.xlu0 %1586
      %1588 = vrot.lane.b32.xlu0 %v815, 24
      %v1589 = vpop.permute.xlu0 %1588
      %1590 = vrot.lane.b32.xlu0 %v816, 24
      %v1591 = vpop.permute.xlu0 %1590
      %1592 = vrot.lane.b32.xlu0 %v817, 24
      %v1593 = vpop.permute.xlu0 %1592
      %1594 = vrot.lane.b32.xlu0 %v818, 24
      %v1595 = vpop.permute.xlu0 %1594
      %1596 = vrot.lane.b32.xlu0 %v819, 24
      %v1597 = vpop.permute.xlu0 %1596
      %1598 = vrot.lane.b32.xlu0 %v820, 24
      %v1599 = vpop.permute.xlu0 %1598
      %1600 = vrot.lane.b32.xlu0 %v821, 24
      %v1601 = vpop.permute.xlu0 %1600
      %1602 = vrot.lane.b32.xlu0 %v822, 24
      %v1603 = vpop.permute.xlu0 %1602
      %1604 = vrot.lane.b32.xlu0 %v823, 24
      %v1605 = vpop.permute.xlu0 %1604
      %1606 = vrot.lane.b32.xlu0 %v824, 24
      %v1607 = vpop.permute.xlu0 %1606
      %1608 = vrot.lane.b32.xlu0 %v825, 24
      %v1609 = vpop.permute.xlu0 %1608
      %1610 = vrot.lane.b32.xlu0 %v826, 24
      %v1611 = vpop.permute.xlu0 %1610
      %1612 = vrot.lane.b32.xlu0 %v827, 24
      %v1613 = vpop.permute.xlu0 %1612
      %1614 = vrot.lane.b32.xlu0 %v828, 24
      %v1615 = vpop.permute.xlu0 %1614
      %1616 = vrot.lane.b32.xlu0 %v829, 24
      %v1617 = vpop.permute.xlu0 %1616
      %1618 = vrot.lane.b32.xlu0 %v830, 24
      %v1619 = vpop.permute.xlu0 %1618
      %1620 = vrot.lane.b32.xlu0 %v831, 24
      %v1621 = vpop.permute.xlu0 %1620
      %1622 = vrot.lane.b32.xlu0 %v832, 24
      %v1623 = vpop.permute.xlu0 %1622
      %1624 = vrot.lane.b32.xlu0 %v833, 24
      %v1625 = vpop.permute.xlu0 %1624
      %1626 = vrot.lane.b32.xlu0 %v834, 24
      %v1627 = vpop.permute.xlu0 %1626
      %1628 = vrot.lane.b32.xlu0 %v835, 24
      %v1629 = vpop.permute.xlu0 %1628
      %1630 = vrot.lane.b32.xlu0 %v836, 24
      %v1631 = vpop.permute.xlu0 %1630
      %1632 = vrot.lane.b32.xlu0 %v837, 24
      %v1633 = vpop.permute.xlu0 %1632
      %1634 = vrot.lane.b32.xlu0 %v838, 24
      %v1635 = vpop.permute.xlu0 %1634
      %1636 = vrot.lane.b32.xlu0 %v839, 24
      %v1637 = vpop.permute.xlu0 %1636
      %1638 = vrot.lane.b32.xlu0 %v840, 24
      %v1639 = vpop.permute.xlu0 %1638
      %1640 = vrot.lane.b32.xlu0 %v841, 24
      %v1641 = vpop.permute.xlu0 %1640
      %1706 = vrot.lane.b32.xlu0 %v842, 28
      %v1707 = vpop.permute.xlu0 %1706
      %1708 = vrot.lane.b32.xlu0 %v843, 28
      %v1709 = vpop.permute.xlu0 %1708
      %1710 = vrot.lane.b32.xlu0 %v844, 28
      %v1711 = vpop.permute.xlu0 %1710
      %1712 = vrot.lane.b32.xlu0 %v845, 28
      %v1713 = vpop.permute.xlu0 %1712
      %1714 = vrot.lane.b32.xlu0 %v846, 28
      %v1715 = vpop.permute.xlu0 %1714
      %1716 = vrot.lane.b32.xlu0 %v847, 28
      %v1717 = vpop.permute.xlu0 %1716
      %1718 = vrot.lane.b32.xlu0 %v848, 28
      %v1719 = vpop.permute.xlu0 %1718
      %1720 = vrot.lane.b32.xlu0 %v849, 28
      %v1721 = vpop.permute.xlu0 %1720
      %1722 = vrot.lane.b32.xlu0 %v850, 28
      %v1723 = vpop.permute.xlu0 %1722
      %1724 = vrot.lane.b32.xlu0 %v851, 28
      %v1725 = vpop.permute.xlu0 %1724
      %1726 = vrot.lane.b32.xlu0 %v852, 28
      %v1727 = vpop.permute.xlu0 %1726
      %1728 = vrot.lane.b32.xlu0 %v853, 28
      %v1729 = vpop.permute.xlu0 %1728
      %1730 = vrot.lane.b32.xlu0 %v854, 28
      %v1731 = vpop.permute.xlu0 %1730
      %1732 = vrot.lane.b32.xlu0 %v855, 28
      %v1733 = vpop.permute.xlu0 %1732
      %1734 = vrot.lane.b32.xlu0 %v856, 28
      %v1735 = vpop.permute.xlu0 %1734
      %1736 = vrot.lane.b32.xlu0 %v857, 28
      %v1737 = vpop.permute.xlu0 %1736
      %1738 = vrot.lane.b32.xlu0 %v858, 28
      %v1739 = vpop.permute.xlu0 %1738
      %1740 = vrot.lane.b32.xlu0 %v859, 28
      %v1741 = vpop.permute.xlu0 %1740
      %1742 = vrot.lane.b32.xlu0 %v860, 28
      %v1743 = vpop.permute.xlu0 %1742
      %1744 = vrot.lane.b32.xlu0 %v861, 28
      %v1745 = vpop.permute.xlu0 %1744
      %1746 = vrot.lane.b32.xlu0 %v862, 28
      %v1747 = vpop.permute.xlu0 %1746
      %1748 = vrot.lane.b32.xlu0 %v863, 28
      %v1749 = vpop.permute.xlu0 %1748
      %1750 = vrot.lane.b32.xlu0 %v864, 28
      %v1751 = vpop.permute.xlu0 %1750
      %1752 = vrot.lane.b32.xlu0 %v865, 28
      %v1753 = vpop.permute.xlu0 %1752
      %1754 = vrot.lane.b32.xlu0 %v866, 28
      %v1755 = vpop.permute.xlu0 %1754
      %1756 = vrot.lane.b32.xlu0 %v867, 28
      %v1757 = vpop.permute.xlu0 %1756
      %1758 = vrot.lane.b32.xlu0 %v868, 28
      %v1759 = vpop.permute.xlu0 %1758
      %1760 = vrot.lane.b32.xlu0 %v869, 28
      %v1761 = vpop.permute.xlu0 %1760
      %1762 = vrot.lane.b32.xlu0 %v870, 28
      %v1763 = vpop.permute.xlu0 %1762
      %1764 = vrot.lane.b32.xlu0 %v871, 28
      %v1765 = vpop.permute.xlu0 %1764
      %1766 = vrot.lane.b32.xlu0 %v872, 28
      %v1767 = vpop.permute.xlu0 %1766
      %1768 = vrot.lane.b32.xlu0 %v873, 28
      %v1769 = vpop.permute.xlu0 %1768
      %1834 = vrot.lane.b32.xlu0 %v874, 32
      %v1835 = vpop.permute.xlu0 %1834
      %1836 = vrot.lane.b32.xlu0 %v875, 32
      %v1837 = vpop.permute.xlu0 %1836
      %1838 = vrot.lane.b32.xlu0 %v876, 32
      %v1839 = vpop.permute.xlu0 %1838
      %1840 = vrot.lane.b32.xlu0 %v877, 32
      %v1841 = vpop.permute.xlu0 %1840
      %1842 = vrot.lane.b32.xlu0 %v878, 32
      %v1843 = vpop.permute.xlu0 %1842
      %1844 = vrot.lane.b32.xlu0 %v879, 32
      %v1845 = vpop.permute.xlu0 %1844
      %1846 = vrot.lane.b32.xlu0 %v880, 32
      %v1847 = vpop.permute.xlu0 %1846
      %1848 = vrot.lane.b32.xlu0 %v881, 32
      %v1849 = vpop.permute.xlu0 %1848
      %1850 = vrot.lane.b32.xlu0 %v882, 32
      %v1851 = vpop.permute.xlu0 %1850
      %1852 = vrot.lane.b32.xlu0 %v883, 32
      %v1853 = vpop.permute.xlu0 %1852
      %1854 = vrot.lane.b32.xlu0 %v884, 32
      %v1855 = vpop.permute.xlu0 %1854
      %1856 = vrot.lane.b32.xlu0 %v885, 32
      %v1857 = vpop.permute.xlu0 %1856
      %1858 = vrot.lane.b32.xlu0 %v886, 32
      %v1859 = vpop.permute.xlu0 %1858
      %1860 = vrot.lane.b32.xlu0 %v887, 32
      %v1861 = vpop.permute.xlu0 %1860
      %1862 = vrot.lane.b32.xlu0 %v888, 32
      %v1863 = vpop.permute.xlu0 %1862
      %1864 = vrot.lane.b32.xlu0 %v889, 32
      %v1865 = vpop.permute.xlu0 %1864
      %1866 = vrot.lane.b32.xlu0 %v890, 32
      %v1867 = vpop.permute.xlu0 %1866
      %1868 = vrot.lane.b32.xlu0 %v891, 32
      %v1869 = vpop.permute.xlu0 %1868
      %1870 = vrot.lane.b32.xlu0 %v892, 32
      %v1871 = vpop.permute.xlu0 %1870
      %1872 = vrot.lane.b32.xlu0 %v893, 32
      %v1873 = vpop.permute.xlu0 %1872
      %1874 = vrot.lane.b32.xlu0 %v894, 32
      %v1875 = vpop.permute.xlu0 %1874
      %1876 = vrot.lane.b32.xlu0 %v895, 32
      %v1877 = vpop.permute.xlu0 %1876
      %1878 = vrot.lane.b32.xlu0 %v896, 32
      %v1879 = vpop.permute.xlu0 %1878
      %1880 = vrot.lane.b32.xlu0 %v897, 32
      %v1881 = vpop.permute.xlu0 %1880
      %1882 = vrot.lane.b32.xlu0 %v898, 32
      %v1883 = vpop.permute.xlu0 %1882
      %1884 = vrot.lane.b32.xlu0 %v899, 32
      %v1885 = vpop.permute.xlu0 %1884
      %1886 = vrot.lane.b32.xlu0 %v900, 32
      %v1887 = vpop.permute.xlu0 %1886
      %1888 = vrot.lane.b32.xlu0 %v901, 32
      %v1889 = vpop.permute.xlu0 %1888
      %1890 = vrot.lane.b32.xlu0 %v902, 32
      %v1891 = vpop.permute.xlu0 %1890
      %1892 = vrot.lane.b32.xlu0 %v903, 32
      %v1893 = vpop.permute.xlu0 %1892
      %1894 = vrot.lane.b32.xlu0 %v904, 32
      %v1895 = vpop.permute.xlu0 %1894
      %1896 = vrot.lane.b32.xlu0 %v905, 32
      %v1897 = vpop.permute.xlu0 %1896
      %v1930 = vsel %vm550, %v617, %v939
      %v1931 = vsel %vm550, %v618, %v941
      %v1932 = vsel %vm550, %v619, %v943
      %v1933 = vsel %vm550, %v620, %v945
      %v1934 = vsel %vm550, %v621, %v947
      %v1935 = vsel %vm550, %v622, %v949
      %v1936 = vsel %vm550, %v623, %v951
      %v1937 = vsel %vm550, %v624, %v953
      %v1938 = vsel %vm550, %v625, %v955
      %v1939 = vsel %vm550, %v626, %v957
      %v1940 = vsel %vm550, %v627, %v959
      %v1941 = vsel %vm550, %v628, %v961
      %v1942 = vsel %vm550, %v629, %v963
      %v1943 = vsel %vm550, %v630, %v965
      %v1944 = vsel %vm550, %v631, %v967
      %v1945 = vsel %vm550, %v632, %v969
      %v1946 = vsel %vm550, %v633, %v971
      %v1947 = vsel %vm550, %v634, %v973
      %v1948 = vsel %vm550, %v635, %v975
      %v1949 = vsel %vm550, %v636, %v977
      %v1950 = vsel %vm550, %v637, %v979
      %v1951 = vsel %vm550, %v638, %v981
      %v1952 = vsel %vm550, %v639, %v983
      %v1953 = vsel %vm550, %v640, %v985
      %v1954 = vsel %vm550, %v641, %v987
      %v1955 = vsel %vm550, %v642, %v989
      %v1956 = vsel %vm550, %v643, %v991
      %v1957 = vsel %vm550, %v644, %v993
      %v1958 = vsel %vm550, %v645, %v995
      %v1959 = vsel %vm550, %v646, %v997
      %v1960 = vsel %vm550, %v647, %v999
      %v1961 = vsel %vm550, %v648, %v1001
      %v1962 = vsel %vm608, %v1930, %v1067
      %v1963 = vsel %vm608, %v1931, %v1069
      %v1964 = vsel %vm608, %v1932, %v1071
      %v1965 = vsel %vm608, %v1933, %v1073
      %v1966 = vsel %vm608, %v1934, %v1075
      %v1967 = vsel %vm608, %v1935, %v1077
      %v1968 = vsel %vm608, %v1936, %v1079
      %v1969 = vsel %vm608, %v1937, %v1081
      %v1970 = vsel %vm608, %v1938, %v1083
      %v1971 = vsel %vm608, %v1939, %v1085
      %v1972 = vsel %vm608, %v1940, %v1087
      %v1973 = vsel %vm608, %v1941, %v1089
      %v1974 = vsel %vm608, %v1942, %v1091
      %v1975 = vsel %vm608, %v1943, %v1093
      %v1976 = vsel %vm608, %v1944, %v1095
      %v1977 = vsel %vm608, %v1945, %v1097
      %v1978 = vsel %vm608, %v1946, %v1099
      %v1979 = vsel %vm608, %v1947, %v1101
      %v1980 = vsel %vm608, %v1948, %v1103
      %v1981 = vsel %vm608, %v1949, %v1105
      %v1982 = vsel %vm608, %v1950, %v1107
      %v1983 = vsel %vm608, %v1951, %v1109
      %v1984 = vsel %vm608, %v1952, %v1111
      %v1985 = vsel %vm608, %v1953, %v1113
      %v1986 = vsel %vm608, %v1954, %v1115
      %v1987 = vsel %vm608, %v1955, %v1117
      %v1988 = vsel %vm608, %v1956, %v1119
      %v1989 = vsel %vm608, %v1957, %v1121
      %v1990 = vsel %vm608, %v1958, %v1123
      %v1991 = vsel %vm608, %v1959, %v1125
      %v1992 = vsel %vm608, %v1960, %v1127
      %v1993 = vsel %vm608, %v1961, %v1129
      %vm1994 = vcmask 97280
      %v1995 = vsel %vm1994, %v1962, %v1195
      %v1996 = vsel %vm1994, %v1963, %v1197
      %v1997 = vsel %vm1994, %v1964, %v1199
      %v1998 = vsel %vm1994, %v1965, %v1201
      %v1999 = vsel %vm1994, %v1966, %v1203
      %v2000 = vsel %vm1994, %v1967, %v1205
      %v2001 = vsel %vm1994, %v1968, %v1207
      %v2002 = vsel %vm1994, %v1969, %v1209
      %v2003 = vsel %vm1994, %v1970, %v1211
      %v2004 = vsel %vm1994, %v1971, %v1213
      %v2005 = vsel %vm1994, %v1972, %v1215
      %v2006 = vsel %vm1994, %v1973, %v1217
      %v2007 = vsel %vm1994, %v1974, %v1219
      %v2008 = vsel %vm1994, %v1975, %v1221
      %v2009 = vsel %vm1994, %v1976, %v1223
      %v2010 = vsel %vm1994, %v1977, %v1225
      %v2011 = vsel %vm1994, %v1978, %v1227
      %v2012 = vsel %vm1994, %v1979, %v1229
      %v2013 = vsel %vm1994, %v1980, %v1231
      %v2014 = vsel %vm1994, %v1981, %v1233
      %v2015 = vsel %vm1994, %v1982, %v1235
      %v2016 = vsel %vm1994, %v1983, %v1237
      %v2017 = vsel %vm1994, %v1984, %v1239
      %v2018 = vsel %vm1994, %v1985, %v1241
      %v2019 = vsel %vm1994, %v1986, %v1243
      %v2020 = vsel %vm1994, %v1987, %v1245
      %v2021 = vsel %vm1994, %v1988, %v1247
      %v2022 = vsel %vm1994, %v1989, %v1249
      %v2023 = vsel %vm1994, %v1990, %v1251
      %v2024 = vsel %vm1994, %v1991, %v1253
      %v2025 = vsel %vm1994, %v1992, %v1255
      %v2026 = vsel %vm1994, %v1993, %v1257
      %vm2027 = vcmask 130048
      %v2028 = vsel %vm2027, %v1995, %v1323
      %v2029 = vsel %vm2027, %v1996, %v1325
      %v2030 = vsel %vm2027, %v1997, %v1327
      %v2031 = vsel %vm2027, %v1998, %v1329
      %v2032 = vsel %vm2027, %v1999, %v1331
      %v2033 = vsel %vm2027, %v2000, %v1333
      %v2034 = vsel %vm2027, %v2001, %v1335
      %v2035 = vsel %vm2027, %v2002, %v1337
      %v2036 = vsel %vm2027, %v2003, %v1339
      %v2037 = vsel %vm2027, %v2004, %v1341
      %v2038 = vsel %vm2027, %v2005, %v1343
      %v2039 = vsel %vm2027, %v2006, %v1345
      %v2040 = vsel %vm2027, %v2007, %v1347
      %v2041 = vsel %vm2027, %v2008, %v1349
      %v2042 = vsel %vm2027, %v2009, %v1351
      %v2043 = vsel %vm2027, %v2010, %v1353
      %v2044 = vsel %vm2027, %v2011, %v1355
      %v2045 = vsel %vm2027, %v2012, %v1357
      %v2046 = vsel %vm2027, %v2013, %v1359
      %v2047 = vsel %vm2027, %v2014, %v1361
      %v2048 = vsel %vm2027, %v2015, %v1363
      %v2049 = vsel %vm2027, %v2016, %v1365
      %v2050 = vsel %vm2027, %v2017, %v1367
      %v2051 = vsel %vm2027, %v2018, %v1369
      %v2052 = vsel %vm2027, %v2019, %v1371
      %v2053 = vsel %vm2027, %v2020, %v1373
      %v2054 = vsel %vm2027, %v2021, %v1375
      %v2055 = vsel %vm2027, %v2022, %v1377
      %v2056 = vsel %vm2027, %v2023, %v1379
      %v2057 = vsel %vm2027, %v2024, %v1381
      %v2058 = vsel %vm2027, %v2025, %v1383
      %v2059 = vsel %vm2027, %v2026, %v1385
      %vm2060 = vcmask 162816
      %v2061 = vsel %vm2060, %v2028, %v1451
      %v2062 = vsel %vm2060, %v2029, %v1453
      %v2063 = vsel %vm2060, %v2030, %v1455
      %v2064 = vsel %vm2060, %v2031, %v1457
      %v2065 = vsel %vm2060, %v2032, %v1459
      %v2066 = vsel %vm2060, %v2033, %v1461
      %v2067 = vsel %vm2060, %v2034, %v1463
      %v2068 = vsel %vm2060, %v2035, %v1465
      %v2069 = vsel %vm2060, %v2036, %v1467
      %v2070 = vsel %vm2060, %v2037, %v1469
      %v2071 = vsel %vm2060, %v2038, %v1471
      %v2072 = vsel %vm2060, %v2039, %v1473
      %v2073 = vsel %vm2060, %v2040, %v1475
      %v2074 = vsel %vm2060, %v2041, %v1477
      %v2075 = vsel %vm2060, %v2042, %v1479
      %v2076 = vsel %vm2060, %v2043, %v1481
      %v2077 = vsel %vm2060, %v2044, %v1483
      %v2078 = vsel %vm2060, %v2045, %v1485
      %v2079 = vsel %vm2060, %v2046, %v1487
      %v2080 = vsel %vm2060, %v2047, %v1489
      %v2081 = vsel %vm2060, %v2048, %v1491
      %v2082 = vsel %vm2060, %v2049, %v1493
      %v2083 = vsel %vm2060, %v2050, %v1495
      %v2084 = vsel %vm2060, %v2051, %v1497
      %v2085 = vsel %vm2060, %v2052, %v1499
      %v2086 = vsel %vm2060, %v2053, %v1501
      %v2087 = vsel %vm2060, %v2054, %v1503
      %v2088 = vsel %vm2060, %v2055, %v1505
      %v2089 = vsel %vm2060, %v2056, %v1507
      %v2090 = vsel %vm2060, %v2057, %v1509
      %v2091 = vsel %vm2060, %v2058, %v1511
      %v2092 = vsel %vm2060, %v2059, %v1513
      %vm2093 = vcmask 195584
      %v2094 = vsel %vm2093, %v2061, %v1579
      %v2095 = vsel %vm2093, %v2062, %v1581
      %v2096 = vsel %vm2093, %v2063, %v1583
      %v2097 = vsel %vm2093, %v2064, %v1585
      %v2098 = vsel %vm2093, %v2065, %v1587
      %v2099 = vsel %vm2093, %v2066, %v1589
      %v2100 = vsel %vm2093, %v2067, %v1591
      %v2101 = vsel %vm2093, %v2068, %v1593
      %v2102 = vsel %vm2093, %v2069, %v1595
      %v2103 = vsel %vm2093, %v2070, %v1597
      %v2104 = vsel %vm2093, %v2071, %v1599
      %v2105 = vsel %vm2093, %v2072, %v1601
      %v2106 = vsel %vm2093, %v2073, %v1603
      %v2107 = vsel %vm2093, %v2074, %v1605
      %v2108 = vsel %vm2093, %v2075, %v1607
      %v2109 = vsel %vm2093, %v2076, %v1609
      %v2110 = vsel %vm2093, %v2077, %v1611
      %v2111 = vsel %vm2093, %v2078, %v1613
      %v2112 = vsel %vm2093, %v2079, %v1615
      %v2113 = vsel %vm2093, %v2080, %v1617
      %v2114 = vsel %vm2093, %v2081, %v1619
      %v2115 = vsel %vm2093, %v2082, %v1621
      %v2116 = vsel %vm2093, %v2083, %v1623
      %v2117 = vsel %vm2093, %v2084, %v1625
      %v2118 = vsel %vm2093, %v2085, %v1627
      %v2119 = vsel %vm2093, %v2086, %v1629
      %v2120 = vsel %vm2093, %v2087, %v1631
      %v2121 = vsel %vm2093, %v2088, %v1633
      %v2122 = vsel %vm2093, %v2089, %v1635
      %v2123 = vsel %vm2093, %v2090, %v1637
      %v2124 = vsel %vm2093, %v2091, %v1639
      %v2125 = vsel %vm2093, %v2092, %v1641
      %vm2126 = vcmask 228352
      %v2127 = vsel %vm2126, %v2094, %v1707
      %v2128 = vsel %vm2126, %v2095, %v1709
      %v2129 = vsel %vm2126, %v2096, %v1711
      %v2130 = vsel %vm2126, %v2097, %v1713
      %v2131 = vsel %vm2126, %v2098, %v1715
      %v2132 = vsel %vm2126, %v2099, %v1717
      %v2133 = vsel %vm2126, %v2100, %v1719
      %v2134 = vsel %vm2126, %v2101, %v1721
      %v2135 = vsel %vm2126, %v2102, %v1723
      %v2136 = vsel %vm2126, %v2103, %v1725
      %v2137 = vsel %vm2126, %v2104, %v1727
      %v2138 = vsel %vm2126, %v2105, %v1729
      %v2139 = vsel %vm2126, %v2106, %v1731
      %v2140 = vsel %vm2126, %v2107, %v1733
      %v2141 = vsel %vm2126, %v2108, %v1735
      %v2142 = vsel %vm2126, %v2109, %v1737
      %v2143 = vsel %vm2126, %v2110, %v1739
      %v2144 = vsel %vm2126, %v2111, %v1741
      %v2145 = vsel %vm2126, %v2112, %v1743
      %v2146 = vsel %vm2126, %v2113, %v1745
      %v2147 = vsel %vm2126, %v2114, %v1747
      %v2148 = vsel %vm2126, %v2115, %v1749
      %v2149 = vsel %vm2126, %v2116, %v1751
      %v2150 = vsel %vm2126, %v2117, %v1753
      %v2151 = vsel %vm2126, %v2118, %v1755
      %v2152 = vsel %vm2126, %v2119, %v1757
      %v2153 = vsel %vm2126, %v2120, %v1759
      %v2154 = vsel %vm2126, %v2121, %v1761
      %v2155 = vsel %vm2126, %v2122, %v1763
      %v2156 = vsel %vm2126, %v2123, %v1765
      %v2157 = vsel %vm2126, %v2124, %v1767
      %v2158 = vsel %vm2126, %v2125, %v1769
      %vm2159 = vcmask 261120
      %v2160 = vsel %vm2159, %v2127, %v1835
      %v2161 = vsel %vm2159, %v2128, %v1837
      %v2162 = vsel %vm2159, %v2129, %v1839
      %v2163 = vsel %vm2159, %v2130, %v1841
      %v2164 = vsel %vm2159, %v2131, %v1843
      %v2165 = vsel %vm2159, %v2132, %v1845
      %v2166 = vsel %vm2159, %v2133, %v1847
      %v2167 = vsel %vm2159, %v2134, %v1849
      %v2168 = vsel %vm2159, %v2135, %v1851
      %v2169 = vsel %vm2159, %v2136, %v1853
      %v2170 = vsel %vm2159, %v2137, %v1855
      %v2171 = vsel %vm2159, %v2138, %v1857
      %v2172 = vsel %vm2159, %v2139, %v1859
      %v2173 = vsel %vm2159, %v2140, %v1861
      %v2174 = vsel %vm2159, %v2141, %v1863
      %v2175 = vsel %vm2159, %v2142, %v1865
      %v2176 = vsel %vm2159, %v2143, %v1867
      %v2177 = vsel %vm2159, %v2144, %v1869
      %v2178 = vsel %vm2159, %v2145, %v1871
      %v2179 = vsel %vm2159, %v2146, %v1873
      %v2180 = vsel %vm2159, %v2147, %v1875
      %v2181 = vsel %vm2159, %v2148, %v1877
      %v2182 = vsel %vm2159, %v2149, %v1879
      %v2183 = vsel %vm2159, %v2150, %v1881
      %v2184 = vsel %vm2159, %v2151, %v1883
      %v2185 = vsel %vm2159, %v2152, %v1885
      %v2186 = vsel %vm2159, %v2153, %v1887
      %v2187 = vsel %vm2159, %v2154, %v1889
      %v2188 = vsel %vm2159, %v2155, %v1891
      %v2189 = vsel %vm2159, %v2156, %v1893
      %v2190 = vsel %vm2159, %v2157, %v1895
      %v2191 = vsel %vm2159, %v2158, %v1897
      %v2192 = vld [vmem:[%s1] sm:$0xff]
      %v2193 = vld [vmem:[%s1 + $0x8] sm:$0xff]
      %v2194 = vld [vmem:[%s1 + $0x10] sm:$0xff]
      %v2195 = vld [vmem:[%s1 + $0x18] sm:$0xff]
      %v2196 = vld [vmem:[%s1 + $0x20] sm:$0xf]
      %v2197 = vld [vmem:[%s5] sm:$0x1]
      %v2199 = vlaneseq
      %v2200 = vshrl.u32 %v2199, 7
      %v2201 = vsub.s32 0, %v2200
      %v2202 = vrot.slane %v2197, %v2201
      %vm2204 = vcmask 293888
      %v2206 = vsel %vm2204, %v2160, 0
      %v2209 = vsel %vm2204, %v2161, 0
      %v2212 = vsel %vm2204, %v2162, 0
      %v2215 = vsel %vm2204, %v2163, 0
      %v2218 = vsel %vm2204, %v2164, 0
      %v2221 = vsel %vm2204, %v2165, 0
      %v2224 = vsel %vm2204, %v2166, 0
      %v2227 = vsel %vm2204, %v2167, 0
      %v2230 = vsel %vm2204, %v2168, 0
      %v2233 = vsel %vm2204, %v2169, 0
      %v2236 = vsel %vm2204, %v2170, 0
      %v2239 = vsel %vm2204, %v2171, 0
      %v2242 = vsel %vm2204, %v2172, 0
      %v2245 = vsel %vm2204, %v2173, 0
      %v2248 = vsel %vm2204, %v2174, 0
      %v2251 = vsel %vm2204, %v2175, 0
      %v2254 = vsel %vm2204, %v2176, 0
      %v2257 = vsel %vm2204, %v2177, 0
      %v2260 = vsel %vm2204, %v2178, 0
      %v2263 = vsel %vm2204, %v2179, 0
      %v2266 = vsel %vm2204, %v2180, 0
      %v2269 = vsel %vm2204, %v2181, 0
      %v2272 = vsel %vm2204, %v2182, 0
      %v2275 = vsel %vm2204, %v2183, 0
      %v2278 = vsel %vm2204, %v2184, 0
      %v2281 = vsel %vm2204, %v2185, 0
      %v2284 = vsel %vm2204, %v2186, 0
      %v2287 = vsel %vm2204, %v2187, 0
      %v2290 = vsel %vm2204, %v2188, 0
      %v2293 = vsel %vm2204, %v2189, 0
      %v2296 = vsel %vm2204, %v2190, 0
      %v2299 = vsel %vm2204, %v2191, 0
      %vm2301 = vcmask 1043456
      %v2303 = vsel %vm2301, %v2196, 0
      %2305 = vmatprep.subr.mxu0 0.0
      %2306 = vmatpush1.msra.mxu0 0.0
      %2307 = vmatprep.subr.mxu0 0.0
      %2308 = vmatpush1.msra.mxu0 0.0
      %2309 = vmatprep.subr.mxu0 0.0
      %2310 = vmatpush1.msra.mxu0 0.0
      %2311 = vmatprep.subr.mxu0 0.0
      %2312 = vmatpush1.msra.mxu0 0.0
      %2313 = vmatprep.subr.mxu0 0.0
      %2314 = vmatpush1.msra.mxu0 0.0
      %2315 = vmatprep.subr.mxu0 0.0
      %2316 = vmatpush1.msra.mxu0 0.0
      %2317 = vmatprep.subr.mxu0 0.0
      %2318 = vmatpush1.msra.mxu0 0.0
      %2319 = vmatprep.subr.mxu0 0.0
      %2320 = vmatpush1.msra.mxu0 0.0
      %2321 = vmatprep.subr.mxu0 0.0
      %2322 = vmatpush1.msra.mxu0 0.0
      %2323 = vmatprep.subr.mxu0 0.0
      %2324 = vmatpush1.msra.mxu0 0.0
      %2325 = vmatprep.subr.mxu0 0.0
      %2326 = vmatpush1.msra.mxu0 0.0
      %2327 = vmatprep.subr.mxu0 0.0
      %2328 = vmatpush1.msra.mxu0 %v2303
      %2329 = vmatprep.subr.mxu0 0.0
      %2330 = vmatpush1.msra.mxu0 %v2195
      %2331 = vmatprep.subr.mxu0 0.0
      %2332 = vmatpush1.msra.mxu0 %v2194
      %2333 = vmatprep.subr.mxu0 0.0
      %2334 = vmatpush1.msra.mxu0 %v2193
      %2335 = vmatprep.subr.mxu0 0.0
      %2336 = vmatpush1.msra.mxu0 %v2192
      %2337 = vmatprep.subr.mxu0 0.0
      %2338 = vmatpush2.msra.mxu0 0.0
      %2339 = vmatprep.subr.mxu0 0.0
      %2340 = vmatpush2.msra.mxu0 0.0
      %2341 = vmatprep.subr.mxu0 0.0
      %2342 = vmatpush2.msra.mxu0 0.0
      %2343 = vmatprep.subr.mxu0 0.0
      %2344 = vmatpush2.msra.mxu0 0.0
      %2345 = vmatprep.subr.mxu0 0.0
      %2346 = vmatpush2.msra.mxu0 0.0
      %2347 = vmatprep.subr.mxu0 0.0
      %2348 = vmatpush2.msra.mxu0 0.0
      %2349 = vmatprep.subr.mxu0 0.0
      %2350 = vmatpush2.msra.mxu0 0.0
      %2351 = vmatprep.subr.mxu0 0.0
      %2352 = vmatpush2.msra.mxu0 0.0
      %2353 = vmatprep.subr.mxu0 0.0
      %2354 = vmatpush2.msra.mxu0 0.0
      %2355 = vmatprep.subr.mxu0 0.0
      %2356 = vmatpush2.msra.mxu0 0.0
      %2357 = vmatprep.subr.mxu0 0.0
      %2358 = vmatpush2.msra.mxu0 0.0
      %2359 = vmatprep.subr.mxu0 0.0
      %2360 = vmatpush2.msra.mxu0 0.0
      %2361 = vmatprep.subr.mxu0 0.0
      %2362 = vmatpush2.msra.mxu0 0.0
      %2363 = vmatprep.subr.mxu0 0.0
      %2364 = vmatpush2.msra.mxu0 0.0
      %2365 = vmatprep.subr.mxu0 0.0
      %2366 = vmatpush2.msra.mxu0 0.0
      %2367 = vmatprep.subr.mxu0 0.0
      %2368 = vmatpush2.msra.mxu0 0.0
      %2369 = vmatprep.mubr.f32.mxu0 0.0
      %2370 = vmatmul.mubr.f32.gmra.mxu0 %v2206
      %v2371 = vpop.f32.mrf.mxu0
      %v2372 = vadd.f32 %v2202, %v2371
      %v2373 = vpop.f32.mrf.mxu0
      %2374 = vmatprep.mubr.f32.mxu0 0.0
      %2375 = vmatmul.mubr.f32.gmra.mxu0 %v2209
      %v2376 = vpop.f32.mrf.mxu0
      %v2377 = vadd.f32 %v2202, %v2376
      %v2378 = vpop.f32.mrf.mxu0
      %2379 = vmatprep.mubr.f32.mxu0 0.0
      %2380 = vmatmul.mubr.f32.gmra.mxu0 %v2212
      %v2381 = vpop.f32.mrf.mxu0
      %v2382 = vadd.f32 %v2202, %v2381
      %v2383 = vpop.f32.mrf.mxu0
      %2384 = vmatprep.mubr.f32.mxu0 0.0
      %2385 = vmatmul.mubr.f32.gmra.mxu0 %v2215
      %v2386 = vpop.f32.mrf.mxu0
      %v2387 = vadd.f32 %v2202, %v2386
      %v2388 = vpop.f32.mrf.mxu0
      %2389 = vmatprep.mubr.f32.mxu0 0.0
      %2390 = vmatmul.mubr.f32.gmra.mxu0 %v2218
      %v2391 = vpop.f32.mrf.mxu0
      %v2392 = vadd.f32 %v2202, %v2391
      %v2393 = vpop.f32.mrf.mxu0
      %2394 = vmatprep.mubr.f32.mxu0 0.0
      %2395 = vmatmul.mubr.f32.gmra.mxu0 %v2221
      %v2396 = vpop.f32.mrf.mxu0
      %v2397 = vadd.f32 %v2202, %v2396
      %v2398 = vpop.f32.mrf.mxu0
      %2399 = vmatprep.mubr.f32.mxu0 0.0
      %2400 = vmatmul.mubr.f32.gmra.mxu0 %v2224
      %v2401 = vpop.f32.mrf.mxu0
      %v2402 = vadd.f32 %v2202, %v2401
      %v2403 = vpop.f32.mrf.mxu0
      %2404 = vmatprep.mubr.f32.mxu0 0.0
      %2405 = vmatmul.mubr.f32.gmra.mxu0 %v2227
      %v2406 = vpop.f32.mrf.mxu0
      %v2407 = vadd.f32 %v2202, %v2406
      %v2408 = vpop.f32.mrf.mxu0
      %2409 = vmatprep.mubr.f32.mxu0 0.0
      %2410 = vmatmul.mubr.f32.gmra.mxu0 %v2230
      %v2411 = vpop.f32.mrf.mxu0
      %v2412 = vadd.f32 %v2202, %v2411
      %v2413 = vpop.f32.mrf.mxu0
      %2414 = vmatprep.mubr.f32.mxu0 0.0
      %2415 = vmatmul.mubr.f32.gmra.mxu0 %v2233
      %v2416 = vpop.f32.mrf.mxu0
      %v2417 = vadd.f32 %v2202, %v2416
      %v2418 = vpop.f32.mrf.mxu0
      %2419 = vmatprep.mubr.f32.mxu0 0.0
      %2420 = vmatmul.mubr.f32.gmra.mxu0 %v2236
      %v2421 = vpop.f32.mrf.mxu0
      %v2422 = vadd.f32 %v2202, %v2421
      %v2423 = vpop.f32.mrf.mxu0
      %2424 = vmatprep.mubr.f32.mxu0 0.0
      %2425 = vmatmul.mubr.f32.gmra.mxu0 %v2239
      %v2426 = vpop.f32.mrf.mxu0
      %v2427 = vadd.f32 %v2202, %v2426
      %v2428 = vpop.f32.mrf.mxu0
      %2429 = vmatprep.mubr.f32.mxu0 0.0
      %2430 = vmatmul.mubr.f32.gmra.mxu0 %v2242
      %v2431 = vpop.f32.mrf.mxu0
      %v2432 = vadd.f32 %v2202, %v2431
      %v2433 = vpop.f32.mrf.mxu0
      %2434 = vmatprep.mubr.f32.mxu0 0.0
      %2435 = vmatmul.mubr.f32.gmra.mxu0 %v2245
      %v2436 = vpop.f32.mrf.mxu0
      %v2437 = vadd.f32 %v2202, %v2436
      %v2438 = vpop.f32.mrf.mxu0
      %2439 = vmatprep.mubr.f32.mxu0 0.0
      %2440 = vmatmul.mubr.f32.gmra.mxu0 %v2248
      %v2441 = vpop.f32.mrf.mxu0
      %v2442 = vadd.f32 %v2202, %v2441
      %v2443 = vpop.f32.mrf.mxu0
      %2444 = vmatprep.mubr.f32.mxu0 0.0
      %2445 = vmatmul.mubr.f32.gmra.mxu0 %v2251
      %v2446 = vpop.f32.mrf.mxu0
      %v2447 = vadd.f32 %v2202, %v2446
      %v2448 = vpop.f32.mrf.mxu0
      %2449 = vmatprep.mubr.f32.mxu0 0.0
      %2450 = vmatmul.mubr.f32.gmra.mxu0 %v2254
      %v2451 = vpop.f32.mrf.mxu0
      %v2452 = vadd.f32 %v2202, %v2451
      %v2453 = vpop.f32.mrf.mxu0
      %2454 = vmatprep.mubr.f32.mxu0 0.0
      %2455 = vmatmul.mubr.f32.gmra.mxu0 %v2257
      %v2456 = vpop.f32.mrf.mxu0
      %v2457 = vadd.f32 %v2202, %v2456
      %v2458 = vpop.f32.mrf.mxu0
      %2459 = vmatprep.mubr.f32.mxu0 0.0
      %2460 = vmatmul.mubr.f32.gmra.mxu0 %v2260
      %v2461 = vpop.f32.mrf.mxu0
      %v2462 = vadd.f32 %v2202, %v2461
      %v2463 = vpop.f32.mrf.mxu0
      %2464 = vmatprep.mubr.f32.mxu0 0.0
      %2465 = vmatmul.mubr.f32.gmra.mxu0 %v2263
      %v2466 = vpop.f32.mrf.mxu0
      %v2467 = vadd.f32 %v2202, %v2466
      %v2468 = vpop.f32.mrf.mxu0
      %2469 = vmatprep.mubr.f32.mxu0 0.0
      %2470 = vmatmul.mubr.f32.gmra.mxu0 %v2266
      %v2471 = vpop.f32.mrf.mxu0
      %v2472 = vadd.f32 %v2202, %v2471
      %v2473 = vpop.f32.mrf.mxu0
      %2474 = vmatprep.mubr.f32.mxu0 0.0
      %2475 = vmatmul.mubr.f32.gmra.mxu0 %v2269
      %v2476 = vpop.f32.mrf.mxu0
      %v2477 = vadd.f32 %v2202, %v2476
      %v2478 = vpop.f32.mrf.mxu0
      %2479 = vmatprep.mubr.f32.mxu0 0.0
      %2480 = vmatmul.mubr.f32.gmra.mxu0 %v2272
      %v2481 = vpop.f32.mrf.mxu0
      %v2482 = vadd.f32 %v2202, %v2481
      %v2483 = vpop.f32.mrf.mxu0
      %2484 = vmatprep.mubr.f32.mxu0 0.0
      %2485 = vmatmul.mubr.f32.gmra.mxu0 %v2275
      %v2486 = vpop.f32.mrf.mxu0
      %v2487 = vadd.f32 %v2202, %v2486
      %v2488 = vpop.f32.mrf.mxu0
      %2489 = vmatprep.mubr.f32.mxu0 0.0
      %2490 = vmatmul.mubr.f32.gmra.mxu0 %v2278
      %v2491 = vpop.f32.mrf.mxu0
      %v2492 = vadd.f32 %v2202, %v2491
      %v2493 = vpop.f32.mrf.mxu0
      %2494 = vmatprep.mubr.f32.mxu0 0.0
      %2495 = vmatmul.mubr.f32.gmra.mxu0 %v2281
      %v2496 = vpop.f32.mrf.mxu0
      %v2497 = vadd.f32 %v2202, %v2496
      %v2498 = vpop.f32.mrf.mxu0
      %2499 = vmatprep.mubr.f32.mxu0 0.0
      %2500 = vmatmul.mubr.f32.gmra.mxu0 %v2284
      %v2501 = vpop.f32.mrf.mxu0
      %v2502 = vadd.f32 %v2202, %v2501
      %v2503 = vpop.f32.mrf.mxu0
      %2504 = vmatprep.mubr.f32.mxu0 0.0
      %2505 = vmatmul.mubr.f32.gmra.mxu0 %v2287
      %v2506 = vpop.f32.mrf.mxu0
      %v2507 = vadd.f32 %v2202, %v2506
      %v2508 = vpop.f32.mrf.mxu0
      %2509 = vmatprep.mubr.f32.mxu0 0.0
      %2510 = vmatmul.mubr.f32.gmra.mxu0 %v2290
      %v2511 = vpop.f32.mrf.mxu0
      %v2512 = vadd.f32 %v2202, %v2511
      %v2513 = vpop.f32.mrf.mxu0
      %2514 = vmatprep.mubr.f32.mxu0 0.0
      %2515 = vmatmul.mubr.f32.gmra.mxu0 %v2293
      %v2516 = vpop.f32.mrf.mxu0
      %v2517 = vadd.f32 %v2202, %v2516
      %v2518 = vpop.f32.mrf.mxu0
      %2519 = vmatprep.mubr.f32.mxu0 0.0
      %2520 = vmatmul.mubr.f32.gmra.mxu0 %v2296
      %v2521 = vpop.f32.mrf.mxu0
      %v2522 = vadd.f32 %v2202, %v2521
      %v2523 = vpop.f32.mrf.mxu0
      %2524 = vmatprep.mubr.f32.mxu0 0.0
      %2525 = vmatmul.mubr.f32.gmra.mxu0 %v2299
      %v2526 = vpop.f32.mrf.mxu0
      %v2527 = vadd.f32 %v2202, %v2526
      %v2528 = vpop.f32.mrf.mxu0
      %2529 = vdwg.mxu0
      %v2530 = vmax.f32 %v2372, 0.0
      %v2531 = vmax.f32 %v2377, 0.0
      %v2532 = vmax.f32 %v2382, 0.0
      %v2533 = vmax.f32 %v2387, 0.0
      %v2534 = vmax.f32 %v2392, 0.0
      %v2535 = vmax.f32 %v2397, 0.0
      %v2536 = vmax.f32 %v2402, 0.0
      %v2537 = vmax.f32 %v2407, 0.0
      %v2538 = vmax.f32 %v2412, 0.0
      %v2539 = vmax.f32 %v2417, 0.0
      %v2540 = vmax.f32 %v2422, 0.0
      %v2541 = vmax.f32 %v2427, 0.0
      %v2542 = vmax.f32 %v2432, 0.0
      %v2543 = vmax.f32 %v2437, 0.0
      %v2544 = vmax.f32 %v2442, 0.0
      %v2545 = vmax.f32 %v2447, 0.0
      %v2546 = vmax.f32 %v2452, 0.0
      %v2547 = vmax.f32 %v2457, 0.0
      %v2548 = vmax.f32 %v2462, 0.0
      %v2549 = vmax.f32 %v2467, 0.0
      %v2550 = vmax.f32 %v2472, 0.0
      %v2551 = vmax.f32 %v2477, 0.0
      %v2552 = vmax.f32 %v2482, 0.0
      %v2553 = vmax.f32 %v2487, 0.0
      %v2554 = vmax.f32 %v2492, 0.0
      %v2555 = vmax.f32 %v2497, 0.0
      %v2556 = vmax.f32 %v2502, 0.0
      %v2557 = vmax.f32 %v2507, 0.0
      %v2558 = vmax.f32 %v2512, 0.0
      %v2559 = vmax.f32 %v2517, 0.0
      %v2560 = vmax.f32 %v2522, 0.0
      %v2561 = vmax.f32 %v2527, 0.0
      %v2594 = vrot.slane %v2530, 7
      %v2595 = vrot.slane %v2531, 7
      %v2596 = vsel %vm421, %v2594, %v2595
      %v2597 = vrot.slane %v2532, 7
      %v2598 = vrot.slane %v2533, 7
      %v2599 = vsel %vm421, %v2597, %v2598
      %v2600 = vrot.slane %v2534, 7
      %v2601 = vrot.slane %v2535, 7
      %v2602 = vsel %vm421, %v2600, %v2601
      %v2603 = vrot.slane %v2536, 7
      %v2604 = vrot.slane %v2537, 7
      %v2605 = vsel %vm421, %v2603, %v2604
      %v2606 = vrot.slane %v2538, 7
      %v2607 = vrot.slane %v2539, 7
      %v2608 = vsel %vm421, %v2606, %v2607
      %v2609 = vrot.slane %v2540, 7
      %v2610 = vrot.slane %v2541, 7
      %v2611 = vsel %vm421, %v2609, %v2610
      %v2612 = vrot.slane %v2542, 7
      %v2613 = vrot.slane %v2543, 7
      %v2614 = vsel %vm421, %v2612, %v2613
      %v2615 = vrot.slane %v2544, 7
      %v2616 = vrot.slane %v2545, 7
      %v2617 = vsel %vm421, %v2615, %v2616
      %v2618 = vrot.slane %v2546, 7
      %v2619 = vrot.slane %v2547, 7
      %v2620 = vsel %vm421, %v2618, %v2619
      %v2621 = vrot.slane %v2548, 7
      %v2622 = vrot.slane %v2549, 7
      %v2623 = vsel %vm421, %v2621, %v2622
      %v2624 = vrot.slane %v2550, 7
      %v2625 = vrot.slane %v2551, 7
      %v2626 = vsel %vm421, %v2624, %v2625
      %v2627 = vrot.slane %v2552, 7
      %v2628 = vrot.slane %v2553, 7
      %v2629 = vsel %vm421, %v2627, %v2628
      %v2630 = vrot.slane %v2554, 7
      %v2631 = vrot.slane %v2555, 7
      %v2632 = vsel %vm421, %v2630, %v2631
      %v2633 = vrot.slane %v2556, 7
      %v2634 = vrot.slane %v2557, 7
      %v2635 = vsel %vm421, %v2633, %v2634
      %v2636 = vrot.slane %v2558, 7
      %v2637 = vrot.slane %v2559, 7
      %v2638 = vsel %vm421, %v2636, %v2637
      %v2639 = vrot.slane %v2560, 7
      %v2640 = vrot.slane %v2561, 7
      %v2641 = vsel %vm421, %v2639, %v2640
      %v2690 = vsel %vm421, 0.0, %v2594
      %v2691 = vsel %vm421, 0.0, %v2597
      %v2692 = vsel %vm421, 0.0, %v2600
      %v2693 = vsel %vm421, 0.0, %v2603
      %v2694 = vsel %vm421, 0.0, %v2606
      %v2695 = vsel %vm421, 0.0, %v2609
      %v2696 = vsel %vm421, 0.0, %v2612
      %v2697 = vsel %vm421, 0.0, %v2615
      %v2698 = vsel %vm421, 0.0, %v2618
      %v2699 = vsel %vm421, 0.0, %v2621
      %v2700 = vsel %vm421, 0.0, %v2624
      %v2701 = vsel %vm421, 0.0, %v2627
      %v2702 = vsel %vm421, 0.0, %v2630
      %v2703 = vsel %vm421, 0.0, %v2633
      %v2704 = vsel %vm421, 0.0, %v2636
      %v2705 = vsel %vm421, 0.0, %v2639
      %v2706 = vsel %vm421, %v2595, 0.0
      %v2707 = vsel %vm421, %v2598, 0.0
      %v2708 = vsel %vm421, %v2601, 0.0
      %v2709 = vsel %vm421, %v2604, 0.0
      %v2710 = vsel %vm421, %v2607, 0.0
      %v2711 = vsel %vm421, %v2610, 0.0
      %v2712 = vsel %vm421, %v2613, 0.0
      %v2713 = vsel %vm421, %v2616, 0.0
      %v2714 = vsel %vm421, %v2619, 0.0
      %v2715 = vsel %vm421, %v2622, 0.0
      %v2716 = vsel %vm421, %v2625, 0.0
      %v2717 = vsel %vm421, %v2628, 0.0
      %v2718 = vsel %vm421, %v2631, 0.0
      %v2719 = vsel %vm421, %v2634, 0.0
      %v2720 = vsel %vm421, %v2637, 0.0
      %v2721 = vsel %vm421, %v2640, 0.0
      %s2722 = scalar_lea.vmem [#allocation3], 24
      %2723 = vst.msk [vmem:[%s2722] sm:$0xff] %vm608, %v2690
      %2724 = vst.msk [vmem:[%s2722 + $0x8] sm:$0xff] %vm608, %v2596
      %2725 = vst.msk [vmem:[%s2722 + $0x10] sm:$0x3] %vm611, %v2706
      %2726 = vst.msk [vmem:[%s2722 + $0x18] sm:$0xff] %vm608, %v2691
      %2727 = vst.msk [vmem:[%s2722 + $0x20] sm:$0xff] %vm608, %v2599
      %2728 = vst.msk [vmem:[%s2722 + $0x28] sm:$0x3] %vm611, %v2707
      %2729 = vst.msk [vmem:[%s2722 + $0x30] sm:$0xff] %vm608, %v2692
      %2730 = vst.msk [vmem:[%s2722 + $0x38] sm:$0xff] %vm608, %v2602
      %2731 = vst.msk [vmem:[%s2722 + $0x40] sm:$0x3] %vm611, %v2708
      %2732 = vst.msk [vmem:[%s2722 + $0x48] sm:$0xff] %vm608, %v2693
      %2733 = vst.msk [vmem:[%s2722 + $0x50] sm:$0xff] %vm608, %v2605
      %2734 = vst.msk [vmem:[%s2722 + $0x58] sm:$0x3] %vm611, %v2709
      %2735 = vst.msk [vmem:[%s2722 + $0x60] sm:$0xff] %vm608, %v2694
      %2736 = vst.msk [vmem:[%s2722 + $0x68] sm:$0xff] %vm608, %v2608
      %2737 = vst.msk [vmem:[%s2722 + $0x70] sm:$0x3] %vm611, %v2710
      %2738 = vst.msk [vmem:[%s2722 + $0x78] sm:$0xff] %vm608, %v2695
      %2739 = vst.msk [vmem:[%s2722 + $0x80] sm:$0xff] %vm608, %v2611
      %2740 = vst.msk [vmem:[%s2722 + $0x88] sm:$0x3] %vm611, %v2711
      %2741 = vst.msk [vmem:[%s2722 + $0x90] sm:$0xff] %vm608, %v2696
      %2742 = vst.msk [vmem:[%s2722 + $0x98] sm:$0xff] %vm608, %v2614
      %2743 = vst.msk [vmem:[%s2722 + $0xa0] sm:$0x3] %vm611, %v2712
      %2744 = vst.msk [vmem:[%s2722 + $0xa8] sm:$0xff] %vm608, %v2697
      %2745 = vst.msk [vmem:[%s2722 + $0xb0] sm:$0xff] %vm608, %v2617
      %2746 = vst.msk [vmem:[%s2722 + $0xb8] sm:$0x3] %vm611, %v2713
      %2747 = vst.msk [vmem:[%s2722 + $0xc0] sm:$0xff] %vm608, %v2698
      %2748 = vst.msk [vmem:[%s2722 + $0xc8] sm:$0xff] %vm608, %v2620
      %2749 = vst.msk [vmem:[%s2722 + $0xd0] sm:$0x3] %vm611, %v2714
      %2750 = vst.msk [vmem:[%s2722 + $0xd8] sm:$0xff] %vm608, %v2699
      %2751 = vst.msk [vmem:[%s2722 + $0xe0] sm:$0xff] %vm608, %v2623
      %2752 = vst.msk [vmem:[%s2722 + $0xe8] sm:$0x3] %vm611, %v2715
      %2753 = vst.msk [vmem:[%s2722 + $0xf0] sm:$0xff] %vm608, %v2700
      %2754 = vst.msk [vmem:[%s2722 + $0xf8] sm:$0xff] %vm608, %v2626
      %2755 = vst.msk [vmem:[%s2722 + $0x100] sm:$0x3] %vm611, %v2716
      %2756 = vst.msk [vmem:[%s2722 + $0x108] sm:$0xff] %vm608, %v2701
      %2757 = vst.msk [vmem:[%s2722 + $0x110] sm:$0xff] %vm608, %v2629
      %2758 = vst.msk [vmem:[%s2722 + $0x118] sm:$0x3] %vm611, %v2717
      %2759 = vst.msk [vmem:[%s2722 + $0x120] sm:$0xff] %vm608, %v2702
      %2760 = vst.msk [vmem:[%s2722 + $0x128] sm:$0xff] %vm608, %v2632
      %2761 = vst.msk [vmem:[%s2722 + $0x130] sm:$0x3] %vm611, %v2718
      %2762 = vst.msk [vmem:[%s2722 + $0x138] sm:$0xff] %vm608, %v2703
      %2763 = vst.msk [vmem:[%s2722 + $0x140] sm:$0xff] %vm608, %v2635
      %2764 = vst.msk [vmem:[%s2722 + $0x148] sm:$0x3] %vm611, %v2719
      %2765 = vst.msk [vmem:[%s2722 + $0x150] sm:$0xff] %vm608, %v2704
      %2766 = vst.msk [vmem:[%s2722 + $0x158] sm:$0xff] %vm608, %v2638
      %2767 = vst.msk [vmem:[%s2722 + $0x160] sm:$0x3] %vm611, %v2720
      %2768 = vst.msk [vmem:[%s2722 + $0x168] sm:$0xff] %vm608, %v2705
      %2769 = vst.msk [vmem:[%s2722 + $0x170] sm:$0xff] %vm608, %v2641
      %2770 = vst.msk [vmem:[%s2722 + $0x178] sm:$0x3] %vm611, %v2721
      %v2771 = vld [vmem:[#allocation3] sm:$0xff]
      %v2772 = vld [vmem:[#allocation3 + $0x8] sm:$0xff]
      %v2773 = vld [vmem:[#allocation3 + $0x18] sm:$0xff]
      %v2774 = vld [vmem:[#allocation3 + $0x20] sm:$0xff]
      %v2775 = vld [vmem:[#allocation3 + $0x30] sm:$0xff]
      %v2776 = vld [vmem:[#allocation3 + $0x38] sm:$0xff]
      %v2777 = vld [vmem:[#allocation3 + $0x48] sm:$0xff]
      %v2778 = vld [vmem:[#allocation3 + $0x50] sm:$0xff]
      %v2779 = vld [vmem:[#allocation3 + $0x60] sm:$0xff]
      %v2780 = vld [vmem:[#allocation3 + $0x68] sm:$0xff]
      %v2781 = vld [vmem:[#allocation3 + $0x78] sm:$0xff]
      %v2782 = vld [vmem:[#allocation3 + $0x80] sm:$0xff]
      %v2783 = vld [vmem:[#allocation3 + $0x90] sm:$0xff]
      %v2784 = vld [vmem:[#allocation3 + $0x98] sm:$0xff]
      %v2785 = vld [vmem:[#allocation3 + $0xa8] sm:$0xff]
      %v2786 = vld [vmem:[#allocation3 + $0xb0] sm:$0xff]
      %v2787 = vld [vmem:[#allocation3 + $0xc0] sm:$0xff]
      %v2788 = vld [vmem:[#allocation3 + $0xc8] sm:$0xff]
      %v2789 = vld [vmem:[#allocation3 + $0xd8] sm:$0xff]
      %v2790 = vld [vmem:[#allocation3 + $0xe0] sm:$0xff]
      %v2791 = vld [vmem:[#allocation3 + $0xf0] sm:$0xff]
      %v2792 = vld [vmem:[#allocation3 + $0xf8] sm:$0xff]
      %v2793 = vld [vmem:[#allocation3 + $0x108] sm:$0xff]
      %v2794 = vld [vmem:[#allocation3 + $0x110] sm:$0xff]
      %v2795 = vld [vmem:[#allocation3 + $0x120] sm:$0xff]
      %v2796 = vld [vmem:[#allocation3 + $0x128] sm:$0xff]
      %v2797 = vld [vmem:[#allocation3 + $0x138] sm:$0xff]
      %v2798 = vld [vmem:[#allocation3 + $0x140] sm:$0xff]
      %v2799 = vld [vmem:[#allocation3 + $0x150] sm:$0xff]
      %v2800 = vld [vmem:[#allocation3 + $0x158] sm:$0xff]
      %v2801 = vld [vmem:[#allocation3 + $0x168] sm:$0xff]
      %v2802 = vld [vmem:[#allocation3 + $0x170] sm:$0xff]
      %v2803 = vld [vmem:[#allocation3 + $0x1] sm:$0xff]
      %v2804 = vld [vmem:[#allocation3 + $0x9] sm:$0xff]
      %v2805 = vld [vmem:[#allocation3 + $0x19] sm:$0xff]
      %v2806 = vld [vmem:[#allocation3 + $0x21] sm:$0xff]
      %v2807 = vld [vmem:[#allocation3 + $0x31] sm:$0xff]
      %v2808 = vld [vmem:[#allocation3 + $0x39] sm:$0xff]
      %v2809 = vld [vmem:[#allocation3 + $0x49] sm:$0xff]
      %v2810 = vld [vmem:[#allocation3 + $0x51] sm:$0xff]
      %v2811 = vld [vmem:[#allocation3 + $0x61] sm:$0xff]
      %v2812 = vld [vmem:[#allocation3 + $0x69] sm:$0xff]
      %v2813 = vld [vmem:[#allocation3 + $0x79] sm:$0xff]
      %v2814 = vld [vmem:[#allocation3 + $0x81] sm:$0xff]
      %v2815 = vld [vmem:[#allocation3 + $0x91] sm:$0xff]
      %v2816 = vld [vmem:[#allocation3 + $0x99] sm:$0xff]
      %v2817 = vld [vmem:[#allocation3 + $0xa9] sm:$0xff]
      %v2818 = vld [vmem:[#allocation3 + $0xb1] sm:$0xff]
      %v2819 = vld [vmem:[#allocation3 + $0xc1] sm:$0xff]
      %v2820 = vld [vmem:[#allocation3 + $0xc9] sm:$0xff]
      %v2821 = vld [vmem:[#allocation3 + $0xd9] sm:$0xff]
      %v2822 = vld [vmem:[#allocation3 + $0xe1] sm:$0xff]
      %v2823 = vld [vmem:[#allocation3 + $0xf1] sm:$0xff]
      %v2824 = vld [vmem:[#allocation3 + $0xf9] sm:$0xff]
      %v2825 = vld [vmem:[#allocation3 + $0x109] sm:$0xff]
      %v2826 = vld [vmem:[#allocation3 + $0x111] sm:$0xff]
      %v2827 = vld [vmem:[#allocation3 + $0x121] sm:$0xff]
      %v2828 = vld [vmem:[#allocation3 + $0x129] sm:$0xff]
      %v2829 = vld [vmem:[#allocation3 + $0x139] sm:$0xff]
      %v2830 = vld [vmem:[#allocation3 + $0x141] sm:$0xff]
      %v2831 = vld [vmem:[#allocation3 + $0x151] sm:$0xff]
      %v2832 = vld [vmem:[#allocation3 + $0x159] sm:$0xff]
      %v2833 = vld [vmem:[#allocation3 + $0x169] sm:$0xff]
      %v2834 = vld [vmem:[#allocation3 + $0x171] sm:$0xff]
      %v2835 = vld [vmem:[#allocation3 + $0x2] sm:$0xff]
      %v2836 = vld [vmem:[#allocation3 + $0xa] sm:$0xff]
      %v2837 = vld [vmem:[#allocation3 + $0x1a] sm:$0xff]
      %v2838 = vld [vmem:[#allocation3 + $0x22] sm:$0xff]
      %v2839 = vld [vmem:[#allocation3 + $0x32] sm:$0xff]
      %v2840 = vld [vmem:[#allocation3 + $0x3a] sm:$0xff]
      %v2841 = vld [vmem:[#allocation3 + $0x4a] sm:$0xff]
      %v2842 = vld [vmem:[#allocation3 + $0x52] sm:$0xff]
      %v2843 = vld [vmem:[#allocation3 + $0x62] sm:$0xff]
      %v2844 = vld [vmem:[#allocation3 + $0x6a] sm:$0xff]
      %v2845 = vld [vmem:[#allocation3 + $0x7a] sm:$0xff]
      %v2846 = vld [vmem:[#allocation3 + $0x82] sm:$0xff]
      %v2847 = vld [vmem:[#allocation3 + $0x92] sm:$0xff]
      %v2848 = vld [vmem:[#allocation3 + $0x9a] sm:$0xff]
      %v2849 = vld [vmem:[#allocation3 + $0xaa] sm:$0xff]
      %v2850 = vld [vmem:[#allocation3 + $0xb2] sm:$0xff]
      %v2851 = vld [vmem:[#allocation3 + $0xc2] sm:$0xff]
      %v2852 = vld [vmem:[#allocation3 + $0xca] sm:$0xff]
      %v2853 = vld [vmem:[#allocation3 + $0xda] sm:$0xff]
      %v2854 = vld [vmem:[#allocation3 + $0xe2] sm:$0xff]
      %v2855 = vld [vmem:[#allocation3 + $0xf2] sm:$0xff]
      %v2856 = vld [vmem:[#allocation3 + $0xfa] sm:$0xff]
      %v2857 = vld [vmem:[#allocation3 + $0x10a] sm:$0xff]
      %v2858 = vld [vmem:[#allocation3 + $0x112] sm:$0xff]
      %v2859 = vld [vmem:[#allocation3 + $0x122] sm:$0xff]
      %v2860 = vld [vmem:[#allocation3 + $0x12a] sm:$0xff]
      %v2861 = vld [vmem:[#allocation3 + $0x13a] sm:$0xff]
      %v2862 = vld [vmem:[#allocation3 + $0x142] sm:$0xff]
      %v2863 = vld [vmem:[#allocation3 + $0x152] sm:$0xff]
      %v2864 = vld [vmem:[#allocation3 + $0x15a] sm:$0xff]
      %v2865 = vld [vmem:[#allocation3 + $0x16a] sm:$0xff]
      %v2866 = vld [vmem:[#allocation3 + $0x172] sm:$0xff]
      %v2867 = vld [vmem:[%s2722] sm:$0xff]
      %v2868 = vld [vmem:[%s2722 + $0x8] sm:$0xff]
      %v2869 = vld [vmem:[%s2722 + $0x18] sm:$0xff]
      %v2870 = vld [vmem:[%s2722 + $0x20] sm:$0xff]
      %v2871 = vld [vmem:[%s2722 + $0x30] sm:$0xff]
      %v2872 = vld [vmem:[%s2722 + $0x38] sm:$0xff]
      %v2873 = vld [vmem:[%s2722 + $0x48] sm:$0xff]
      %v2874 = vld [vmem:[%s2722 + $0x50] sm:$0xff]
      %v2875 = vld [vmem:[%s2722 + $0x60] sm:$0xff]
      %v2876 = vld [vmem:[%s2722 + $0x68] sm:$0xff]
      %v2877 = vld [vmem:[%s2722 + $0x78] sm:$0xff]
      %v2878 = vld [vmem:[%s2722 + $0x80] sm:$0xff]
      %v2879 = vld [vmem:[%s2722 + $0x90] sm:$0xff]
      %v2880 = vld [vmem:[%s2722 + $0x98] sm:$0xff]
      %v2881 = vld [vmem:[%s2722 + $0xa8] sm:$0xff]
      %v2882 = vld [vmem:[%s2722 + $0xb0] sm:$0xff]
      %v2883 = vld [vmem:[%s2722 + $0xc0] sm:$0xff]
      %v2884 = vld [vmem:[%s2722 + $0xc8] sm:$0xff]
      %v2885 = vld [vmem:[%s2722 + $0xd8] sm:$0xff]
      %v2886 = vld [vmem:[%s2722 + $0xe0] sm:$0xff]
      %v2887 = vld [vmem:[%s2722 + $0xf0] sm:$0xff]
      %v2888 = vld [vmem:[%s2722 + $0xf8] sm:$0xff]
      %v2889 = vld [vmem:[%s2722 + $0x108] sm:$0xff]
      %v2890 = vld [vmem:[%s2722 + $0x110] sm:$0xff]
      %v2891 = vld [vmem:[%s2722 + $0x120] sm:$0xff]
      %v2892 = vld [vmem:[%s2722 + $0x128] sm:$0xff]
      %v2893 = vld [vmem:[%s2722 + $0x138] sm:$0xff]
      %v2894 = vld [vmem:[%s2722 + $0x140] sm:$0xff]
      %v2895 = vld [vmem:[%s2722 + $0x150] sm:$0xff]
      %v2896 = vld [vmem:[%s2722 + $0x158] sm:$0xff]
      %v2897 = vld [vmem:[%s2722 + $0x168] sm:$0xff]
      %v2898 = vld [vmem:[%s2722 + $0x170] sm:$0xff]
      %v2899 = vld [vmem:[%s2722 + $0x1] sm:$0xff]
      %v2900 = vld [vmem:[%s2722 + $0x9] sm:$0xff]
      %v2901 = vld [vmem:[%s2722 + $0x19] sm:$0xff]
      %v2902 = vld [vmem:[%s2722 + $0x21] sm:$0xff]
      %v2903 = vld [vmem:[%s2722 + $0x31] sm:$0xff]
      %v2904 = vld [vmem:[%s2722 + $0x39] sm:$0xff]
      %v2905 = vld [vmem:[%s2722 + $0x49] sm:$0xff]
      %v2906 = vld [vmem:[%s2722 + $0x51] sm:$0xff]
      %v2907 = vld [vmem:[%s2722 + $0x61] sm:$0xff]
      %v2908 = vld [vmem:[%s2722 + $0x69] sm:$0xff]
      %v2909 = vld [vmem:[%s2722 + $0x79] sm:$0xff]
      %v2910 = vld [vmem:[%s2722 + $0x81] sm:$0xff]
      %v2911 = vld [vmem:[%s2722 + $0x91] sm:$0xff]
      %v2912 = vld [vmem:[%s2722 + $0x99] sm:$0xff]
      %v2913 = vld [vmem:[%s2722 + $0xa9] sm:$0xff]
      %v2914 = vld [vmem:[%s2722 + $0xb1] sm:$0xff]
      %v2915 = vld [vmem:[%s2722 + $0xc1] sm:$0xff]
      %v2916 = vld [vmem:[%s2722 + $0xc9] sm:$0xff]
      %v2917 = vld [vmem:[%s2722 + $0xd9] sm:$0xff]
      %v2918 = vld [vmem:[%s2722 + $0xe1] sm:$0xff]
      %v2919 = vld [vmem:[%s2722 + $0xf1] sm:$0xff]
      %v2920 = vld [vmem:[%s2722 + $0xf9] sm:$0xff]
      %v2921 = vld [vmem:[%s2722 + $0x109] sm:$0xff]
      %v2922 = vld [vmem:[%s2722 + $0x111] sm:$0xff]
      %v2923 = vld [vmem:[%s2722 + $0x121] sm:$0xff]
      %v2924 = vld [vmem:[%s2722 + $0x129] sm:$0xff]
      %v2925 = vld [vmem:[%s2722 + $0x139] sm:$0xff]
      %v2926 = vld [vmem:[%s2722 + $0x141] sm:$0xff]
      %v2927 = vld [vmem:[%s2722 + $0x151] sm:$0xff]
      %v2928 = vld [vmem:[%s2722 + $0x159] sm:$0xff]
      %v2929 = vld [vmem:[%s2722 + $0x169] sm:$0xff]
      %v2930 = vld [vmem:[%s2722 + $0x171] sm:$0xff]
      %v2931 = vld [vmem:[%s2722 + $0x2] sm:$0xff]
      %v2932 = vld [vmem:[%s2722 + $0xa] sm:$0xff]
      %v2933 = vld [vmem:[%s2722 + $0x1a] sm:$0xff]
      %v2934 = vld [vmem:[%s2722 + $0x22] sm:$0xff]
      %v2935 = vld [vmem:[%s2722 + $0x32] sm:$0xff]
      %v2936 = vld [vmem:[%s2722 + $0x3a] sm:$0xff]
      %v2937 = vld [vmem:[%s2722 + $0x4a] sm:$0xff]
      %v2938 = vld [vmem:[%s2722 + $0x52] sm:$0xff]
      %v2939 = vld [vmem:[%s2722 + $0x62] sm:$0xff]
      %v2940 = vld [vmem:[%s2722 + $0x6a] sm:$0xff]
      %v2941 = vld [vmem:[%s2722 + $0x7a] sm:$0xff]
      %v2942 = vld [vmem:[%s2722 + $0x82] sm:$0xff]
      %v2943 = vld [vmem:[%s2722 + $0x92] sm:$0xff]
      %v2944 = vld [vmem:[%s2722 + $0x9a] sm:$0xff]
      %v2945 = vld [vmem:[%s2722 + $0xaa] sm:$0xff]
      %v2946 = vld [vmem:[%s2722 + $0xb2] sm:$0xff]
      %v2947 = vld [vmem:[%s2722 + $0xc2] sm:$0xff]
      %v2948 = vld [vmem:[%s2722 + $0xca] sm:$0xff]
      %v2949 = vld [vmem:[%s2722 + $0xda] sm:$0xff]
      %v2950 = vld [vmem:[%s2722 + $0xe2] sm:$0xff]
      %v2951 = vld [vmem:[%s2722 + $0xf2] sm:$0xff]
      %v2952 = vld [vmem:[%s2722 + $0xfa] sm:$0xff]
      %v2953 = vld [vmem:[%s2722 + $0x10a] sm:$0xff]
      %v2954 = vld [vmem:[%s2722 + $0x112] sm:$0xff]
      %v2955 = vld [vmem:[%s2722 + $0x122] sm:$0xff]
      %v2956 = vld [vmem:[%s2722 + $0x12a] sm:$0xff]
      %v2957 = vld [vmem:[%s2722 + $0x13a] sm:$0xff]
      %v2958 = vld [vmem:[%s2722 + $0x142] sm:$0xff]
      %v2959 = vld [vmem:[%s2722 + $0x152] sm:$0xff]
      %v2960 = vld [vmem:[%s2722 + $0x15a] sm:$0xff]
      %v2961 = vld [vmem:[%s2722 + $0x16a] sm:$0xff]
      %v2962 = vld [vmem:[%s2722 + $0x172] sm:$0xff]
      %s2963 = scalar_lea.vmem [#allocation3], 48
      %v2964 = vld [vmem:[%s2963] sm:$0xff]
      %v2965 = vld [vmem:[%s2963 + $0x8] sm:$0xff]
      %v2966 = vld [vmem:[%s2963 + $0x18] sm:$0xff]
      %v2967 = vld [vmem:[%s2963 + $0x20] sm:$0xff]
      %v2968 = vld [vmem:[%s2963 + $0x30] sm:$0xff]
      %v2969 = vld [vmem:[%s2963 + $0x38] sm:$0xff]
      %v2970 = vld [vmem:[%s2963 + $0x48] sm:$0xff]
      %v2971 = vld [vmem:[%s2963 + $0x50] sm:$0xff]
      %v2972 = vld [vmem:[%s2963 + $0x60] sm:$0xff]
      %v2973 = vld [vmem:[%s2963 + $0x68] sm:$0xff]
      %v2974 = vld [vmem:[%s2963 + $0x78] sm:$0xff]
      %v2975 = vld [vmem:[%s2963 + $0x80] sm:$0xff]
      %v2976 = vld [vmem:[%s2963 + $0x90] sm:$0xff]
      %v2977 = vld [vmem:[%s2963 + $0x98] sm:$0xff]
      %v2978 = vld [vmem:[%s2963 + $0xa8] sm:$0xff]
      %v2979 = vld [vmem:[%s2963 + $0xb0] sm:$0xff]
      %v2980 = vld [vmem:[%s2963 + $0xc0] sm:$0xff]
      %v2981 = vld [vmem:[%s2963 + $0xc8] sm:$0xff]
      %v2982 = vld [vmem:[%s2963 + $0xd8] sm:$0xff]
      %v2983 = vld [vmem:[%s2963 + $0xe0] sm:$0xff]
      %v2984 = vld [vmem:[%s2963 + $0xf0] sm:$0xff]
      %v2985 = vld [vmem:[%s2963 + $0xf8] sm:$0xff]
      %v2986 = vld [vmem:[%s2963 + $0x108] sm:$0xff]
      %v2987 = vld [vmem:[%s2963 + $0x110] sm:$0xff]
      %v2988 = vld [vmem:[%s2963 + $0x120] sm:$0xff]
      %v2989 = vld [vmem:[%s2963 + $0x128] sm:$0xff]
      %v2990 = vld [vmem:[%s2963 + $0x138] sm:$0xff]
      %v2991 = vld [vmem:[%s2963 + $0x140] sm:$0xff]
      %v2992 = vld [vmem:[%s2963 + $0x150] sm:$0xff]
      %v2993 = vld [vmem:[%s2963 + $0x158] sm:$0xff]
      %v2994 = vld [vmem:[%s2963 + $0x168] sm:$0xff]
      %v2995 = vld [vmem:[%s2963 + $0x170] sm:$0xff]
      %v2996 = vld [vmem:[%s2963 + $0x1] sm:$0xff]
      %v2997 = vld [vmem:[%s2963 + $0x9] sm:$0xff]
      %v2998 = vld [vmem:[%s2963 + $0x19] sm:$0xff]
      %v2999 = vld [vmem:[%s2963 + $0x21] sm:$0xff]
      %v3000 = vld [vmem:[%s2963 + $0x31] sm:$0xff]
      %v3001 = vld [vmem:[%s2963 + $0x39] sm:$0xff]
      %v3002 = vld [vmem:[%s2963 + $0x49] sm:$0xff]
      %v3003 = vld [vmem:[%s2963 + $0x51] sm:$0xff]
      %v3004 = vld [vmem:[%s2963 + $0x61] sm:$0xff]
      %v3005 = vld [vmem:[%s2963 + $0x69] sm:$0xff]
      %v3006 = vld [vmem:[%s2963 + $0x79] sm:$0xff]
      %v3007 = vld [vmem:[%s2963 + $0x81] sm:$0xff]
      %v3008 = vld [vmem:[%s2963 + $0x91] sm:$0xff]
      %v3009 = vld [vmem:[%s2963 + $0x99] sm:$0xff]
      %v3010 = vld [vmem:[%s2963 + $0xa9] sm:$0xff]
      %v3011 = vld [vmem:[%s2963 + $0xb1] sm:$0xff]
      %v3012 = vld [vmem:[%s2963 + $0xc1] sm:$0xff]
      %v3013 = vld [vmem:[%s2963 + $0xc9] sm:$0xff]
      %v3014 = vld [vmem:[%s2963 + $0xd9] sm:$0xff]
      %v3015 = vld [vmem:[%s2963 + $0xe1] sm:$0xff]
      %v3016 = vld [vmem:[%s2963 + $0xf1] sm:$0xff]
      %v3017 = vld [vmem:[%s2963 + $0xf9] sm:$0xff]
      %v3018 = vld [vmem:[%s2963 + $0x109] sm:$0xff]
      %v3019 = vld [vmem:[%s2963 + $0x111] sm:$0xff]
      %v3020 = vld [vmem:[%s2963 + $0x121] sm:$0xff]
      %v3021 = vld [vmem:[%s2963 + $0x129] sm:$0xff]
      %v3022 = vld [vmem:[%s2963 + $0x139] sm:$0xff]
      %v3023 = vld [vmem:[%s2963 + $0x141] sm:$0xff]
      %v3024 = vld [vmem:[%s2963 + $0x151] sm:$0xff]
      %v3025 = vld [vmem:[%s2963 + $0x159] sm:$0xff]
      %v3026 = vld [vmem:[%s2963 + $0x169] sm:$0xff]
      %v3027 = vld [vmem:[%s2963 + $0x171] sm:$0xff]
      %v3028 = vld [vmem:[%s2963 + $0x2] sm:$0xff]
      %v3029 = vld [vmem:[%s2963 + $0xa] sm:$0xff]
      %v3030 = vld [vmem:[%s2963 + $0x1a] sm:$0xff]
      %v3031 = vld [vmem:[%s2963 + $0x22] sm:$0xff]
      %v3032 = vld [vmem:[%s2963 + $0x32] sm:$0xff]
      %v3033 = vld [vmem:[%s2963 + $0x3a] sm:$0xff]
      %v3034 = vld [vmem:[%s2963 + $0x4a] sm:$0xff]
      %v3035 = vld [vmem:[%s2963 + $0x52] sm:$0xff]
      %v3036 = vld [vmem:[%s2963 + $0x62] sm:$0xff]
      %v3037 = vld [vmem:[%s2963 + $0x6a] sm:$0xff]
      %v3038 = vld [vmem:[%s2963 + $0x7a] sm:$0xff]
      %v3039 = vld [vmem:[%s2963 + $0x82] sm:$0xff]
      %v3040 = vld [vmem:[%s2963 + $0x92] sm:$0xff]
      %v3041 = vld [vmem:[%s2963 + $0x9a] sm:$0xff]
      %v3042 = vld [vmem:[%s2963 + $0xaa] sm:$0xff]
      %v3043 = vld [vmem:[%s2963 + $0xb2] sm:$0xff]
      %v3044 = vld [vmem:[%s2963 + $0xc2] sm:$0xff]
      %v3045 = vld [vmem:[%s2963 + $0xca] sm:$0xff]
      %v3046 = vld [vmem:[%s2963 + $0xda] sm:$0xff]
      %v3047 = vld [vmem:[%s2963 + $0xe2] sm:$0xff]
      %v3048 = vld [vmem:[%s2963 + $0xf2] sm:$0xff]
      %v3049 = vld [vmem:[%s2963 + $0xfa] sm:$0xff]
      %v3050 = vld [vmem:[%s2963 + $0x10a] sm:$0xff]
      %v3051 = vld [vmem:[%s2963 + $0x112] sm:$0xff]
      %v3052 = vld [vmem:[%s2963 + $0x122] sm:$0xff]
      %v3053 = vld [vmem:[%s2963 + $0x12a] sm:$0xff]
      %v3054 = vld [vmem:[%s2963 + $0x13a] sm:$0xff]
      %v3055 = vld [vmem:[%s2963 + $0x142] sm:$0xff]
      %v3056 = vld [vmem:[%s2963 + $0x152] sm:$0xff]
      %v3057 = vld [vmem:[%s2963 + $0x15a] sm:$0xff]
      %v3058 = vld [vmem:[%s2963 + $0x16a] sm:$0xff]
      %v3059 = vld [vmem:[%s2963 + $0x172] sm:$0xff]
      %3092 = vrot.lane.b32.xlu0 %v2803, 8
      %v3093 = vpop.permute.xlu0 %3092
      %3094 = vrot.lane.b32.xlu0 %v2804, 8
      %v3095 = vpop.permute.xlu0 %3094
      %3096 = vrot.lane.b32.xlu0 %v2805, 8
      %v3097 = vpop.permute.xlu0 %3096
      %3098 = vrot.lane.b32.xlu0 %v2806, 8
      %v3099 = vpop.permute.xlu0 %3098
      %3100 = vrot.lane.b32.xlu0 %v2807, 8
      %v3101 = vpop.permute.xlu0 %3100
      %3102 = vrot.lane.b32.xlu0 %v2808, 8
      %v3103 = vpop.permute.xlu0 %3102
      %3104 = vrot.lane.b32.xlu0 %v2809, 8
      %v3105 = vpop.permute.xlu0 %3104
      %3106 = vrot.lane.b32.xlu0 %v2810, 8
      %v3107 = vpop.permute.xlu0 %3106
      %3108 = vrot.lane.b32.xlu0 %v2811, 8
      %v3109 = vpop.permute.xlu0 %3108
      %3110 = vrot.lane.b32.xlu0 %v2812, 8
      %v3111 = vpop.permute.xlu0 %3110
      %3112 = vrot.lane.b32.xlu0 %v2813, 8
      %v3113 = vpop.permute.xlu0 %3112
      %3114 = vrot.lane.b32.xlu0 %v2814, 8
      %v3115 = vpop.permute.xlu0 %3114
      %3116 = vrot.lane.b32.xlu0 %v2815, 8
      %v3117 = vpop.permute.xlu0 %3116
      %3118 = vrot.lane.b32.xlu0 %v2816, 8
      %v3119 = vpop.permute.xlu0 %3118
      %3120 = vrot.lane.b32.xlu0 %v2817, 8
      %v3121 = vpop.permute.xlu0 %3120
      %3122 = vrot.lane.b32.xlu0 %v2818, 8
      %v3123 = vpop.permute.xlu0 %3122
      %3124 = vrot.lane.b32.xlu0 %v2819, 8
      %v3125 = vpop.permute.xlu0 %3124
      %3126 = vrot.lane.b32.xlu0 %v2820, 8
      %v3127 = vpop.permute.xlu0 %3126
      %3128 = vrot.lane.b32.xlu0 %v2821, 8
      %v3129 = vpop.permute.xlu0 %3128
      %3130 = vrot.lane.b32.xlu0 %v2822, 8
      %v3131 = vpop.permute.xlu0 %3130
      %3132 = vrot.lane.b32.xlu0 %v2823, 8
      %v3133 = vpop.permute.xlu0 %3132
      %3134 = vrot.lane.b32.xlu0 %v2824, 8
      %v3135 = vpop.permute.xlu0 %3134
      %3136 = vrot.lane.b32.xlu0 %v2825, 8
      %v3137 = vpop.permute.xlu0 %3136
      %3138 = vrot.lane.b32.xlu0 %v2826, 8
      %v3139 = vpop.permute.xlu0 %3138
      %3140 = vrot.lane.b32.xlu0 %v2827, 8
      %v3141 = vpop.permute.xlu0 %3140
      %3142 = vrot.lane.b32.xlu0 %v2828, 8
      %v3143 = vpop.permute.xlu0 %3142
      %3144 = vrot.lane.b32.xlu0 %v2829, 8
      %v3145 = vpop.permute.xlu0 %3144
      %3146 = vrot.lane.b32.xlu0 %v2830, 8
      %v3147 = vpop.permute.xlu0 %3146
      %3148 = vrot.lane.b32.xlu0 %v2831, 8
      %v3149 = vpop.permute.xlu0 %3148
      %3150 = vrot.lane.b32.xlu0 %v2832, 8
      %v3151 = vpop.permute.xlu0 %3150
      %3152 = vrot.lane.b32.xlu0 %v2833, 8
      %v3153 = vpop.permute.xlu0 %3152
      %3154 = vrot.lane.b32.xlu0 %v2834, 8
      %v3155 = vpop.permute.xlu0 %3154
      %3220 = vrot.lane.b32.xlu0 %v2835, 16
      %v3221 = vpop.permute.xlu0 %3220
      %3222 = vrot.lane.b32.xlu0 %v2836, 16
      %v3223 = vpop.permute.xlu0 %3222
      %3224 = vrot.lane.b32.xlu0 %v2837, 16
      %v3225 = vpop.permute.xlu0 %3224
      %3226 = vrot.lane.b32.xlu0 %v2838, 16
      %v3227 = vpop.permute.xlu0 %3226
      %3228 = vrot.lane.b32.xlu0 %v2839, 16
      %v3229 = vpop.permute.xlu0 %3228
      %3230 = vrot.lane.b32.xlu0 %v2840, 16
      %v3231 = vpop.permute.xlu0 %3230
      %3232 = vrot.lane.b32.xlu0 %v2841, 16
      %v3233 = vpop.permute.xlu0 %3232
      %3234 = vrot.lane.b32.xlu0 %v2842, 16
      %v3235 = vpop.permute.xlu0 %3234
      %3236 = vrot.lane.b32.xlu0 %v2843, 16
      %v3237 = vpop.permute.xlu0 %3236
      %3238 = vrot.lane.b32.xlu0 %v2844, 16
      %v3239 = vpop.permute.xlu0 %3238
      %3240 = vrot.lane.b32.xlu0 %v2845, 16
      %v3241 = vpop.permute.xlu0 %3240
      %3242 = vrot.lane.b32.xlu0 %v2846, 16
      %v3243 = vpop.permute.xlu0 %3242
      %3244 = vrot.lane.b32.xlu0 %v2847, 16
      %v3245 = vpop.permute.xlu0 %3244
      %3246 = vrot.lane.b32.xlu0 %v2848, 16
      %v3247 = vpop.permute.xlu0 %3246
      %3248 = vrot.lane.b32.xlu0 %v2849, 16
      %v3249 = vpop.permute.xlu0 %3248
      %3250 = vrot.lane.b32.xlu0 %v2850, 16
      %v3251 = vpop.permute.xlu0 %3250
      %3252 = vrot.lane.b32.xlu0 %v2851, 16
      %v3253 = vpop.permute.xlu0 %3252
      %3254 = vrot.lane.b32.xlu0 %v2852, 16
      %v3255 = vpop.permute.xlu0 %3254
      %3256 = vrot.lane.b32.xlu0 %v2853, 16
      %v3257 = vpop.permute.xlu0 %3256
      %3258 = vrot.lane.b32.xlu0 %v2854, 16
      %v3259 = vpop.permute.xlu0 %3258
      %3260 = vrot.lane.b32.xlu0 %v2855, 16
      %v3261 = vpop.permute.xlu0 %3260
      %3262 = vrot.lane.b32.xlu0 %v2856, 16
      %v3263 = vpop.permute.xlu0 %3262
      %3264 = vrot.lane.b32.xlu0 %v2857, 16
      %v3265 = vpop.permute.xlu0 %3264
      %3266 = vrot.lane.b32.xlu0 %v2858, 16
      %v3267 = vpop.permute.xlu0 %3266
      %3268 = vrot.lane.b32.xlu0 %v2859, 16
      %v3269 = vpop.permute.xlu0 %3268
      %3270 = vrot.lane.b32.xlu0 %v2860, 16
      %v3271 = vpop.permute.xlu0 %3270
      %3272 = vrot.lane.b32.xlu0 %v2861, 16
      %v3273 = vpop.permute.xlu0 %3272
      %3274 = vrot.lane.b32.xlu0 %v2862, 16
      %v3275 = vpop.permute.xlu0 %3274
      %3276 = vrot.lane.b32.xlu0 %v2863, 16
      %v3277 = vpop.permute.xlu0 %3276
      %3278 = vrot.lane.b32.xlu0 %v2864, 16
      %v3279 = vpop.permute.xlu0 %3278
      %3280 = vrot.lane.b32.xlu0 %v2865, 16
      %v3281 = vpop.permute.xlu0 %3280
      %3282 = vrot.lane.b32.xlu0 %v2866, 16
      %v3283 = vpop.permute.xlu0 %3282
      %3348 = vrot.lane.b32.xlu0 %v2867, 24
      %v3349 = vpop.permute.xlu0 %3348
      %3350 = vrot.lane.b32.xlu0 %v2868, 24
      %v3351 = vpop.permute.xlu0 %3350
      %3352 = vrot.lane.b32.xlu0 %v2869, 24
      %v3353 = vpop.permute.xlu0 %3352
      %3354 = vrot.lane.b32.xlu0 %v2870, 24
      %v3355 = vpop.permute.xlu0 %3354
      %3356 = vrot.lane.b32.xlu0 %v2871, 24
      %v3357 = vpop.permute.xlu0 %3356
      %3358 = vrot.lane.b32.xlu0 %v2872, 24
      %v3359 = vpop.permute.xlu0 %3358
      %3360 = vrot.lane.b32.xlu0 %v2873, 24
      %v3361 = vpop.permute.xlu0 %3360
      %3362 = vrot.lane.b32.xlu0 %v2874, 24
      %v3363 = vpop.permute.xlu0 %3362
      %3364 = vrot.lane.b32.xlu0 %v2875, 24
      %v3365 = vpop.permute.xlu0 %3364
      %3366 = vrot.lane.b32.xlu0 %v2876, 24
      %v3367 = vpop.permute.xlu0 %3366
      %3368 = vrot.lane.b32.xlu0 %v2877, 24
      %v3369 = vpop.permute.xlu0 %3368
      %3370 = vrot.lane.b32.xlu0 %v2878, 24
      %v3371 = vpop.permute.xlu0 %3370
      %3372 = vrot.lane.b32.xlu0 %v2879, 24
      %v3373 = vpop.permute.xlu0 %3372
      %3374 = vrot.lane.b32.xlu0 %v2880, 24
      %v3375 = vpop.permute.xlu0 %3374
      %3376 = vrot.lane.b32.xlu0 %v2881, 24
      %v3377 = vpop.permute.xlu0 %3376
      %3378 = vrot.lane.b32.xlu0 %v2882, 24
      %v3379 = vpop.permute.xlu0 %3378
      %3380 = vrot.lane.b32.xlu0 %v2883, 24
      %v3381 = vpop.permute.xlu0 %3380
      %3382 = vrot.lane.b32.xlu0 %v2884, 24
      %v3383 = vpop.permute.xlu0 %3382
      %3384 = vrot.lane.b32.xlu0 %v2885, 24
      %v3385 = vpop.permute.xlu0 %3384
      %3386 = vrot.lane.b32.xlu0 %v2886, 24
      %v3387 = vpop.permute.xlu0 %3386
      %3388 = vrot.lane.b32.xlu0 %v2887, 24
      %v3389 = vpop.permute.xlu0 %3388
      %3390 = vrot.lane.b32.xlu0 %v2888, 24
      %v3391 = vpop.permute.xlu0 %3390
      %3392 = vrot.lane.b32.xlu0 %v2889, 24
      %v3393 = vpop.permute.xlu0 %3392
      %3394 = vrot.lane.b32.xlu0 %v2890, 24
      %v3395 = vpop.permute.xlu0 %3394
      %3396 = vrot.lane.b32.xlu0 %v2891, 24
      %v3397 = vpop.permute.xlu0 %3396
      %3398 = vrot.lane.b32.xlu0 %v2892, 24
      %v3399 = vpop.permute.xlu0 %3398
      %3400 = vrot.lane.b32.xlu0 %v2893, 24
      %v3401 = vpop.permute.xlu0 %3400
      %3402 = vrot.lane.b32.xlu0 %v2894, 24
      %v3403 = vpop.permute.xlu0 %3402
      %3404 = vrot.lane.b32.xlu0 %v2895, 24
      %v3405 = vpop.permute.xlu0 %3404
      %3406 = vrot.lane.b32.xlu0 %v2896, 24
      %v3407 = vpop.permute.xlu0 %3406
      %3408 = vrot.lane.b32.xlu0 %v2897, 24
      %v3409 = vpop.permute.xlu0 %3408
      %3410 = vrot.lane.b32.xlu0 %v2898, 24
      %v3411 = vpop.permute.xlu0 %3410
      %3476 = vrot.lane.b32.xlu0 %v2899, 32
      %v3477 = vpop.permute.xlu0 %3476
      %3478 = vrot.lane.b32.xlu0 %v2900, 32
      %v3479 = vpop.permute.xlu0 %3478
      %3480 = vrot.lane.b32.xlu0 %v2901, 32
      %v3481 = vpop.permute.xlu0 %3480
      %3482 = vrot.lane.b32.xlu0 %v2902, 32
      %v3483 = vpop.permute.xlu0 %3482
      %3484 = vrot.lane.b32.xlu0 %v2903, 32
      %v3485 = vpop.permute.xlu0 %3484
      %3486 = vrot.lane.b32.xlu0 %v2904, 32
      %v3487 = vpop.permute.xlu0 %3486
      %3488 = vrot.lane.b32.xlu0 %v2905, 32
      %v3489 = vpop.permute.xlu0 %3488
      %3490 = vrot.lane.b32.xlu0 %v2906, 32
      %v3491 = vpop.permute.xlu0 %3490
      %3492 = vrot.lane.b32.xlu0 %v2907, 32
      %v3493 = vpop.permute.xlu0 %3492
      %3494 = vrot.lane.b32.xlu0 %v2908, 32
      %v3495 = vpop.permute.xlu0 %3494
      %3496 = vrot.lane.b32.xlu0 %v2909, 32
      %v3497 = vpop.permute.xlu0 %3496
      %3498 = vrot.lane.b32.xlu0 %v2910, 32
      %v3499 = vpop.permute.xlu0 %3498
      %3500 = vrot.lane.b32.xlu0 %v2911, 32
      %v3501 = vpop.permute.xlu0 %3500
      %3502 = vrot.lane.b32.xlu0 %v2912, 32
      %v3503 = vpop.permute.xlu0 %3502
      %3504 = vrot.lane.b32.xlu0 %v2913, 32
      %v3505 = vpop.permute.xlu0 %3504
      %3506 = vrot.lane.b32.xlu0 %v2914, 32
      %v3507 = vpop.permute.xlu0 %3506
      %3508 = vrot.lane.b32.xlu0 %v2915, 32
      %v3509 = vpop.permute.xlu0 %3508
      %3510 = vrot.lane.b32.xlu0 %v2916, 32
      %v3511 = vpop.permute.xlu0 %3510
      %3512 = vrot.lane.b32.xlu0 %v2917, 32
      %v3513 = vpop.permute.xlu0 %3512
      %3514 = vrot.lane.b32.xlu0 %v2918, 32
      %v3515 = vpop.permute.xlu0 %3514
      %3516 = vrot.lane.b32.xlu0 %v2919, 32
      %v3517 = vpop.permute.xlu0 %3516
      %3518 = vrot.lane.b32.xlu0 %v2920, 32
      %v3519 = vpop.permute.xlu0 %3518
      %3520 = vrot.lane.b32.xlu0 %v2921, 32
      %v3521 = vpop.permute.xlu0 %3520
      %3522 = vrot.lane.b32.xlu0 %v2922, 32
      %v3523 = vpop.permute.xlu0 %3522
      %3524 = vrot.lane.b32.xlu0 %v2923, 32
      %v3525 = vpop.permute.xlu0 %3524
      %3526 = vrot.lane.b32.xlu0 %v2924, 32
      %v3527 = vpop.permute.xlu0 %3526
      %3528 = vrot.lane.b32.xlu0 %v2925, 32
      %v3529 = vpop.permute.xlu0 %3528
      %3530 = vrot.lane.b32.xlu0 %v2926, 32
      %v3531 = vpop.permute.xlu0 %3530
      %3532 = vrot.lane.b32.xlu0 %v2927, 32
      %v3533 = vpop.permute.xlu0 %3532
      %3534 = vrot.lane.b32.xlu0 %v2928, 32
      %v3535 = vpop.permute.xlu0 %3534
      %3536 = vrot.lane.b32.xlu0 %v2929, 32
      %v3537 = vpop.permute.xlu0 %3536
      %3538 = vrot.lane.b32.xlu0 %v2930, 32
      %v3539 = vpop.permute.xlu0 %3538
      %3604 = vrot.lane.b32.xlu0 %v2931, 40
      %v3605 = vpop.permute.xlu0 %3604
      %3606 = vrot.lane.b32.xlu0 %v2932, 40
      %v3607 = vpop.permute.xlu0 %3606
      %3608 = vrot.lane.b32.xlu0 %v2933, 40
      %v3609 = vpop.permute.xlu0 %3608
      %3610 = vrot.lane.b32.xlu0 %v2934, 40
      %v3611 = vpop.permute.xlu0 %3610
      %3612 = vrot.lane.b32.xlu0 %v2935, 40
      %v3613 = vpop.permute.xlu0 %3612
      %3614 = vrot.lane.b32.xlu0 %v2936, 40
      %v3615 = vpop.permute.xlu0 %3614
      %3616 = vrot.lane.b32.xlu0 %v2937, 40
      %v3617 = vpop.permute.xlu0 %3616
      %3618 = vrot.lane.b32.xlu0 %v2938, 40
      %v3619 = vpop.permute.xlu0 %3618
      %3620 = vrot.lane.b32.xlu0 %v2939, 40
      %v3621 = vpop.permute.xlu0 %3620
      %3622 = vrot.lane.b32.xlu0 %v2940, 40
      %v3623 = vpop.permute.xlu0 %3622
      %3624 = vrot.lane.b32.xlu0 %v2941, 40
      %v3625 = vpop.permute.xlu0 %3624
      %3626 = vrot.lane.b32.xlu0 %v2942, 40
      %v3627 = vpop.permute.xlu0 %3626
      %3628 = vrot.lane.b32.xlu0 %v2943, 40
      %v3629 = vpop.permute.xlu0 %3628
      %3630 = vrot.lane.b32.xlu0 %v2944, 40
      %v3631 = vpop.permute.xlu0 %3630
      %3632 = vrot.lane.b32.xlu0 %v2945, 40
      %v3633 = vpop.permute.xlu0 %3632
      %3634 = vrot.lane.b32.xlu0 %v2946, 40
      %v3635 = vpop.permute.xlu0 %3634
      %3636 = vrot.lane.b32.xlu0 %v2947, 40
      %v3637 = vpop.permute.xlu0 %3636
      %3638 = vrot.lane.b32.xlu0 %v2948, 40
      %v3639 = vpop.permute.xlu0 %3638
      %3640 = vrot.lane.b32.xlu0 %v2949, 40
      %v3641 = vpop.permute.xlu0 %3640
      %3642 = vrot.lane.b32.xlu0 %v2950, 40
      %v3643 = vpop.permute.xlu0 %3642
      %3644 = vrot.lane.b32.xlu0 %v2951, 40
      %v3645 = vpop.permute.xlu0 %3644
      %3646 = vrot.lane.b32.xlu0 %v2952, 40
      %v3647 = vpop.permute.xlu0 %3646
      %3648 = vrot.lane.b32.xlu0 %v2953, 40
      %v3649 = vpop.permute.xlu0 %3648
      %3650 = vrot.lane.b32.xlu0 %v2954, 40
      %v3651 = vpop.permute.xlu0 %3650
      %3652 = vrot.lane.b32.xlu0 %v2955, 40
      %v3653 = vpop.permute.xlu0 %3652
      %3654 = vrot.lane.b32.xlu0 %v2956, 40
      %v3655 = vpop.permute.xlu0 %3654
      %3656 = vrot.lane.b32.xlu0 %v2957, 40
      %v3657 = vpop.permute.xlu0 %3656
      %3658 = vrot.lane.b32.xlu0 %v2958, 40
      %v3659 = vpop.permute.xlu0 %3658
      %3660 = vrot.lane.b32.xlu0 %v2959, 40
      %v3661 = vpop.permute.xlu0 %3660
      %3662 = vrot.lane.b32.xlu0 %v2960, 40
      %v3663 = vpop.permute.xlu0 %3662
      %3664 = vrot.lane.b32.xlu0 %v2961, 40
      %v3665 = vpop.permute.xlu0 %3664
      %3666 = vrot.lane.b32.xlu0 %v2962, 40
      %v3667 = vpop.permute.xlu0 %3666
      %3732 = vrot.lane.b32.xlu0 %v2964, 48
      %v3733 = vpop.permute.xlu0 %3732
      %3734 = vrot.lane.b32.xlu0 %v2965, 48
      %v3735 = vpop.permute.xlu0 %3734
      %3736 = vrot.lane.b32.xlu0 %v2966, 48
      %v3737 = vpop.permute.xlu0 %3736
      %3738 = vrot.lane.b32.xlu0 %v2967, 48
      %v3739 = vpop.permute.xlu0 %3738
      %3740 = vrot.lane.b32.xlu0 %v2968, 48
      %v3741 = vpop.permute.xlu0 %3740
      %3742 = vrot.lane.b32.xlu0 %v2969, 48
      %v3743 = vpop.permute.xlu0 %3742
      %3744 = vrot.lane.b32.xlu0 %v2970, 48
      %v3745 = vpop.permute.xlu0 %3744
      %3746 = vrot.lane.b32.xlu0 %v2971, 48
      %v3747 = vpop.permute.xlu0 %3746
      %3748 = vrot.lane.b32.xlu0 %v2972, 48
      %v3749 = vpop.permute.xlu0 %3748
      %3750 = vrot.lane.b32.xlu0 %v2973, 48
      %v3751 = vpop.permute.xlu0 %3750
      %3752 = vrot.lane.b32.xlu0 %v2974, 48
      %v3753 = vpop.permute.xlu0 %3752
      %3754 = vrot.lane.b32.xlu0 %v2975, 48
      %v3755 = vpop.permute.xlu0 %3754
      %3756 = vrot.lane.b32.xlu0 %v2976, 48
      %v3757 = vpop.permute.xlu0 %3756
      %3758 = vrot.lane.b32.xlu0 %v2977, 48
      %v3759 = vpop.permute.xlu0 %3758
      %3760 = vrot.lane.b32.xlu0 %v2978, 48
      %v3761 = vpop.permute.xlu0 %3760
      %3762 = vrot.lane.b32.xlu0 %v2979, 48
      %v3763 = vpop.permute.xlu0 %3762
      %3764 = vrot.lane.b32.xlu0 %v2980, 48
      %v3765 = vpop.permute.xlu0 %3764
      %3766 = vrot.lane.b32.xlu0 %v2981, 48
      %v3767 = vpop.permute.xlu0 %3766
      %3768 = vrot.lane.b32.xlu0 %v2982, 48
      %v3769 = vpop.permute.xlu0 %3768
      %3770 = vrot.lane.b32.xlu0 %v2983, 48
      %v3771 = vpop.permute.xlu0 %3770
      %3772 = vrot.lane.b32.xlu0 %v2984, 48
      %v3773 = vpop.permute.xlu0 %3772
      %3774 = vrot.lane.b32.xlu0 %v2985, 48
      %v3775 = vpop.permute.xlu0 %3774
      %3776 = vrot.lane.b32.xlu0 %v2986, 48
      %v3777 = vpop.permute.xlu0 %3776
      %3778 = vrot.lane.b32.xlu0 %v2987, 48
      %v3779 = vpop.permute.xlu0 %3778
      %3780 = vrot.lane.b32.xlu0 %v2988, 48
      %v3781 = vpop.permute.xlu0 %3780
      %3782 = vrot.lane.b32.xlu0 %v2989, 48
      %v3783 = vpop.permute.xlu0 %3782
      %3784 = vrot.lane.b32.xlu0 %v2990, 48
      %v3785 = vpop.permute.xlu0 %3784
      %3786 = vrot.lane.b32.xlu0 %v2991, 48
      %v3787 = vpop.permute.xlu0 %3786
      %3788 = vrot.lane.b32.xlu0 %v2992, 48
      %v3789 = vpop.permute.xlu0 %3788
      %3790 = vrot.lane.b32.xlu0 %v2993, 48
      %v3791 = vpop.permute.xlu0 %3790
      %3792 = vrot.lane.b32.xlu0 %v2994, 48
      %v3793 = vpop.permute.xlu0 %3792
      %3794 = vrot.lane.b32.xlu0 %v2995, 48
      %v3795 = vpop.permute.xlu0 %3794
      %3860 = vrot.lane.b32.xlu0 %v2996, 56
      %v3861 = vpop.permute.xlu0 %3860
      %3862 = vrot.lane.b32.xlu0 %v2997, 56
      %v3863 = vpop.permute.xlu0 %3862
      %3864 = vrot.lane.b32.xlu0 %v2998, 56
      %v3865 = vpop.permute.xlu0 %3864
      %3866 = vrot.lane.b32.xlu0 %v2999, 56
      %v3867 = vpop.permute.xlu0 %3866
      %3868 = vrot.lane.b32.xlu0 %v3000, 56
      %v3869 = vpop.permute.xlu0 %3868
      %3870 = vrot.lane.b32.xlu0 %v3001, 56
      %v3871 = vpop.permute.xlu0 %3870
      %3872 = vrot.lane.b32.xlu0 %v3002, 56
      %v3873 = vpop.permute.xlu0 %3872
      %3874 = vrot.lane.b32.xlu0 %v3003, 56
      %v3875 = vpop.permute.xlu0 %3874
      %3876 = vrot.lane.b32.xlu0 %v3004, 56
      %v3877 = vpop.permute.xlu0 %3876
      %3878 = vrot.lane.b32.xlu0 %v3005, 56
      %v3879 = vpop.permute.xlu0 %3878
      %3880 = vrot.lane.b32.xlu0 %v3006, 56
      %v3881 = vpop.permute.xlu0 %3880
      %3882 = vrot.lane.b32.xlu0 %v3007, 56
      %v3883 = vpop.permute.xlu0 %3882
      %3884 = vrot.lane.b32.xlu0 %v3008, 56
      %v3885 = vpop.permute.xlu0 %3884
      %3886 = vrot.lane.b32.xlu0 %v3009, 56
      %v3887 = vpop.permute.xlu0 %3886
      %3888 = vrot.lane.b32.xlu0 %v3010, 56
      %v3889 = vpop.permute.xlu0 %3888
      %3890 = vrot.lane.b32.xlu0 %v3011, 56
      %v3891 = vpop.permute.xlu0 %3890
      %3892 = vrot.lane.b32.xlu0 %v3012, 56
      %v3893 = vpop.permute.xlu0 %3892
      %3894 = vrot.lane.b32.xlu0 %v3013, 56
      %v3895 = vpop.permute.xlu0 %3894
      %3896 = vrot.lane.b32.xlu0 %v3014, 56
      %v3897 = vpop.permute.xlu0 %3896
      %3898 = vrot.lane.b32.xlu0 %v3015, 56
      %v3899 = vpop.permute.xlu0 %3898
      %3900 = vrot.lane.b32.xlu0 %v3016, 56
      %v3901 = vpop.permute.xlu0 %3900
      %3902 = vrot.lane.b32.xlu0 %v3017, 56
      %v3903 = vpop.permute.xlu0 %3902
      %3904 = vrot.lane.b32.xlu0 %v3018, 56
      %v3905 = vpop.permute.xlu0 %3904
      %3906 = vrot.lane.b32.xlu0 %v3019, 56
      %v3907 = vpop.permute.xlu0 %3906
      %3908 = vrot.lane.b32.xlu0 %v3020, 56
      %v3909 = vpop.permute.xlu0 %3908
      %3910 = vrot.lane.b32.xlu0 %v3021, 56
      %v3911 = vpop.permute.xlu0 %3910
      %3912 = vrot.lane.b32.xlu0 %v3022, 56
      %v3913 = vpop.permute.xlu0 %3912
      %3914 = vrot.lane.b32.xlu0 %v3023, 56
      %v3915 = vpop.permute.xlu0 %3914
      %3916 = vrot.lane.b32.xlu0 %v3024, 56
      %v3917 = vpop.permute.xlu0 %3916
      %3918 = vrot.lane.b32.xlu0 %v3025, 56
      %v3919 = vpop.permute.xlu0 %3918
      %3920 = vrot.lane.b32.xlu0 %v3026, 56
      %v3921 = vpop.permute.xlu0 %3920
      %3922 = vrot.lane.b32.xlu0 %v3027, 56
      %v3923 = vpop.permute.xlu0 %3922
      %3988 = vrot.lane.b32.xlu0 %v3028, 64
      %v3989 = vpop.permute.xlu0 %3988
      %3990 = vrot.lane.b32.xlu0 %v3029, 64
      %v3991 = vpop.permute.xlu0 %3990
      %3992 = vrot.lane.b32.xlu0 %v3030, 64
      %v3993 = vpop.permute.xlu0 %3992
      %3994 = vrot.lane.b32.xlu0 %v3031, 64
      %v3995 = vpop.permute.xlu0 %3994
      %3996 = vrot.lane.b32.xlu0 %v3032, 64
      %v3997 = vpop.permute.xlu0 %3996
      %3998 = vrot.lane.b32.xlu0 %v3033, 64
      %v3999 = vpop.permute.xlu0 %3998
      %4000 = vrot.lane.b32.xlu0 %v3034, 64
      %v4001 = vpop.permute.xlu0 %4000
      %4002 = vrot.lane.b32.xlu0 %v3035, 64
      %v4003 = vpop.permute.xlu0 %4002
      %4004 = vrot.lane.b32.xlu0 %v3036, 64
      %v4005 = vpop.permute.xlu0 %4004
      %4006 = vrot.lane.b32.xlu0 %v3037, 64
      %v4007 = vpop.permute.xlu0 %4006
      %4008 = vrot.lane.b32.xlu0 %v3038, 64
      %v4009 = vpop.permute.xlu0 %4008
      %4010 = vrot.lane.b32.xlu0 %v3039, 64
      %v4011 = vpop.permute.xlu0 %4010
      %4012 = vrot.lane.b32.xlu0 %v3040, 64
      %v4013 = vpop.permute.xlu0 %4012
      %4014 = vrot.lane.b32.xlu0 %v3041, 64
      %v4015 = vpop.permute.xlu0 %4014
      %4016 = vrot.lane.b32.xlu0 %v3042, 64
      %v4017 = vpop.permute.xlu0 %4016
      %4018 = vrot.lane.b32.xlu0 %v3043, 64
      %v4019 = vpop.permute.xlu0 %4018
      %4020 = vrot.lane.b32.xlu0 %v3044, 64
      %v4021 = vpop.permute.xlu0 %4020
      %4022 = vrot.lane.b32.xlu0 %v3045, 64
      %v4023 = vpop.permute.xlu0 %4022
      %4024 = vrot.lane.b32.xlu0 %v3046, 64
      %v4025 = vpop.permute.xlu0 %4024
      %4026 = vrot.lane.b32.xlu0 %v3047, 64
      %v4027 = vpop.permute.xlu0 %4026
      %4028 = vrot.lane.b32.xlu0 %v3048, 64
      %v4029 = vpop.permute.xlu0 %4028
      %4030 = vrot.lane.b32.xlu0 %v3049, 64
      %v4031 = vpop.permute.xlu0 %4030
      %4032 = vrot.lane.b32.xlu0 %v3050, 64
      %v4033 = vpop.permute.xlu0 %4032
      %4034 = vrot.lane.b32.xlu0 %v3051, 64
      %v4035 = vpop.permute.xlu0 %4034
      %4036 = vrot.lane.b32.xlu0 %v3052, 64
      %v4037 = vpop.permute.xlu0 %4036
      %4038 = vrot.lane.b32.xlu0 %v3053, 64
      %v4039 = vpop.permute.xlu0 %4038
      %4040 = vrot.lane.b32.xlu0 %v3054, 64
      %v4041 = vpop.permute.xlu0 %4040
      %4042 = vrot.lane.b32.xlu0 %v3055, 64
      %v4043 = vpop.permute.xlu0 %4042
      %4044 = vrot.lane.b32.xlu0 %v3056, 64
      %v4045 = vpop.permute.xlu0 %4044
      %4046 = vrot.lane.b32.xlu0 %v3057, 64
      %v4047 = vpop.permute.xlu0 %4046
      %4048 = vrot.lane.b32.xlu0 %v3058, 64
      %v4049 = vpop.permute.xlu0 %4048
      %4050 = vrot.lane.b32.xlu0 %v3059, 64
      %v4051 = vpop.permute.xlu0 %4050
      %v4084 = vsel %vm608, %v2771, %v3093
      %v4085 = vsel %vm608, %v2772, %v3095
      %v4086 = vsel %vm608, %v2773, %v3097
      %v4087 = vsel %vm608, %v2774, %v3099
      %v4088 = vsel %vm608, %v2775, %v3101
      %v4089 = vsel %vm608, %v2776, %v3103
      %v4090 = vsel %vm608, %v2777, %v3105
      %v4091 = vsel %vm608, %v2778, %v3107
      %v4092 = vsel %vm608, %v2779, %v3109
      %v4093 = vsel %vm608, %v2780, %v3111
      %v4094 = vsel %vm608, %v2781, %v3113
      %v4095 = vsel %vm608, %v2782, %v3115
      %v4096 = vsel %vm608, %v2783, %v3117
      %v4097 = vsel %vm608, %v2784, %v3119
      %v4098 = vsel %vm608, %v2785, %v3121
      %v4099 = vsel %vm608, %v2786, %v3123
      %v4100 = vsel %vm608, %v2787, %v3125
      %v4101 = vsel %vm608, %v2788, %v3127
      %v4102 = vsel %vm608, %v2789, %v3129
      %v4103 = vsel %vm608, %v2790, %v3131
      %v4104 = vsel %vm608, %v2791, %v3133
      %v4105 = vsel %vm608, %v2792, %v3135
      %v4106 = vsel %vm608, %v2793, %v3137
      %v4107 = vsel %vm608, %v2794, %v3139
      %v4108 = vsel %vm608, %v2795, %v3141
      %v4109 = vsel %vm608, %v2796, %v3143
      %v4110 = vsel %vm608, %v2797, %v3145
      %v4111 = vsel %vm608, %v2798, %v3147
      %v4112 = vsel %vm608, %v2799, %v3149
      %v4113 = vsel %vm608, %v2800, %v3151
      %v4114 = vsel %vm608, %v2801, %v3153
      %v4115 = vsel %vm608, %v2802, %v3155
      %v4116 = vsel %vm2027, %v4084, %v3221
      %v4117 = vsel %vm2027, %v4085, %v3223
      %v4118 = vsel %vm2027, %v4086, %v3225
      %v4119 = vsel %vm2027, %v4087, %v3227
      %v4120 = vsel %vm2027, %v4088, %v3229
      %v4121 = vsel %vm2027, %v4089, %v3231
      %v4122 = vsel %vm2027, %v4090, %v3233
      %v4123 = vsel %vm2027, %v4091, %v3235
      %v4124 = vsel %vm2027, %v4092, %v3237
      %v4125 = vsel %vm2027, %v4093, %v3239
      %v4126 = vsel %vm2027, %v4094, %v3241
      %v4127 = vsel %vm2027, %v4095, %v3243
      %v4128 = vsel %vm2027, %v4096, %v3245
      %v4129 = vsel %vm2027, %v4097, %v3247
      %v4130 = vsel %vm2027, %v4098, %v3249
      %v4131 = vsel %vm2027, %v4099, %v3251
      %v4132 = vsel %vm2027, %v4100, %v3253
      %v4133 = vsel %vm2027, %v4101, %v3255
      %v4134 = vsel %vm2027, %v4102, %v3257
      %v4135 = vsel %vm2027, %v4103, %v3259
      %v4136 = vsel %vm2027, %v4104, %v3261
      %v4137 = vsel %vm2027, %v4105, %v3263
      %v4138 = vsel %vm2027, %v4106, %v3265
      %v4139 = vsel %vm2027, %v4107, %v3267
      %v4140 = vsel %vm2027, %v4108, %v3269
      %v4141 = vsel %vm2027, %v4109, %v3271
      %v4142 = vsel %vm2027, %v4110, %v3273
      %v4143 = vsel %vm2027, %v4111, %v3275
      %v4144 = vsel %vm2027, %v4112, %v3277
      %v4145 = vsel %vm2027, %v4113, %v3279
      %v4146 = vsel %vm2027, %v4114, %v3281
      %v4147 = vsel %vm2027, %v4115, %v3283
      %v4148 = vsel %vm2093, %v4116, %v3349
      %v4149 = vsel %vm2093, %v4117, %v3351
      %v4150 = vsel %vm2093, %v4118, %v3353
      %v4151 = vsel %vm2093, %v4119, %v3355
      %v4152 = vsel %vm2093, %v4120, %v3357
      %v4153 = vsel %vm2093, %v4121, %v3359
      %v4154 = vsel %vm2093, %v4122, %v3361
      %v4155 = vsel %vm2093, %v4123, %v3363
      %v4156 = vsel %vm2093, %v4124, %v3365
      %v4157 = vsel %vm2093, %v4125, %v3367
      %v4158 = vsel %vm2093, %v4126, %v3369
      %v4159 = vsel %vm2093, %v4127, %v3371
      %v4160 = vsel %vm2093, %v4128, %v3373
      %v4161 = vsel %vm2093, %v4129, %v3375
      %v4162 = vsel %vm2093, %v4130, %v3377
      %v4163 = vsel %vm2093, %v4131, %v3379
      %v4164 = vsel %vm2093, %v4132, %v3381
      %v4165 = vsel %vm2093, %v4133, %v3383
      %v4166 = vsel %vm2093, %v4134, %v3385
      %v4167 = vsel %vm2093, %v4135, %v3387
      %v4168 = vsel %vm2093, %v4136, %v3389
      %v4169 = vsel %vm2093, %v4137, %v3391
      %v4170 = vsel %vm2093, %v4138, %v3393
      %v4171 = vsel %vm2093, %v4139, %v3395
      %v4172 = vsel %vm2093, %v4140, %v3397
      %v4173 = vsel %vm2093, %v4141, %v3399
      %v4174 = vsel %vm2093, %v4142, %v3401
      %v4175 = vsel %vm2093, %v4143, %v3403
      %v4176 = vsel %vm2093, %v4144, %v3405
      %v4177 = vsel %vm2093, %v4145, %v3407
      %v4178 = vsel %vm2093, %v4146, %v3409
      %v4179 = vsel %vm2093, %v4147, %v3411
      %v4180 = vsel %vm2159, %v4148, %v3477
      %v4181 = vsel %vm2159, %v4149, %v3479
      %v4182 = vsel %vm2159, %v4150, %v3481
      %v4183 = vsel %vm2159, %v4151, %v3483
      %v4184 = vsel %vm2159, %v4152, %v3485
      %v4185 = vsel %vm2159, %v4153, %v3487
      %v4186 = vsel %vm2159, %v4154, %v3489
      %v4187 = vsel %vm2159, %v4155, %v3491
      %v4188 = vsel %vm2159, %v4156, %v3493
      %v4189 = vsel %vm2159, %v4157, %v3495
      %v4190 = vsel %vm2159, %v4158, %v3497
      %v4191 = vsel %vm2159, %v4159, %v3499
      %v4192 = vsel %vm2159, %v4160, %v3501
      %v4193 = vsel %vm2159, %v4161, %v3503
      %v4194 = vsel %vm2159, %v4162, %v3505
      %v4195 = vsel %vm2159, %v4163, %v3507
      %v4196 = vsel %vm2159, %v4164, %v3509
      %v4197 = vsel %vm2159, %v4165, %v3511
      %v4198 = vsel %vm2159, %v4166, %v3513
      %v4199 = vsel %vm2159, %v4167, %v3515
      %v4200 = vsel %vm2159, %v4168, %v3517
      %v4201 = vsel %vm2159, %v4169, %v3519
      %v4202 = vsel %vm2159, %v4170, %v3521
      %v4203 = vsel %vm2159, %v4171, %v3523
      %v4204 = vsel %vm2159, %v4172, %v3525
      %v4205 = vsel %vm2159, %v4173, %v3527
      %v4206 = vsel %vm2159, %v4174, %v3529
      %v4207 = vsel %vm2159, %v4175, %v3531
      %v4208 = vsel %vm2159, %v4176, %v3533
      %v4209 = vsel %vm2159, %v4177, %v3535
      %v4210 = vsel %vm2159, %v4178, %v3537
      %v4211 = vsel %vm2159, %v4179, %v3539
      %vm4212 = vcmask 326656
      %v4213 = vsel %vm4212, %v4180, %v3605
      %v4214 = vsel %vm4212, %v4181, %v3607
      %v4215 = vsel %vm4212, %v4182, %v3609
      %v4216 = vsel %vm4212, %v4183, %v3611
      %v4217 = vsel %vm4212, %v4184, %v3613
      %v4218 = vsel %vm4212, %v4185, %v3615
      %v4219 = vsel %vm4212, %v4186, %v3617
      %v4220 = vsel %vm4212, %v4187, %v3619
      %v4221 = vsel %vm4212, %v4188, %v3621
      %v4222 = vsel %vm4212, %v4189, %v3623
      %v4223 = vsel %vm4212, %v4190, %v3625
      %v4224 = vsel %vm4212, %v4191, %v3627
      %v4225 = vsel %vm4212, %v4192, %v3629
      %v4226 = vsel %vm4212, %v4193, %v3631
      %v4227 = vsel %vm4212, %v4194, %v3633
      %v4228 = vsel %vm4212, %v4195, %v3635
      %v4229 = vsel %vm4212, %v4196, %v3637
      %v4230 = vsel %vm4212, %v4197, %v3639
      %v4231 = vsel %vm4212, %v4198, %v3641
      %v4232 = vsel %vm4212, %v4199, %v3643
      %v4233 = vsel %vm4212, %v4200, %v3645
      %v4234 = vsel %vm4212, %v4201, %v3647
      %v4235 = vsel %vm4212, %v4202, %v3649
      %v4236 = vsel %vm4212, %v4203, %v3651
      %v4237 = vsel %vm4212, %v4204, %v3653
      %v4238 = vsel %vm4212, %v4205, %v3655
      %v4239 = vsel %vm4212, %v4206, %v3657
      %v4240 = vsel %vm4212, %v4207, %v3659
      %v4241 = vsel %vm4212, %v4208, %v3661
      %v4242 = vsel %vm4212, %v4209, %v3663
      %v4243 = vsel %vm4212, %v4210, %v3665
      %v4244 = vsel %vm4212, %v4211, %v3667
      %vm4245 = vcmask 392192
      %v4246 = vsel %vm4245, %v4213, %v3733
      %v4247 = vsel %vm4245, %v4214, %v3735
      %v4248 = vsel %vm4245, %v4215, %v3737
      %v4249 = vsel %vm4245, %v4216, %v3739
      %v4250 = vsel %vm4245, %v4217, %v3741
      %v4251 = vsel %vm4245, %v4218, %v3743
      %v4252 = vsel %vm4245, %v4219, %v3745
      %v4253 = vsel %vm4245, %v4220, %v3747
      %v4254 = vsel %vm4245, %v4221, %v3749
      %v4255 = vsel %vm4245, %v4222, %v3751
      %v4256 = vsel %vm4245, %v4223, %v3753
      %v4257 = vsel %vm4245, %v4224, %v3755
      %v4258 = vsel %vm4245, %v4225, %v3757
      %v4259 = vsel %vm4245, %v4226, %v3759
      %v4260 = vsel %vm4245, %v4227, %v3761
      %v4261 = vsel %vm4245, %v4228, %v3763
      %v4262 = vsel %vm4245, %v4229, %v3765
      %v4263 = vsel %vm4245, %v4230, %v3767
      %v4264 = vsel %vm4245, %v4231, %v3769
      %v4265 = vsel %vm4245, %v4232, %v3771
      %v4266 = vsel %vm4245, %v4233, %v3773
      %v4267 = vsel %vm4245, %v4234, %v3775
      %v4268 = vsel %vm4245, %v4235, %v3777
      %v4269 = vsel %vm4245, %v4236, %v3779
      %v4270 = vsel %vm4245, %v4237, %v3781
      %v4271 = vsel %vm4245, %v4238, %v3783
      %v4272 = vsel %vm4245, %v4239, %v3785
      %v4273 = vsel %vm4245, %v4240, %v3787
      %v4274 = vsel %vm4245, %v4241, %v3789
      %v4275 = vsel %vm4245, %v4242, %v3791
      %v4276 = vsel %vm4245, %v4243, %v3793
      %v4277 = vsel %vm4245, %v4244, %v3795
      %vm4278 = vcmask 457728
      %v4279 = vsel %vm4278, %v4246, %v3861
      %v4280 = vsel %vm4278, %v4247, %v3863
      %v4281 = vsel %vm4278, %v4248, %v3865
      %v4282 = vsel %vm4278, %v4249, %v3867
      %v4283 = vsel %vm4278, %v4250, %v3869
      %v4284 = vsel %vm4278, %v4251, %v3871
      %v4285 = vsel %vm4278, %v4252, %v3873
      %v4286 = vsel %vm4278, %v4253, %v3875
      %v4287 = vsel %vm4278, %v4254, %v3877
      %v4288 = vsel %vm4278, %v4255, %v3879
      %v4289 = vsel %vm4278, %v4256, %v3881
      %v4290 = vsel %vm4278, %v4257, %v3883
      %v4291 = vsel %vm4278, %v4258, %v3885
      %v4292 = vsel %vm4278, %v4259, %v3887
      %v4293 = vsel %vm4278, %v4260, %v3889
      %v4294 = vsel %vm4278, %v4261, %v3891
      %v4295 = vsel %vm4278, %v4262, %v3893
      %v4296 = vsel %vm4278, %v4263, %v3895
      %v4297 = vsel %vm4278, %v4264, %v3897
      %v4298 = vsel %vm4278, %v4265, %v3899
      %v4299 = vsel %vm4278, %v4266, %v3901
      %v4300 = vsel %vm4278, %v4267, %v3903
      %v4301 = vsel %vm4278, %v4268, %v3905
      %v4302 = vsel %vm4278, %v4269, %v3907
      %v4303 = vsel %vm4278, %v4270, %v3909
      %v4304 = vsel %vm4278, %v4271, %v3911
      %v4305 = vsel %vm4278, %v4272, %v3913
      %v4306 = vsel %vm4278, %v4273, %v3915
      %v4307 = vsel %vm4278, %v4274, %v3917
      %v4308 = vsel %vm4278, %v4275, %v3919
      %v4309 = vsel %vm4278, %v4276, %v3921
      %v4310 = vsel %vm4278, %v4277, %v3923
      %vm4311 = vcmask 523264
      %v4312 = vsel %vm4311, %v4279, %v3989
      %v4313 = vsel %vm4311, %v4280, %v3991
      %v4314 = vsel %vm4311, %v4281, %v3993
      %v4315 = vsel %vm4311, %v4282, %v3995
      %v4316 = vsel %vm4311, %v4283, %v3997
      %v4317 = vsel %vm4311, %v4284, %v3999
      %v4318 = vsel %vm4311, %v4285, %v4001
      %v4319 = vsel %vm4311, %v4286, %v4003
      %v4320 = vsel %vm4311, %v4287, %v4005
      %v4321 = vsel %vm4311, %v4288, %v4007
      %v4322 = vsel %vm4311, %v4289, %v4009
      %v4323 = vsel %vm4311, %v4290, %v4011
      %v4324 = vsel %vm4311, %v4291, %v4013
      %v4325 = vsel %vm4311, %v4292, %v4015
      %v4326 = vsel %vm4311, %v4293, %v4017
      %v4327 = vsel %vm4311, %v4294, %v4019
      %v4328 = vsel %vm4311, %v4295, %v4021
      %v4329 = vsel %vm4311, %v4296, %v4023
      %v4330 = vsel %vm4311, %v4297, %v4025
      %v4331 = vsel %vm4311, %v4298, %v4027
      %v4332 = vsel %vm4311, %v4299, %v4029
      %v4333 = vsel %vm4311, %v4300, %v4031
      %v4334 = vsel %vm4311, %v4301, %v4033
      %v4335 = vsel %vm4311, %v4302, %v4035
      %v4336 = vsel %vm4311, %v4303, %v4037
      %v4337 = vsel %vm4311, %v4304, %v4039
      %v4338 = vsel %vm4311, %v4305, %v4041
      %v4339 = vsel %vm4311, %v4306, %v4043
      %v4340 = vsel %vm4311, %v4307, %v4045
      %v4341 = vsel %vm4311, %v4308, %v4047
      %v4342 = vsel %vm4311, %v4309, %v4049
      %v4343 = vsel %vm4311, %v4310, %v4051
      %v4344 = vld [vmem:[%s2] sm:$0xff]
      %v4345 = vld [vmem:[%s2 + $0x8] sm:$0xff]
      %v4346 = vld [vmem:[%s2 + $0x10] sm:$0xff]
      %v4347 = vld [vmem:[%s2 + $0x18] sm:$0xff]
      %v4348 = vld [vmem:[%s2 + $0x20] sm:$0xff]
      %v4349 = vld [vmem:[%s2 + $0x28] sm:$0xff]
      %v4350 = vld [vmem:[%s2 + $0x30] sm:$0xff]
      %v4351 = vld [vmem:[%s2 + $0x38] sm:$0xff]
      %v4352 = vld [vmem:[%s2 + $0x40] sm:$0xff]
      %v4353 = vld [vmem:[%s6] sm:$0x1]
      %v4355 = vlaneseq
      %v4356 = vshrl.u32 %v4355, 7
      %v4357 = vsub.s32 0, %v4356
      %v4358 = vrot.slane %v4353, %v4357
      %vm4360 = vcmask 588800
      %v4362 = vsel %vm4360, %v4312, 0
      %v4365 = vsel %vm4360, %v4313, 0
      %v4368 = vsel %vm4360, %v4314, 0
      %v4371 = vsel %vm4360, %v4315, 0
      %v4374 = vsel %vm4360, %v4316, 0
      %v4377 = vsel %vm4360, %v4317, 0
      %v4380 = vsel %vm4360, %v4318, 0
      %v4383 = vsel %vm4360, %v4319, 0
      %v4386 = vsel %vm4360, %v4320, 0
      %v4389 = vsel %vm4360, %v4321, 0
      %v4392 = vsel %vm4360, %v4322, 0
      %v4395 = vsel %vm4360, %v4323, 0
      %v4398 = vsel %vm4360, %v4324, 0
      %v4401 = vsel %vm4360, %v4325, 0
      %v4404 = vsel %vm4360, %v4326, 0
      %v4407 = vsel %vm4360, %v4327, 0
      %v4410 = vsel %vm4360, %v4328, 0
      %v4413 = vsel %vm4360, %v4329, 0
      %v4416 = vsel %vm4360, %v4330, 0
      %v4419 = vsel %vm4360, %v4331, 0
      %v4422 = vsel %vm4360, %v4332, 0
      %v4425 = vsel %vm4360, %v4333, 0
      %v4428 = vsel %vm4360, %v4334, 0
      %v4431 = vsel %vm4360, %v4335, 0
      %v4434 = vsel %vm4360, %v4336, 0
      %v4437 = vsel %vm4360, %v4337, 0
      %v4440 = vsel %vm4360, %v4338, 0
      %v4443 = vsel %vm4360, %v4339, 0
      %v4446 = vsel %vm4360, %v4340, 0
      %v4449 = vsel %vm4360, %v4341, 0
      %v4452 = vsel %vm4360, %v4342, 0
      %v4455 = vsel %vm4360, %v4343, 0
      %4457 = vmatprep.subr.mxu0 0.0
      %4458 = vmatpush1.msra.mxu0 0.0
      %4459 = vmatprep.subr.mxu0 0.0
      %4460 = vmatpush1.msra.mxu0 0.0
      %4461 = vmatprep.subr.mxu0 0.0
      %4462 = vmatpush1.msra.mxu0 0.0
      %4463 = vmatprep.subr.mxu0 0.0
      %4464 = vmatpush1.msra.mxu0 0.0
      %4465 = vmatprep.subr.mxu0 0.0
      %4466 = vmatpush1.msra.mxu0 0.0
      %4467 = vmatprep.subr.mxu0 0.0
      %4468 = vmatpush1.msra.mxu0 0.0
      %4469 = vmatprep.subr.mxu0 0.0
      %4470 = vmatpush1.msra.mxu0 0.0
      %4471 = vmatprep.subr.mxu0 0.0
      %4472 = vmatpush1.msra.mxu0 %v4352
      %4473 = vmatprep.subr.mxu0 0.0
      %4474 = vmatpush1.msra.mxu0 %v4351
      %4475 = vmatprep.subr.mxu0 0.0
      %4476 = vmatpush1.msra.mxu0 %v4350
      %4477 = vmatprep.subr.mxu0 0.0
      %4478 = vmatpush1.msra.mxu0 %v4349
      %4479 = vmatprep.subr.mxu0 0.0
      %4480 = vmatpush1.msra.mxu0 %v4348
      %4481 = vmatprep.subr.mxu0 0.0
      %4482 = vmatpush1.msra.mxu0 %v4347
      %4483 = vmatprep.subr.mxu0 0.0
      %4484 = vmatpush1.msra.mxu0 %v4346
      %4485 = vmatprep.subr.mxu0 0.0
      %4486 = vmatpush1.msra.mxu0 %v4345
      %4487 = vmatprep.subr.mxu0 0.0
      %4488 = vmatpush1.msra.mxu0 %v4344
      %4489 = vmatprep.subr.mxu0 0.0
      %4490 = vmatpush2.msra.mxu0 0.0
      %4491 = vmatprep.subr.mxu0 0.0
      %4492 = vmatpush2.msra.mxu0 0.0
      %4493 = vmatprep.subr.mxu0 0.0
      %4494 = vmatpush2.msra.mxu0 0.0
      %4495 = vmatprep.subr.mxu0 0.0
      %4496 = vmatpush2.msra.mxu0 0.0
      %4497 = vmatprep.subr.mxu0 0.0
      %4498 = vmatpush2.msra.mxu0 0.0
      %4499 = vmatprep.subr.mxu0 0.0
      %4500 = vmatpush2.msra.mxu0 0.0
      %4501 = vmatprep.subr.mxu0 0.0
      %4502 = vmatpush2.msra.mxu0 0.0
      %4503 = vmatprep.subr.mxu0 0.0
      %4504 = vmatpush2.msra.mxu0 0.0
      %4505 = vmatprep.subr.mxu0 0.0
      %4506 = vmatpush2.msra.mxu0 0.0
      %4507 = vmatprep.subr.mxu0 0.0
      %4508 = vmatpush2.msra.mxu0 0.0
      %4509 = vmatprep.subr.mxu0 0.0
      %4510 = vmatpush2.msra.mxu0 0.0
      %4511 = vmatprep.subr.mxu0 0.0
      %4512 = vmatpush2.msra.mxu0 0.0
      %4513 = vmatprep.subr.mxu0 0.0
      %4514 = vmatpush2.msra.mxu0 0.0
      %4515 = vmatprep.subr.mxu0 0.0
      %4516 = vmatpush2.msra.mxu0 0.0
      %4517 = vmatprep.subr.mxu0 0.0
      %4518 = vmatpush2.msra.mxu0 0.0
      %4519 = vmatprep.subr.mxu0 0.0
      %4520 = vmatpush2.msra.mxu0 0.0
      %4521 = vmatprep.mubr.f32.mxu0 0.0
      %4522 = vmatmul.mubr.f32.gmra.mxu0 %v4362
      %v4523 = vpop.f32.mrf.mxu0
      %v4524 = vadd.f32 %v4358, %v4523
      %v4525 = vpop.f32.mrf.mxu0
      %4526 = vmatprep.mubr.f32.mxu0 0.0
      %4527 = vmatmul.mubr.f32.gmra.mxu0 %v4365
      %v4528 = vpop.f32.mrf.mxu0
      %v4529 = vadd.f32 %v4358, %v4528
      %v4530 = vpop.f32.mrf.mxu0
      %4531 = vmatprep.mubr.f32.mxu0 0.0
      %4532 = vmatmul.mubr.f32.gmra.mxu0 %v4368
      %v4533 = vpop.f32.mrf.mxu0
      %v4534 = vadd.f32 %v4358, %v4533
      %v4535 = vpop.f32.mrf.mxu0
      %4536 = vmatprep.mubr.f32.mxu0 0.0
      %4537 = vmatmul.mubr.f32.gmra.mxu0 %v4371
      %v4538 = vpop.f32.mrf.mxu0
      %v4539 = vadd.f32 %v4358, %v4538
      %v4540 = vpop.f32.mrf.mxu0
      %4541 = vmatprep.mubr.f32.mxu0 0.0
      %4542 = vmatmul.mubr.f32.gmra.mxu0 %v4374
      %v4543 = vpop.f32.mrf.mxu0
      %v4544 = vadd.f32 %v4358, %v4543
      %v4545 = vpop.f32.mrf.mxu0
      %4546 = vmatprep.mubr.f32.mxu0 0.0
      %4547 = vmatmul.mubr.f32.gmra.mxu0 %v4377
      %v4548 = vpop.f32.mrf.mxu0
      %v4549 = vadd.f32 %v4358, %v4548
      %v4550 = vpop.f32.mrf.mxu0
      %4551 = vmatprep.mubr.f32.mxu0 0.0
      %4552 = vmatmul.mubr.f32.gmra.mxu0 %v4380
      %v4553 = vpop.f32.mrf.mxu0
      %v4554 = vadd.f32 %v4358, %v4553
      %v4555 = vpop.f32.mrf.mxu0
      %4556 = vmatprep.mubr.f32.mxu0 0.0
      %4557 = vmatmul.mubr.f32.gmra.mxu0 %v4383
      %v4558 = vpop.f32.mrf.mxu0
      %v4559 = vadd.f32 %v4358, %v4558
      %v4560 = vpop.f32.mrf.mxu0
      %4561 = vmatprep.mubr.f32.mxu0 0.0
      %4562 = vmatmul.mubr.f32.gmra.mxu0 %v4386
      %v4563 = vpop.f32.mrf.mxu0
      %v4564 = vadd.f32 %v4358, %v4563
      %v4565 = vpop.f32.mrf.mxu0
      %4566 = vmatprep.mubr.f32.mxu0 0.0
      %4567 = vmatmul.mubr.f32.gmra.mxu0 %v4389
      %v4568 = vpop.f32.mrf.mxu0
      %v4569 = vadd.f32 %v4358, %v4568
      %v4570 = vpop.f32.mrf.mxu0
      %4571 = vmatprep.mubr.f32.mxu0 0.0
      %4572 = vmatmul.mubr.f32.gmra.mxu0 %v4392
      %v4573 = vpop.f32.mrf.mxu0
      %v4574 = vadd.f32 %v4358, %v4573
      %v4575 = vpop.f32.mrf.mxu0
      %4576 = vmatprep.mubr.f32.mxu0 0.0
      %4577 = vmatmul.mubr.f32.gmra.mxu0 %v4395
      %v4578 = vpop.f32.mrf.mxu0
      %v4579 = vadd.f32 %v4358, %v4578
      %v4580 = vpop.f32.mrf.mxu0
      %4581 = vmatprep.mubr.f32.mxu0 0.0
      %4582 = vmatmul.mubr.f32.gmra.mxu0 %v4398
      %v4583 = vpop.f32.mrf.mxu0
      %v4584 = vadd.f32 %v4358, %v4583
      %v4585 = vpop.f32.mrf.mxu0
      %4586 = vmatprep.mubr.f32.mxu0 0.0
      %4587 = vmatmul.mubr.f32.gmra.mxu0 %v4401
      %v4588 = vpop.f32.mrf.mxu0
      %v4589 = vadd.f32 %v4358, %v4588
      %v4590 = vpop.f32.mrf.mxu0
      %4591 = vmatprep.mubr.f32.mxu0 0.0
      %4592 = vmatmul.mubr.f32.gmra.mxu0 %v4404
      %v4593 = vpop.f32.mrf.mxu0
      %v4594 = vadd.f32 %v4358, %v4593
      %v4595 = vpop.f32.mrf.mxu0
      %4596 = vmatprep.mubr.f32.mxu0 0.0
      %4597 = vmatmul.mubr.f32.gmra.mxu0 %v4407
      %v4598 = vpop.f32.mrf.mxu0
      %v4599 = vadd.f32 %v4358, %v4598
      %v4600 = vpop.f32.mrf.mxu0
      %4601 = vmatprep.mubr.f32.mxu0 0.0
      %4602 = vmatmul.mubr.f32.gmra.mxu0 %v4410
      %v4603 = vpop.f32.mrf.mxu0
      %v4604 = vadd.f32 %v4358, %v4603
      %v4605 = vpop.f32.mrf.mxu0
      %4606 = vmatprep.mubr.f32.mxu0 0.0
      %4607 = vmatmul.mubr.f32.gmra.mxu0 %v4413
      %v4608 = vpop.f32.mrf.mxu0
      %v4609 = vadd.f32 %v4358, %v4608
      %v4610 = vpop.f32.mrf.mxu0
      %4611 = vmatprep.mubr.f32.mxu0 0.0
      %4612 = vmatmul.mubr.f32.gmra.mxu0 %v4416
      %v4613 = vpop.f32.mrf.mxu0
      %v4614 = vadd.f32 %v4358, %v4613
      %v4615 = vpop.f32.mrf.mxu0
      %4616 = vmatprep.mubr.f32.mxu0 0.0
      %4617 = vmatmul.mubr.f32.gmra.mxu0 %v4419
      %v4618 = vpop.f32.mrf.mxu0
      %v4619 = vadd.f32 %v4358, %v4618
      %v4620 = vpop.f32.mrf.mxu0
      %4621 = vmatprep.mubr.f32.mxu0 0.0
      %4622 = vmatmul.mubr.f32.gmra.mxu0 %v4422
      %v4623 = vpop.f32.mrf.mxu0
      %v4624 = vadd.f32 %v4358, %v4623
      %v4625 = vpop.f32.mrf.mxu0
      %4626 = vmatprep.mubr.f32.mxu0 0.0
      %4627 = vmatmul.mubr.f32.gmra.mxu0 %v4425
      %v4628 = vpop.f32.mrf.mxu0
      %v4629 = vadd.f32 %v4358, %v4628
      %v4630 = vpop.f32.mrf.mxu0
      %4631 = vmatprep.mubr.f32.mxu0 0.0
      %4632 = vmatmul.mubr.f32.gmra.mxu0 %v4428
      %v4633 = vpop.f32.mrf.mxu0
      %v4634 = vadd.f32 %v4358, %v4633
      %v4635 = vpop.f32.mrf.mxu0
      %4636 = vmatprep.mubr.f32.mxu0 0.0
      %4637 = vmatmul.mubr.f32.gmra.mxu0 %v4431
      %v4638 = vpop.f32.mrf.mxu0
      %v4639 = vadd.f32 %v4358, %v4638
      %v4640 = vpop.f32.mrf.mxu0
      %4641 = vmatprep.mubr.f32.mxu0 0.0
      %4642 = vmatmul.mubr.f32.gmra.mxu0 %v4434
      %v4643 = vpop.f32.mrf.mxu0
      %v4644 = vadd.f32 %v4358, %v4643
      %v4645 = vpop.f32.mrf.mxu0
      %4646 = vmatprep.mubr.f32.mxu0 0.0
      %4647 = vmatmul.mubr.f32.gmra.mxu0 %v4437
      %v4648 = vpop.f32.mrf.mxu0
      %v4649 = vadd.f32 %v4358, %v4648
      %v4650 = vpop.f32.mrf.mxu0
      %4651 = vmatprep.mubr.f32.mxu0 0.0
      %4652 = vmatmul.mubr.f32.gmra.mxu0 %v4440
      %v4653 = vpop.f32.mrf.mxu0
      %v4654 = vadd.f32 %v4358, %v4653
      %v4655 = vpop.f32.mrf.mxu0
      %4656 = vmatprep.mubr.f32.mxu0 0.0
      %4657 = vmatmul.mubr.f32.gmra.mxu0 %v4443
      %v4658 = vpop.f32.mrf.mxu0
      %v4659 = vadd.f32 %v4358, %v4658
      %v4660 = vpop.f32.mrf.mxu0
      %4661 = vmatprep.mubr.f32.mxu0 0.0
      %4662 = vmatmul.mubr.f32.gmra.mxu0 %v4446
      %v4663 = vpop.f32.mrf.mxu0
      %v4664 = vadd.f32 %v4358, %v4663
      %v4665 = vpop.f32.mrf.mxu0
      %4666 = vmatprep.mubr.f32.mxu0 0.0
      %4667 = vmatmul.mubr.f32.gmra.mxu0 %v4449
      %v4668 = vpop.f32.mrf.mxu0
      %v4669 = vadd.f32 %v4358, %v4668
      %v4670 = vpop.f32.mrf.mxu0
      %4671 = vmatprep.mubr.f32.mxu0 0.0
      %4672 = vmatmul.mubr.f32.gmra.mxu0 %v4452
      %v4673 = vpop.f32.mrf.mxu0
      %v4674 = vadd.f32 %v4358, %v4673
      %v4675 = vpop.f32.mrf.mxu0
      %4676 = vmatprep.mubr.f32.mxu0 0.0
      %4677 = vmatmul.mubr.f32.gmra.mxu0 %v4455
      %v4678 = vpop.f32.mrf.mxu0
      %v4679 = vadd.f32 %v4358, %v4678
      %v4680 = vpop.f32.mrf.mxu0
      %4681 = vdwg.mxu0
      %v4682 = vld [vmem:[%s273] sm:$0xff]
      %v4683 = vld [vmem:[%s273 + $0x8] sm:$0xff]
      %v4684 = vld [vmem:[%s273 + $0x10] sm:$0xff]
      %v4685 = vld [vmem:[%s273 + $0x18] sm:$0xff]
      %v4686 = vld [vmem:[%s273 + $0x20] sm:$0xff]
      %v4687 = vld [vmem:[%s273 + $0x28] sm:$0xff]
      %v4688 = vld [vmem:[%s273 + $0x30] sm:$0xff]
      %v4689 = vld [vmem:[%s273 + $0x38] sm:$0xff]
      %v4690 = vld [vmem:[%s273 + $0x40] sm:$0xff]
      %v4691 = vld [vmem:[%s273 + $0x48] sm:$0xff]
      %v4692 = vld [vmem:[%s273 + $0x50] sm:$0xff]
      %v4693 = vld [vmem:[%s273 + $0x58] sm:$0xff]
      %v4694 = vld [vmem:[%s273 + $0x60] sm:$0xff]
      %v4695 = vld [vmem:[%s273 + $0x68] sm:$0xff]
      %v4696 = vld [vmem:[%s273 + $0x70] sm:$0xff]
      %v4697 = vld [vmem:[%s273 + $0x78] sm:$0xff]
      %v4698 = vld [vmem:[%s273 + $0x80] sm:$0xff]
      %v4699 = vld [vmem:[%s273 + $0x88] sm:$0xff]
      %v4700 = vld [vmem:[%s273 + $0x90] sm:$0xff]
      %v4701 = vld [vmem:[%s273 + $0x98] sm:$0xff]
      %v4702 = vld [vmem:[%s273 + $0xa0] sm:$0xff]
      %v4703 = vld [vmem:[%s273 + $0xa8] sm:$0xff]
      %v4704 = vld [vmem:[%s273 + $0xb0] sm:$0xff]
      %v4705 = vld [vmem:[%s273 + $0xb8] sm:$0xff]
      %v4706 = vld [vmem:[%s273 + $0xc0] sm:$0xff]
      %v4707 = vld [vmem:[%s273 + $0xc8] sm:$0xff]
      %v4708 = vld [vmem:[%s273 + $0xd0] sm:$0xff]
      %v4709 = vld [vmem:[%s273 + $0xd8] sm:$0xff]
      %v4710 = vld [vmem:[%s273 + $0xe0] sm:$0xff]
      %v4711 = vld [vmem:[%s273 + $0xe8] sm:$0xff]
      %v4712 = vld [vmem:[%s273 + $0xf0] sm:$0xff]
      %v4713 = vld [vmem:[%s273 + $0xf8] sm:$0xff]
      %v4714 = vsel %vm550, %v4682, 0.0
      %v4715 = vsel %vm550, %v4683, 0.0
      %v4716 = vsel %vm550, %v4684, 0.0
      %v4717 = vsel %vm550, %v4685, 0.0
      %v4718 = vsel %vm550, %v4686, 0.0
      %v4719 = vsel %vm550, %v4687, 0.0
      %v4720 = vsel %vm550, %v4688, 0.0
      %v4721 = vsel %vm550, %v4689, 0.0
      %v4722 = vsel %vm550, %v4690, 0.0
      %v4723 = vsel %vm550, %v4691, 0.0
      %v4724 = vsel %vm550, %v4692, 0.0
      %v4725 = vsel %vm550, %v4693, 0.0
      %v4726 = vsel %vm550, %v4694, 0.0
      %v4727 = vsel %vm550, %v4695, 0.0
      %v4728 = vsel %vm550, %v4696, 0.0
      %v4729 = vsel %vm550, %v4697, 0.0
      %v4730 = vsel %vm550, %v4698, 0.0
      %v4731 = vsel %vm550, %v4699, 0.0
      %v4732 = vsel %vm550, %v4700, 0.0
      %v4733 = vsel %vm550, %v4701, 0.0
      %v4734 = vsel %vm550, %v4702, 0.0
      %v4735 = vsel %vm550, %v4703, 0.0
      %v4736 = vsel %vm550, %v4704, 0.0
      %v4737 = vsel %vm550, %v4705, 0.0
      %v4738 = vsel %vm550, %v4706, 0.0
      %v4739 = vsel %vm550, %v4707, 0.0
      %v4740 = vsel %vm550, %v4708, 0.0
      %v4741 = vsel %vm550, %v4709, 0.0
      %v4742 = vsel %vm550, %v4710, 0.0
      %v4743 = vsel %vm550, %v4711, 0.0
      %v4744 = vsel %vm550, %v4712, 0.0
      %v4745 = vsel %vm550, %v4713, 0.0
      %v4746 = vadd.f32 %v4524, %v4714
      %v4747 = vadd.f32 %v4529, %v4715
      %v4748 = vadd.f32 %v4534, %v4716
      %v4749 = vadd.f32 %v4539, %v4717
      %v4750 = vadd.f32 %v4544, %v4718
      %v4751 = vadd.f32 %v4549, %v4719
      %v4752 = vadd.f32 %v4554, %v4720
      %v4753 = vadd.f32 %v4559, %v4721
      %v4754 = vadd.f32 %v4564, %v4722
      %v4755 = vadd.f32 %v4569, %v4723
      %v4756 = vadd.f32 %v4574, %v4724
      %v4757 = vadd.f32 %v4579, %v4725
      %v4758 = vadd.f32 %v4584, %v4726
      %v4759 = vadd.f32 %v4589, %v4727
      %v4760 = vadd.f32 %v4594, %v4728
      %v4761 = vadd.f32 %v4599, %v4729
      %v4762 = vadd.f32 %v4604, %v4730
      %v4763 = vadd.f32 %v4609, %v4731
      %v4764 = vadd.f32 %v4614, %v4732
      %v4765 = vadd.f32 %v4619, %v4733
      %v4766 = vadd.f32 %v4624, %v4734
      %v4767 = vadd.f32 %v4629, %v4735
      %v4768 = vadd.f32 %v4634, %v4736
      %v4769 = vadd.f32 %v4639, %v4737
      %v4770 = vadd.f32 %v4644, %v4738
      %v4771 = vadd.f32 %v4649, %v4739
      %v4772 = vadd.f32 %v4654, %v4740
      %v4773 = vadd.f32 %v4659, %v4741
      %v4774 = vadd.f32 %v4664, %v4742
      %v4775 = vadd.f32 %v4669, %v4743
      %v4776 = vadd.f32 %v4674, %v4744
      %v4777 = vadd.f32 %v4679, %v4745
      %4778 = vst.msk [vmem:[%s278] sm:$0xff] %vm608, %v4746
      %4779 = vst.msk [vmem:[%s278 + $0x8] sm:$0xff] %vm608, %v4747
      %4780 = vst.msk [vmem:[%s278 + $0x10] sm:$0xff] %vm608, %v4748
      %4781 = vst.msk [vmem:[%s278 + $0x18] sm:$0xff] %vm608, %v4749
      %4782 = vst.msk [vmem:[%s278 + $0x20] sm:$0xff] %vm608, %v4750
      %4783 = vst.msk [vmem:[%s278 + $0x28] sm:$0xff] %vm608, %v4751
      %4784 = vst.msk [vmem:[%s278 + $0x30] sm:$0xff] %vm608, %v4752
      %4785 = vst.msk [vmem:[%s278 + $0x38] sm:$0xff] %vm608, %v4753
      %4786 = vst.msk [vmem:[%s278 + $0x40] sm:$0xff] %vm608, %v4754
      %4787 = vst.msk [vmem:[%s278 + $0x48] sm:$0xff] %vm608, %v4755
      %4788 = vst.msk [vmem:[%s278 + $0x50] sm:$0xff] %vm608, %v4756
      %4789 = vst.msk [vmem:[%s278 + $0x58] sm:$0xff] %vm608, %v4757
      %4790 = vst.msk [vmem:[%s278 + $0x60] sm:$0xff] %vm608, %v4758
      %4791 = vst.msk [vmem:[%s278 + $0x68] sm:$0xff] %vm608, %v4759
      %4792 = vst.msk [vmem:[%s278 + $0x70] sm:$0xff] %vm608, %v4760
      %4793 = vst.msk [vmem:[%s278 + $0x78] sm:$0xff] %vm608, %v4761
      %4794 = vst.msk [vmem:[%s278 + $0x80] sm:$0xff] %vm608, %v4762
      %4795 = vst.msk [vmem:[%s278 + $0x88] sm:$0xff] %vm608, %v4763
      %4796 = vst.msk [vmem:[%s278 + $0x90] sm:$0xff] %vm608, %v4764
      %4797 = vst.msk [vmem:[%s278 + $0x98] sm:$0xff] %vm608, %v4765
      %4798 = vst.msk [vmem:[%s278 + $0xa0] sm:$0xff] %vm608, %v4766
      %4799 = vst.msk [vmem:[%s278 + $0xa8] sm:$0xff] %vm608, %v4767
      %4800 = vst.msk [vmem:[%s278 + $0xb0] sm:$0xff] %vm608, %v4768
      %4801 = vst.msk [vmem:[%s278 + $0xb8] sm:$0xff] %vm608, %v4769
      %4802 = vst.msk [vmem:[%s278 + $0xc0] sm:$0xff] %vm608, %v4770
      %4803 = vst.msk [vmem:[%s278 + $0xc8] sm:$0xff] %vm608, %v4771
      %4804 = vst.msk [vmem:[%s278 + $0xd0] sm:$0xff] %vm608, %v4772
      %4805 = vst.msk [vmem:[%s278 + $0xd8] sm:$0xff] %vm608, %v4773
      %4806 = vst.msk [vmem:[%s278 + $0xe0] sm:$0xff] %vm608, %v4774
      %4807 = vst.msk [vmem:[%s278 + $0xe8] sm:$0xff] %vm608, %v4775
      %4808 = vst.msk [vmem:[%s278 + $0xf0] sm:$0xff] %vm608, %v4776
      %4809 = vst.msk [vmem:[%s278 + $0xf8] sm:$0xff] %vm608, %v4777
      %p4810 = scmp.lt.s32.totalorder %s18, 1
      %s4811 = scalar_select %p4810, %s18, 1
      %s4812 = smul.addr %s4811, 32
      %s4813 = smul.addr %s4812, 8
      %s4814 = scalar_lea.vmem %s7, %s4813
      // Predicated region
      $region49: #{tpu_custom_call.1} parent=47 // pred_check
        %p4815 = pneg %p188
      $region50: #{tpu_custom_call.1} parent=47 // pred_check_branch
        %4817 = sbr.rel (%p4815) target = $region52
      $region51: #{tpu_custom_call.1} parent=47 // pred_region
        _
      $region52: #{tpu_custom_call.1} parent=47 // pred_fallthru
        _
    $region48: #{tpu_custom_call.1} parent=5 // pred_fallthru
      _
    %p4818 = scmp.le.s32.totalorder 2, %s13
    // Predicated region
    $region53: #{tpu_custom_call.1} parent=5 // pred_check
      %p4819 = pneg %p4818
    $region54: #{tpu_custom_call.1} parent=5 // pred_check_branch
      %4821 = sbr.rel (%p4819) target = $region56
    $region55: #{tpu_custom_call.1} parent=5 // pred_region
      %s4822 = ssub.s32 %s13, 2
      // Predicated region
      $region57: #{tpu_custom_call.1} parent=55 // pred_check
        %p4823 = pneg %p194
      $region58: #{tpu_custom_call.1} parent=55 // pred_check_branch
        %4825 = sbr.rel (%p4823) target = $region60
      $region59: #{tpu_custom_call.1} parent=55 // pred_region
        %p4826 = scmp.lt.s32.totalorder %s19, 1
        %s4827 = scalar_select %p4826, %s19, 1
        %s4828 = smul.addr %s4827, 32
        %s4829 = smul.addr %s4828, 8
        %s4830 = scalar_lea.vmem %s7, %s4829
      $region60: #{tpu_custom_call.1} parent=55 // pred_fallthru
        _
    $region56: #{tpu_custom_call.1} parent=5 // pred_fallthru
      _
  $region6: #{tpu_custom_call.1} parent=0 // loop_footer
    %s17 = sadd.s32 1, %s13
  $region7: #{tpu_custom_call.1} parent=0 // loop_footer_branch
    %12 = sbr.rel target = $region3
  $region8: #{tpu_custom_call.1} parent=0 // loop_exit
    _

</llo_original>
